<compile_context>
chip_gen: v6e
topology: v6e:2x2x1
jax: 0.10.0
libtpu: 0.0.40
codegen_flags: <defaults>
</compile_context>

<pallas_src>
import functools

import jax
import jax.numpy as jnp
import numpy as np
from jax.experimental import pallas as pl
from jax.experimental.pallas import tpu as pltpu

HIDDEN = 10
SUB = 8            # row (sublane) chunk for the MLP
LANE_CHUNK = 256   # lane chunk: ~20 live (8,256) f32 tiles = ~40 vregs < 64


def rdm_mlp_kernel(x_ref, w1_ref, b1_ref, w2_ref, b2_ref, w3_ref, b3_ref,
                   w4_ref, b4_ref, w5_ref, b5_ref, o_ref, *,
                   compute_dtype, lane_chunk):
    R, T = x_ref.shape            # R = B_BLK * Cp rows, full time axis
    cdt = compute_dtype

    # ---- Hoist all weight scalars out of the chunk loops (SMEM -> sregs once).
    w1 = [w1_ref[k].astype(cdt) for k in range(HIDDEN)]
    b1 = [b1_ref[k].astype(cdt) for k in range(HIDDEN)]
    hidden_layers = []
    for w_ref, b_ref in ((w2_ref, b2_ref), (w3_ref, b3_ref), (w4_ref, b4_ref)):
        W = [[w_ref[j * HIDDEN + k].astype(cdt) for k in range(HIDDEN)]
             for j in range(HIDDEN)]
        bb = [b_ref[j].astype(cdt) for j in range(HIDDEN)]
        hidden_layers.append((W, bb))
    w5 = [w5_ref[k].astype(cdt) for k in range(HIDDEN)]
    b5 = b5_ref[0].astype(cdt)

    def mlp_chunk(xs):
        # Layer 1 (in_dim == 1): pure VPU broadcast FMA + ReLU.
        h = [jnp.maximum(w1[k] * xs + b1[k], 0) for k in range(HIDDEN)]
        # Layers 2..4: 10x10 scalar*tile FMAs on the VPU (no kron expansion).
        for W, bb in hidden_layers:
            nh = []
            for j in range(HIDDEN):
                z = bb[j] + W[j][0] * h[0]
                for k in range(1, HIDDEN):
                    z = z + W[j][k] * h[k]
                nh.append(jnp.maximum(z, 0))
            h = nh
        # Layer 5 (10 -> 1), no ReLU.
        y = b5 + w5[0] * h[0]
        for k in range(1, HIDDEN):
            y = y + w5[k] * h[k]
        return y

    inv_T = 1.0 / T
    # ---- Chunked MLP + in-place normalization (channels on sublanes, time on
    #      lanes).  y overwrites x_ref's block; only (8,1) stats stay live.
    for rc in range(R // SUB):
        r0 = rc * SUB
        s = jnp.zeros((SUB, 1), jnp.float32)
        q = jnp.zeros((SUB, 1), jnp.float32)
        for c0 in range(0, T, lane_chunk):
            lc = min(lane_chunk, T - c0)
            xs = x_ref[pl.ds(r0, SUB), pl.ds(c0, lc)].astype(cdt)
            y = mlp_chunk(xs).astype(jnp.float32)
            x_ref[pl.ds(r0, SUB), pl.ds(c0, lc)] = y
            s = s + jnp.sum(y, axis=1, keepdims=True)
            q = q + jnp.sum(y * y, axis=1, keepdims=True)
        mean = s * inv_T
        inv = jax.lax.rsqrt(q - s * mean)          # rsqrt(sum((y - mean)^2))
        for c0 in range(0, T, lane_chunk):
            lc = min(lane_chunk, T - c0)
            d = x_ref[pl.ds(r0, SUB), pl.ds(c0, lc)] - mean
            x_ref[pl.ds(r0, SUB), pl.ds(c0, lc)] = d * inv

    # ---- One Gram matmul for the whole block: corr = dn @ dn^T (MXU).
    dn = x_ref[...]                                # (R, T) centered+normalized
    corr = jax.lax.dot_general(dn, dn, (((1,), (1,)), ((), ())),
                               preferred_element_type=jnp.float32)
    # torch.corrcoef clamps to [-1, 1]; RDM = 1 - corr.  Lane-dense (R, R) store;
    # the per-condition (C, C) diagonal blocks are carved out in the wrapper.
    o_ref[0] = 1.0 - jnp.clip(corr, -1.0, 1.0)


def init_params(key, in_dim):
    """Deterministic init matching PyTorch nn.Linear default (uniform +-1/sqrt(fan_in))."""
    layer_shapes = [(HIDDEN, in_dim), (HIDDEN, HIDDEN), (HIDDEN, HIDDEN),
                    (HIDDEN, HIDDEN), (1, HIDDEN)]
    params = []
    for out_f, in_f in layer_shapes:
        key, kw, kb = jax.random.split(key, 3)
        bound = 1.0 / np.sqrt(in_f)
        W = jax.random.uniform(kw, (out_f, in_f), jnp.float32, -bound, bound)
        b = jax.random.uniform(kb, (out_f,), jnp.float32, -bound, bound)
        params += [W, b]
    return params


def rdm_mlp_forward(x, params, *, b_blk=None, compute_dtype=jnp.float32,
                    lane_chunk=LANE_CHUNK):
    B, C, T = x.shape
    W1, b1, W2, b2, W3, b3, W4, b4, W5, b5 = params
    assert W1.shape == (HIDDEN, 1), \
        "forward() of the original module only runs with in_dim == 1"

    # Pad channels to a multiple of 8 (sublane tile) and conditions to a
    # multiple of the block size.  Edge padding keeps every row finite.
    Cp = ((C + 7) // 8) * 8
    if b_blk is None:
        b_blk = max(1, min(B, 64 // Cp))           # ~64 rows per grid step
    b_blk = max(1, min(b_blk, B))
    Bp = ((B + b_blk - 1) // b_blk) * b_blk
    n_blocks = Bp // b_blk
    R = b_blk * Cp

    xp = x.astype(jnp.float32)
    if Cp != C or Bp != B:
        xp = jnp.pad(xp, ((0, Bp - B), (0, Cp - C), (0, 0)), mode="edge")
    x2 = xp.reshape(Bp * Cp, T)                    # channels on sublanes, time on lanes

    # Raw weights, flattened to 1-D for SMEM scalar access (no kron expansion).
    f32 = jnp.float32
    args = (x2,
            W1.reshape(HIDDEN).astype(f32), b1.reshape(HIDDEN).astype(f32),
            W2.reshape(HIDDEN * HIDDEN).astype(f32), b2.reshape(HIDDEN).astype(f32),
            W3.reshape(HIDDEN * HIDDEN).astype(f32), b3.reshape(HIDDEN).astype(f32),
            W4.reshape(HIDDEN * HIDDEN).astype(f32), b4.reshape(HIDDEN).astype(f32),
            W5.reshape(HIDDEN).astype(f32), b5.reshape(1).astype(f32))

    smem = pl.BlockSpec(memory_space=pltpu.MemorySpace.SMEM)

    # Explicit scoped-VMEM budget (v5e default is only ~16 MiB); per-step
    # footprint is 2x double-buffered input block + 2x output block + margin.
    vmem_bytes = 2 * (R * T * 4) + 2 * (R * R * 4) + (4 << 20)
    vmem_limit = int(min(max(vmem_bytes, 32 << 20), 60 << 20))

    kern = functools.partial(rdm_mlp_kernel, compute_dtype=compute_dtype,
                             lane_chunk=lane_chunk)

    rdm_full = pl.pallas_call(
        kern,
        out_shape=jax.ShapeDtypeStruct((n_blocks, R, R), jnp.float32),
        grid=(n_blocks,),
        in_specs=[pl.BlockSpec((R, T), lambda g: (g, 0))] + [smem] * 10,
        out_specs=pl.BlockSpec((1, R, R), lambda g: (g, 0, 0)),
        compiler_params=pltpu.CompilerParams(
            dimension_semantics=("parallel",),     # v7x: shard blocks over 2 TCs
            vmem_limit_bytes=vmem_limit),
    )(*args)

    # Carve the per-condition (C, C) diagonal blocks out of each block's
    # (R, R) RDM and strip the channel/condition padding.
    d = rdm_full.reshape(n_blocks, b_blk, Cp, b_blk, Cp)
    d = jnp.diagonal(d, axis1=1, axis2=3)          # (n_blocks, Cp, Cp, b_blk)
    d = jnp.moveaxis(d, -1, 1)                     # (n_blocks, b_blk, Cp, Cp)
    return d.reshape(Bp, Cp, Cp)[:B, :C, :C]


def rdm_mlp_reference(x, params):
    """Pure-JAX reference mirroring the PyTorch forward (in_dim == 1)."""
    W1, b1, W2, b2, W3, b3, W4, b4, W5, b5 = params
    B, C, T = x.shape
    pts = x.reshape(B * C * T, 1)
    h = jax.nn.relu(pts @ W1.T + b1)
    h = jax.nn.relu(h @ W2.T + b2)
    h = jax.nn.relu(h @ W3.T + b3)
    h = jax.nn.relu(h @ W4.T + b4)
    y = (h @ W5.T + b5).reshape(B, C, T)

    def per_cond(yb):
        m = yb.mean(axis=1, keepdims=True)
        d = yb - m
        cov = d @ d.T
        var = jnp.diagonal(cov)
        corr = cov / jnp.sqrt(jnp.outer(var, var))
        corr = jnp.clip(corr, -1.0, 1.0)
        return 1.0 - corr

    return jax.vmap(per_cond)(y)


if __name__ == "__main__":
    key = jax.random.PRNGKey(0)
    kx, kp, kx2 = jax.random.split(key, 3)

    params = init_params(kp, 1)   # original forward() only runs with in_dim == 1

    # Primary small shape: (conditions, channels, time).
    B, C, T = 2, 4, 16
    x = jax.random.normal(kx, (B, C, T), dtype=jnp.float32)
    out = jax.block_until_ready(rdm_mlp_forward(x, params))
    ref = rdm_mlp_reference(x, params)
    assert out.shape == (B, C, C)
    np.testing.assert_allclose(np.asarray(out), np.asarray(ref),
                               rtol=1e-3, atol=1e-3, equal_nan=True)

    # Extra shapes: channel padding + odd T, and a multi-block grid with
    # condition padding (b_blk=2 forces 2 grid steps).
    for (B2, C2, T2, bb) in ((3, 5, 37, None), (3, 4, 16, 2)):
        x2 = jax.random.normal(kx2, (B2, C2, T2), dtype=jnp.float32)
        o2 = jax.block_until_ready(rdm_mlp_forward(x2, params, b_blk=bb))
        r2 = rdm_mlp_reference(x2, params)
        np.testing.assert_allclose(np.asarray(o2), np.asarray(r2),
                                   rtol=1e-3, atol=1e-3, equal_nan=True)

    print("KERNEL_OK")
</pallas_src>

<mosaic_0001>
module attributes {stable_mosaic.version = 11 : i64} {
  func.func @rdm_mlp_kernel(%arg0: i32, %arg1: memref<16x16xf32, #tpu.memory_space<vmem>>, %arg2: memref<10xf32, #tpu.memory_space<smem>>, %arg3: memref<10xf32, #tpu.memory_space<smem>>, %arg4: memref<100xf32, #tpu.memory_space<smem>>, %arg5: memref<10xf32, #tpu.memory_space<smem>>, %arg6: memref<100xf32, #tpu.memory_space<smem>>, %arg7: memref<10xf32, #tpu.memory_space<smem>>, %arg8: memref<100xf32, #tpu.memory_space<smem>>, %arg9: memref<10xf32, #tpu.memory_space<smem>>, %arg10: memref<10xf32, #tpu.memory_space<smem>>, %arg11: memref<1xf32, #tpu.memory_space<smem>>, %arg12: memref<1x16x16xf32, #tpu.memory_space<vmem>>) attributes {dimension_semantics = [#tpu.dimension_semantics<parallel>], iteration_bounds = array<i64: 1>, scalar_prefetch = 0 : i64, scratch_operands = 0 : i64, tpu.core_type = #tpu.core_type<tc>, window_params = [{transform_indices = @transform_0, window_bounds = array<i64: 16, 16>}, {transform_indices = @transform_1, window_bounds = array<i64: 10>}, {transform_indices = @transform_2, window_bounds = array<i64: 10>}, {transform_indices = @transform_3, window_bounds = array<i64: 100>}, {transform_indices = @transform_4, window_bounds = array<i64: 10>}, {transform_indices = @transform_5, window_bounds = array<i64: 100>}, {transform_indices = @transform_6, window_bounds = array<i64: 10>}, {transform_indices = @transform_7, window_bounds = array<i64: 100>}, {transform_indices = @transform_8, window_bounds = array<i64: 10>}, {transform_indices = @transform_9, window_bounds = array<i64: 10>}, {transform_indices = @transform_10, window_bounds = array<i64: 1>}, {transform_indices = @transform_11, window_bounds = array<i64: 1, 16, 16>}]} {
    %c0 = arith.constant 0 : index
    %0 = memref.load %arg2[%c0] : memref<10xf32, #tpu.memory_space<smem>>
    %c1 = arith.constant 1 : index
    %1 = memref.load %arg2[%c1] : memref<10xf32, #tpu.memory_space<smem>>
    %c2 = arith.constant 2 : index
    %2 = memref.load %arg2[%c2] : memref<10xf32, #tpu.memory_space<smem>>
    %c3 = arith.constant 3 : index
    %3 = memref.load %arg2[%c3] : memref<10xf32, #tpu.memory_space<smem>>
    %c4 = arith.constant 4 : index
    %4 = memref.load %arg2[%c4] : memref<10xf32, #tpu.memory_space<smem>>
    %c5 = arith.constant 5 : index
    %5 = memref.load %arg2[%c5] : memref<10xf32, #tpu.memory_space<smem>>
    %c6 = arith.constant 6 : index
    %6 = memref.load %arg2[%c6] : memref<10xf32, #tpu.memory_space<smem>>
    %c7 = arith.constant 7 : index
    %7 = memref.load %arg2[%c7] : memref<10xf32, #tpu.memory_space<smem>>
    %c8 = arith.constant 8 : index
    %8 = memref.load %arg2[%c8] : memref<10xf32, #tpu.memory_space<smem>>
    %c9 = arith.constant 9 : index
    %9 = memref.load %arg2[%c9] : memref<10xf32, #tpu.memory_space<smem>>
    %c0_0 = arith.constant 0 : index
    %10 = memref.load %arg3[%c0_0] : memref<10xf32, #tpu.memory_space<smem>>
    %c1_1 = arith.constant 1 : index
    %11 = memref.load %arg3[%c1_1] : memref<10xf32, #tpu.memory_space<smem>>
    %c2_2 = arith.constant 2 : index
    %12 = memref.load %arg3[%c2_2] : memref<10xf32, #tpu.memory_space<smem>>
    %c3_3 = arith.constant 3 : index
    %13 = memref.load %arg3[%c3_3] : memref<10xf32, #tpu.memory_space<smem>>
    %c4_4 = arith.constant 4 : index
    %14 = memref.load %arg3[%c4_4] : memref<10xf32, #tpu.memory_space<smem>>
    %c5_5 = arith.constant 5 : index
    %15 = memref.load %arg3[%c5_5] : memref<10xf32, #tpu.memory_space<smem>>
    %c6_6 = arith.constant 6 : index
    %16 = memref.load %arg3[%c6_6] : memref<10xf32, #tpu.memory_space<smem>>
    %c7_7 = arith.constant 7 : index
    %17 = memref.load %arg3[%c7_7] : memref<10xf32, #tpu.memory_space<smem>>
    %c8_8 = arith.constant 8 : index
    %18 = memref.load %arg3[%c8_8] : memref<10xf32, #tpu.memory_space<smem>>
    %c9_9 = arith.constant 9 : index
    %19 = memref.load %arg3[%c9_9] : memref<10xf32, #tpu.memory_space<smem>>
    %c0_10 = arith.constant 0 : index
    %20 = memref.load %arg4[%c0_10] : memref<100xf32, #tpu.memory_space<smem>>
    %c1_11 = arith.constant 1 : index
    %21 = memref.load %arg4[%c1_11] : memref<100xf32, #tpu.memory_space<smem>>
    %c2_12 = arith.constant 2 : index
    %22 = memref.load %arg4[%c2_12] : memref<100xf32, #tpu.memory_space<smem>>
    %c3_13 = arith.constant 3 : index
    %23 = memref.load %arg4[%c3_13] : memref<100xf32, #tpu.memory_space<smem>>
    %c4_14 = arith.constant 4 : index
    %24 = memref.load %arg4[%c4_14] : memref<100xf32, #tpu.memory_space<smem>>
    %c5_15 = arith.constant 5 : index
    %25 = memref.load %arg4[%c5_15] : memref<100xf32, #tpu.memory_space<smem>>
    %c6_16 = arith.constant 6 : index
    %26 = memref.load %arg4[%c6_16] : memref<100xf32, #tpu.memory_space<smem>>
    %c7_17 = arith.constant 7 : index
    %27 = memref.load %arg4[%c7_17] : memref<100xf32, #tpu.memory_space<smem>>
    %c8_18 = arith.constant 8 : index
    %28 = memref.load %arg4[%c8_18] : memref<100xf32, #tpu.memory_space<smem>>
    %c9_19 = arith.constant 9 : index
    %29 = memref.load %arg4[%c9_19] : memref<100xf32, #tpu.memory_space<smem>>
    %c10 = arith.constant 10 : index
    %30 = memref.load %arg4[%c10] : memref<100xf32, #tpu.memory_space<smem>>
    %c11 = arith.constant 11 : index
    %31 = memref.load %arg4[%c11] : memref<100xf32, #tpu.memory_space<smem>>
    %c12 = arith.constant 12 : index
    %32 = memref.load %arg4[%c12] : memref<100xf32, #tpu.memory_space<smem>>
    %c13 = arith.constant 13 : index
    %33 = memref.load %arg4[%c13] : memref<100xf32, #tpu.memory_space<smem>>
    %c14 = arith.constant 14 : index
    %34 = memref.load %arg4[%c14] : memref<100xf32, #tpu.memory_space<smem>>
    %c15 = arith.constant 15 : index
    %35 = memref.load %arg4[%c15] : memref<100xf32, #tpu.memory_space<smem>>
    %c16 = arith.constant 16 : index
    %36 = memref.load %arg4[%c16] : memref<100xf32, #tpu.memory_space<smem>>
    %c17 = arith.constant 17 : index
    %37 = memref.load %arg4[%c17] : memref<100xf32, #tpu.memory_space<smem>>
    %c18 = arith.constant 18 : index
    %38 = memref.load %arg4[%c18] : memref<100xf32, #tpu.memory_space<smem>>
    %c19 = arith.constant 19 : index
    %39 = memref.load %arg4[%c19] : memref<100xf32, #tpu.memory_space<smem>>
    %c20 = arith.constant 20 : index
    %40 = memref.load %arg4[%c20] : memref<100xf32, #tpu.memory_space<smem>>
    %c21 = arith.constant 21 : index
    %41 = memref.load %arg4[%c21] : memref<100xf32, #tpu.memory_space<smem>>
    %c22 = arith.constant 22 : index
    %42 = memref.load %arg4[%c22] : memref<100xf32, #tpu.memory_space<smem>>
    %c23 = arith.constant 23 : index
    %43 = memref.load %arg4[%c23] : memref<100xf32, #tpu.memory_space<smem>>
    %c24 = arith.constant 24 : index
    %44 = memref.load %arg4[%c24] : memref<100xf32, #tpu.memory_space<smem>>
    %c25 = arith.constant 25 : index
    %45 = memref.load %arg4[%c25] : memref<100xf32, #tpu.memory_space<smem>>
    %c26 = arith.constant 26 : index
    %46 = memref.load %arg4[%c26] : memref<100xf32, #tpu.memory_space<smem>>
    %c27 = arith.constant 27 : index
    %47 = memref.load %arg4[%c27] : memref<100xf32, #tpu.memory_space<smem>>
    %c28 = arith.constant 28 : index
    %48 = memref.load %arg4[%c28] : memref<100xf32, #tpu.memory_space<smem>>
    %c29 = arith.constant 29 : index
    %49 = memref.load %arg4[%c29] : memref<100xf32, #tpu.memory_space<smem>>
    %c30 = arith.constant 30 : index
    %50 = memref.load %arg4[%c30] : memref<100xf32, #tpu.memory_space<smem>>
    %c31 = arith.constant 31 : index
    %51 = memref.load %arg4[%c31] : memref<100xf32, #tpu.memory_space<smem>>
    %c32 = arith.constant 32 : index
    %52 = memref.load %arg4[%c32] : memref<100xf32, #tpu.memory_space<smem>>
    %c33 = arith.constant 33 : index
    %53 = memref.load %arg4[%c33] : memref<100xf32, #tpu.memory_space<smem>>
    %c34 = arith.constant 34 : index
    %54 = memref.load %arg4[%c34] : memref<100xf32, #tpu.memory_space<smem>>
    %c35 = arith.constant 35 : index
    %55 = memref.load %arg4[%c35] : memref<100xf32, #tpu.memory_space<smem>>
    %c36 = arith.constant 36 : index
    %56 = memref.load %arg4[%c36] : memref<100xf32, #tpu.memory_space<smem>>
    %c37 = arith.constant 37 : index
    %57 = memref.load %arg4[%c37] : memref<100xf32, #tpu.memory_space<smem>>
    %c38 = arith.constant 38 : index
    %58 = memref.load %arg4[%c38] : memref<100xf32, #tpu.memory_space<smem>>
    %c39 = arith.constant 39 : index
    %59 = memref.load %arg4[%c39] : memref<100xf32, #tpu.memory_space<smem>>
    %c40 = arith.constant 40 : index
    %60 = memref.load %arg4[%c40] : memref<100xf32, #tpu.memory_space<smem>>
    %c41 = arith.constant 41 : index
    %61 = memref.load %arg4[%c41] : memref<100xf32, #tpu.memory_space<smem>>
    %c42 = arith.constant 42 : index
    %62 = memref.load %arg4[%c42] : memref<100xf32, #tpu.memory_space<smem>>
    %c43 = arith.constant 43 : index
    %63 = memref.load %arg4[%c43] : memref<100xf32, #tpu.memory_space<smem>>
    %c44 = arith.constant 44 : index
    %64 = memref.load %arg4[%c44] : memref<100xf32, #tpu.memory_space<smem>>
    %c45 = arith.constant 45 : index
    %65 = memref.load %arg4[%c45] : memref<100xf32, #tpu.memory_space<smem>>
    %c46 = arith.constant 46 : index
    %66 = memref.load %arg4[%c46] : memref<100xf32, #tpu.memory_space<smem>>
    %c47 = arith.constant 47 : index
    %67 = memref.load %arg4[%c47] : memref<100xf32, #tpu.memory_space<smem>>
    %c48 = arith.constant 48 : index
    %68 = memref.load %arg4[%c48] : memref<100xf32, #tpu.memory_space<smem>>
    %c49 = arith.constant 49 : index
    %69 = memref.load %arg4[%c49] : memref<100xf32, #tpu.memory_space<smem>>
    %c50 = arith.constant 50 : index
    %70 = memref.load %arg4[%c50] : memref<100xf32, #tpu.memory_space<smem>>
    %c51 = arith.constant 51 : index
    %71 = memref.load %arg4[%c51] : memref<100xf32, #tpu.memory_space<smem>>
    %c52 = arith.constant 52 : index
    %72 = memref.load %arg4[%c52] : memref<100xf32, #tpu.memory_space<smem>>
    %c53 = arith.constant 53 : index
    %73 = memref.load %arg4[%c53] : memref<100xf32, #tpu.memory_space<smem>>
    %c54 = arith.constant 54 : index
    %74 = memref.load %arg4[%c54] : memref<100xf32, #tpu.memory_space<smem>>
    %c55 = arith.constant 55 : index
    %75 = memref.load %arg4[%c55] : memref<100xf32, #tpu.memory_space<smem>>
    %c56 = arith.constant 56 : index
    %76 = memref.load %arg4[%c56] : memref<100xf32, #tpu.memory_space<smem>>
    %c57 = arith.constant 57 : index
    %77 = memref.load %arg4[%c57] : memref<100xf32, #tpu.memory_space<smem>>
    %c58 = arith.constant 58 : index
    %78 = memref.load %arg4[%c58] : memref<100xf32, #tpu.memory_space<smem>>
    %c59 = arith.constant 59 : index
    %79 = memref.load %arg4[%c59] : memref<100xf32, #tpu.memory_space<smem>>
    %c60 = arith.constant 60 : index
    %80 = memref.load %arg4[%c60] : memref<100xf32, #tpu.memory_space<smem>>
    %c61 = arith.constant 61 : index
    %81 = memref.load %arg4[%c61] : memref<100xf32, #tpu.memory_space<smem>>
    %c62 = arith.constant 62 : index
    %82 = memref.load %arg4[%c62] : memref<100xf32, #tpu.memory_space<smem>>
    %c63 = arith.constant 63 : index
    %83 = memref.load %arg4[%c63] : memref<100xf32, #tpu.memory_space<smem>>
    %c64 = arith.constant 64 : index
    %84 = memref.load %arg4[%c64] : memref<100xf32, #tpu.memory_space<smem>>
    %c65 = arith.constant 65 : index
    %85 = memref.load %arg4[%c65] : memref<100xf32, #tpu.memory_space<smem>>
    %c66 = arith.constant 66 : index
    %86 = memref.load %arg4[%c66] : memref<100xf32, #tpu.memory_space<smem>>
    %c67 = arith.constant 67 : index
    %87 = memref.load %arg4[%c67] : memref<100xf32, #tpu.memory_space<smem>>
    %c68 = arith.constant 68 : index
    %88 = memref.load %arg4[%c68] : memref<100xf32, #tpu.memory_space<smem>>
    %c69 = arith.constant 69 : index
    %89 = memref.load %arg4[%c69] : memref<100xf32, #tpu.memory_space<smem>>
    %c70 = arith.constant 70 : index
    %90 = memref.load %arg4[%c70] : memref<100xf32, #tpu.memory_space<smem>>
    %c71 = arith.constant 71 : index
    %91 = memref.load %arg4[%c71] : memref<100xf32, #tpu.memory_space<smem>>
    %c72 = arith.constant 72 : index
    %92 = memref.load %arg4[%c72] : memref<100xf32, #tpu.memory_space<smem>>
    %c73 = arith.constant 73 : index
    %93 = memref.load %arg4[%c73] : memref<100xf32, #tpu.memory_space<smem>>
    %c74 = arith.constant 74 : index
    %94 = memref.load %arg4[%c74] : memref<100xf32, #tpu.memory_space<smem>>
    %c75 = arith.constant 75 : index
    %95 = memref.load %arg4[%c75] : memref<100xf32, #tpu.memory_space<smem>>
    %c76 = arith.constant 76 : index
    %96 = memref.load %arg4[%c76] : memref<100xf32, #tpu.memory_space<smem>>
    %c77 = arith.constant 77 : index
    %97 = memref.load %arg4[%c77] : memref<100xf32, #tpu.memory_space<smem>>
    %c78 = arith.constant 78 : index
    %98 = memref.load %arg4[%c78] : memref<100xf32, #tpu.memory_space<smem>>
    %c79 = arith.constant 79 : index
    %99 = memref.load %arg4[%c79] : memref<100xf32, #tpu.memory_space<smem>>
    %c80 = arith.constant 80 : index
    %100 = memref.load %arg4[%c80] : memref<100xf32, #tpu.memory_space<smem>>
    %c81 = arith.constant 81 : index
    %101 = memref.load %arg4[%c81] : memref<100xf32, #tpu.memory_space<smem>>
    %c82 = arith.constant 82 : index
    %102 = memref.load %arg4[%c82] : memref<100xf32, #tpu.memory_space<smem>>
    %c83 = arith.constant 83 : index
    %103 = memref.load %arg4[%c83] : memref<100xf32, #tpu.memory_space<smem>>
    %c84 = arith.constant 84 : index
    %104 = memref.load %arg4[%c84] : memref<100xf32, #tpu.memory_space<smem>>
    %c85 = arith.constant 85 : index
    %105 = memref.load %arg4[%c85] : memref<100xf32, #tpu.memory_space<smem>>
    %c86 = arith.constant 86 : index
    %106 = memref.load %arg4[%c86] : memref<100xf32, #tpu.memory_space<smem>>
    %c87 = arith.constant 87 : index
    %107 = memref.load %arg4[%c87] : memref<100xf32, #tpu.memory_space<smem>>
    %c88 = arith.constant 88 : index
    %108 = memref.load %arg4[%c88] : memref<100xf32, #tpu.memory_space<smem>>
    %c89 = arith.constant 89 : index
    %109 = memref.load %arg4[%c89] : memref<100xf32, #tpu.memory_space<smem>>
    %c90 = arith.constant 90 : index
    %110 = memref.load %arg4[%c90] : memref<100xf32, #tpu.memory_space<smem>>
    %c91 = arith.constant 91 : index
    %111 = memref.load %arg4[%c91] : memref<100xf32, #tpu.memory_space<smem>>
    %c92 = arith.constant 92 : index
    %112 = memref.load %arg4[%c92] : memref<100xf32, #tpu.memory_space<smem>>
    %c93 = arith.constant 93 : index
    %113 = memref.load %arg4[%c93] : memref<100xf32, #tpu.memory_space<smem>>
    %c94 = arith.constant 94 : index
    %114 = memref.load %arg4[%c94] : memref<100xf32, #tpu.memory_space<smem>>
    %c95 = arith.constant 95 : index
    %115 = memref.load %arg4[%c95] : memref<100xf32, #tpu.memory_space<smem>>
    %c96 = arith.constant 96 : index
    %116 = memref.load %arg4[%c96] : memref<100xf32, #tpu.memory_space<smem>>
    %c97 = arith.constant 97 : index
    %117 = memref.load %arg4[%c97] : memref<100xf32, #tpu.memory_space<smem>>
    %c98 = arith.constant 98 : index
    %118 = memref.load %arg4[%c98] : memref<100xf32, #tpu.memory_space<smem>>
    %c99 = arith.constant 99 : index
    %119 = memref.load %arg4[%c99] : memref<100xf32, #tpu.memory_space<smem>>
    %c0_20 = arith.constant 0 : index
    %120 = memref.load %arg5[%c0_20] : memref<10xf32, #tpu.memory_space<smem>>
    %c1_21 = arith.constant 1 : index
    %121 = memref.load %arg5[%c1_21] : memref<10xf32, #tpu.memory_space<smem>>
    %c2_22 = arith.constant 2 : index
    %122 = memref.load %arg5[%c2_22] : memref<10xf32, #tpu.memory_space<smem>>
    %c3_23 = arith.constant 3 : index
    %123 = memref.load %arg5[%c3_23] : memref<10xf32, #tpu.memory_space<smem>>
    %c4_24 = arith.constant 4 : index
    %124 = memref.load %arg5[%c4_24] : memref<10xf32, #tpu.memory_space<smem>>
    %c5_25 = arith.constant 5 : index
    %125 = memref.load %arg5[%c5_25] : memref<10xf32, #tpu.memory_space<smem>>
    %c6_26 = arith.constant 6 : index
    %126 = memref.load %arg5[%c6_26] : memref<10xf32, #tpu.memory_space<smem>>
    %c7_27 = arith.constant 7 : index
    %127 = memref.load %arg5[%c7_27] : memref<10xf32, #tpu.memory_space<smem>>
    %c8_28 = arith.constant 8 : index
    %128 = memref.load %arg5[%c8_28] : memref<10xf32, #tpu.memory_space<smem>>
    %c9_29 = arith.constant 9 : index
    %129 = memref.load %arg5[%c9_29] : memref<10xf32, #tpu.memory_space<smem>>
    %c0_30 = arith.constant 0 : index
    %130 = memref.load %arg6[%c0_30] : memref<100xf32, #tpu.memory_space<smem>>
    %c1_31 = arith.constant 1 : index
    %131 = memref.load %arg6[%c1_31] : memref<100xf32, #tpu.memory_space<smem>>
    %c2_32 = arith.constant 2 : index
    %132 = memref.load %arg6[%c2_32] : memref<100xf32, #tpu.memory_space<smem>>
    %c3_33 = arith.constant 3 : index
    %133 = memref.load %arg6[%c3_33] : memref<100xf32, #tpu.memory_space<smem>>
    %c4_34 = arith.constant 4 : index
    %134 = memref.load %arg6[%c4_34] : memref<100xf32, #tpu.memory_space<smem>>
    %c5_35 = arith.constant 5 : index
    %135 = memref.load %arg6[%c5_35] : memref<100xf32, #tpu.memory_space<smem>>
    %c6_36 = arith.constant 6 : index
    %136 = memref.load %arg6[%c6_36] : memref<100xf32, #tpu.memory_space<smem>>
    %c7_37 = arith.constant 7 : index
    %137 = memref.load %arg6[%c7_37] : memref<100xf32, #tpu.memory_space<smem>>
    %c8_38 = arith.constant 8 : index
    %138 = memref.load %arg6[%c8_38] : memref<100xf32, #tpu.memory_space<smem>>
    %c9_39 = arith.constant 9 : index
    %139 = memref.load %arg6[%c9_39] : memref<100xf32, #tpu.memory_space<smem>>
    %c10_40 = arith.constant 10 : index
    %140 = memref.load %arg6[%c10_40] : memref<100xf32, #tpu.memory_space<smem>>
    %c11_41 = arith.constant 11 : index
    %141 = memref.load %arg6[%c11_41] : memref<100xf32, #tpu.memory_space<smem>>
    %c12_42 = arith.constant 12 : index
    %142 = memref.load %arg6[%c12_42] : memref<100xf32, #tpu.memory_space<smem>>
    %c13_43 = arith.constant 13 : index
    %143 = memref.load %arg6[%c13_43] : memref<100xf32, #tpu.memory_space<smem>>
    %c14_44 = arith.constant 14 : index
    %144 = memref.load %arg6[%c14_44] : memref<100xf32, #tpu.memory_space<smem>>
    %c15_45 = arith.constant 15 : index
    %145 = memref.load %arg6[%c15_45] : memref<100xf32, #tpu.memory_space<smem>>
    %c16_46 = arith.constant 16 : index
    %146 = memref.load %arg6[%c16_46] : memref<100xf32, #tpu.memory_space<smem>>
    %c17_47 = arith.constant 17 : index
    %147 = memref.load %arg6[%c17_47] : memref<100xf32, #tpu.memory_space<smem>>
    %c18_48 = arith.constant 18 : index
    %148 = memref.load %arg6[%c18_48] : memref<100xf32, #tpu.memory_space<smem>>
    %c19_49 = arith.constant 19 : index
    %149 = memref.load %arg6[%c19_49] : memref<100xf32, #tpu.memory_space<smem>>
    %c20_50 = arith.constant 20 : index
    %150 = memref.load %arg6[%c20_50] : memref<100xf32, #tpu.memory_space<smem>>
    %c21_51 = arith.constant 21 : index
    %151 = memref.load %arg6[%c21_51] : memref<100xf32, #tpu.memory_space<smem>>
    %c22_52 = arith.constant 22 : index
    %152 = memref.load %arg6[%c22_52] : memref<100xf32, #tpu.memory_space<smem>>
    %c23_53 = arith.constant 23 : index
    %153 = memref.load %arg6[%c23_53] : memref<100xf32, #tpu.memory_space<smem>>
    %c24_54 = arith.constant 24 : index
    %154 = memref.load %arg6[%c24_54] : memref<100xf32, #tpu.memory_space<smem>>
    %c25_55 = arith.constant 25 : index
    %155 = memref.load %arg6[%c25_55] : memref<100xf32, #tpu.memory_space<smem>>
    %c26_56 = arith.constant 26 : index
    %156 = memref.load %arg6[%c26_56] : memref<100xf32, #tpu.memory_space<smem>>
    %c27_57 = arith.constant 27 : index
    %157 = memref.load %arg6[%c27_57] : memref<100xf32, #tpu.memory_space<smem>>
    %c28_58 = arith.constant 28 : index
    %158 = memref.load %arg6[%c28_58] : memref<100xf32, #tpu.memory_space<smem>>
    %c29_59 = arith.constant 29 : index
    %159 = memref.load %arg6[%c29_59] : memref<100xf32, #tpu.memory_space<smem>>
    %c30_60 = arith.constant 30 : index
    %160 = memref.load %arg6[%c30_60] : memref<100xf32, #tpu.memory_space<smem>>
    %c31_61 = arith.constant 31 : index
    %161 = memref.load %arg6[%c31_61] : memref<100xf32, #tpu.memory_space<smem>>
    %c32_62 = arith.constant 32 : index
    %162 = memref.load %arg6[%c32_62] : memref<100xf32, #tpu.memory_space<smem>>
    %c33_63 = arith.constant 33 : index
    %163 = memref.load %arg6[%c33_63] : memref<100xf32, #tpu.memory_space<smem>>
    %c34_64 = arith.constant 34 : index
    %164 = memref.load %arg6[%c34_64] : memref<100xf32, #tpu.memory_space<smem>>
    %c35_65 = arith.constant 35 : index
    %165 = memref.load %arg6[%c35_65] : memref<100xf32, #tpu.memory_space<smem>>
    %c36_66 = arith.constant 36 : index
    %166 = memref.load %arg6[%c36_66] : memref<100xf32, #tpu.memory_space<smem>>
    %c37_67 = arith.constant 37 : index
    %167 = memref.load %arg6[%c37_67] : memref<100xf32, #tpu.memory_space<smem>>
    %c38_68 = arith.constant 38 : index
    %168 = memref.load %arg6[%c38_68] : memref<100xf32, #tpu.memory_space<smem>>
    %c39_69 = arith.constant 39 : index
    %169 = memref.load %arg6[%c39_69] : memref<100xf32, #tpu.memory_space<smem>>
    %c40_70 = arith.constant 40 : index
    %170 = memref.load %arg6[%c40_70] : memref<100xf32, #tpu.memory_space<smem>>
    %c41_71 = arith.constant 41 : index
    %171 = memref.load %arg6[%c41_71] : memref<100xf32, #tpu.memory_space<smem>>
    %c42_72 = arith.constant 42 : index
    %172 = memref.load %arg6[%c42_72] : memref<100xf32, #tpu.memory_space<smem>>
    %c43_73 = arith.constant 43 : index
    %173 = memref.load %arg6[%c43_73] : memref<100xf32, #tpu.memory_space<smem>>
    %c44_74 = arith.constant 44 : index
    %174 = memref.load %arg6[%c44_74] : memref<100xf32, #tpu.memory_space<smem>>
    %c45_75 = arith.constant 45 : index
    %175 = memref.load %arg6[%c45_75] : memref<100xf32, #tpu.memory_space<smem>>
    %c46_76 = arith.constant 46 : index
    %176 = memref.load %arg6[%c46_76] : memref<100xf32, #tpu.memory_space<smem>>
    %c47_77 = arith.constant 47 : index
    %177 = memref.load %arg6[%c47_77] : memref<100xf32, #tpu.memory_space<smem>>
    %c48_78 = arith.constant 48 : index
    %178 = memref.load %arg6[%c48_78] : memref<100xf32, #tpu.memory_space<smem>>
    %c49_79 = arith.constant 49 : index
    %179 = memref.load %arg6[%c49_79] : memref<100xf32, #tpu.memory_space<smem>>
    %c50_80 = arith.constant 50 : index
    %180 = memref.load %arg6[%c50_80] : memref<100xf32, #tpu.memory_space<smem>>
    %c51_81 = arith.constant 51 : index
    %181 = memref.load %arg6[%c51_81] : memref<100xf32, #tpu.memory_space<smem>>
    %c52_82 = arith.constant 52 : index
    %182 = memref.load %arg6[%c52_82] : memref<100xf32, #tpu.memory_space<smem>>
    %c53_83 = arith.constant 53 : index
    %183 = memref.load %arg6[%c53_83] : memref<100xf32, #tpu.memory_space<smem>>
    %c54_84 = arith.constant 54 : index
    %184 = memref.load %arg6[%c54_84] : memref<100xf32, #tpu.memory_space<smem>>
    %c55_85 = arith.constant 55 : index
    %185 = memref.load %arg6[%c55_85] : memref<100xf32, #tpu.memory_space<smem>>
    %c56_86 = arith.constant 56 : index
    %186 = memref.load %arg6[%c56_86] : memref<100xf32, #tpu.memory_space<smem>>
    %c57_87 = arith.constant 57 : index
    %187 = memref.load %arg6[%c57_87] : memref<100xf32, #tpu.memory_space<smem>>
    %c58_88 = arith.constant 58 : index
    %188 = memref.load %arg6[%c58_88] : memref<100xf32, #tpu.memory_space<smem>>
    %c59_89 = arith.constant 59 : index
    %189 = memref.load %arg6[%c59_89] : memref<100xf32, #tpu.memory_space<smem>>
    %c60_90 = arith.constant 60 : index
    %190 = memref.load %arg6[%c60_90] : memref<100xf32, #tpu.memory_space<smem>>
    %c61_91 = arith.constant 61 : index
    %191 = memref.load %arg6[%c61_91] : memref<100xf32, #tpu.memory_space<smem>>
    %c62_92 = arith.constant 62 : index
    %192 = memref.load %arg6[%c62_92] : memref<100xf32, #tpu.memory_space<smem>>
    %c63_93 = arith.constant 63 : index
    %193 = memref.load %arg6[%c63_93] : memref<100xf32, #tpu.memory_space<smem>>
    %c64_94 = arith.constant 64 : index
    %194 = memref.load %arg6[%c64_94] : memref<100xf32, #tpu.memory_space<smem>>
    %c65_95 = arith.constant 65 : index
    %195 = memref.load %arg6[%c65_95] : memref<100xf32, #tpu.memory_space<smem>>
    %c66_96 = arith.constant 66 : index
    %196 = memref.load %arg6[%c66_96] : memref<100xf32, #tpu.memory_space<smem>>
    %c67_97 = arith.constant 67 : index
    %197 = memref.load %arg6[%c67_97] : memref<100xf32, #tpu.memory_space<smem>>
    %c68_98 = arith.constant 68 : index
    %198 = memref.load %arg6[%c68_98] : memref<100xf32, #tpu.memory_space<smem>>
    %c69_99 = arith.constant 69 : index
    %199 = memref.load %arg6[%c69_99] : memref<100xf32, #tpu.memory_space<smem>>
    %c70_100 = arith.constant 70 : index
    %200 = memref.load %arg6[%c70_100] : memref<100xf32, #tpu.memory_space<smem>>
    %c71_101 = arith.constant 71 : index
    %201 = memref.load %arg6[%c71_101] : memref<100xf32, #tpu.memory_space<smem>>
    %c72_102 = arith.constant 72 : index
    %202 = memref.load %arg6[%c72_102] : memref<100xf32, #tpu.memory_space<smem>>
    %c73_103 = arith.constant 73 : index
    %203 = memref.load %arg6[%c73_103] : memref<100xf32, #tpu.memory_space<smem>>
    %c74_104 = arith.constant 74 : index
    %204 = memref.load %arg6[%c74_104] : memref<100xf32, #tpu.memory_space<smem>>
    %c75_105 = arith.constant 75 : index
    %205 = memref.load %arg6[%c75_105] : memref<100xf32, #tpu.memory_space<smem>>
    %c76_106 = arith.constant 76 : index
    %206 = memref.load %arg6[%c76_106] : memref<100xf32, #tpu.memory_space<smem>>
    %c77_107 = arith.constant 77 : index
    %207 = memref.load %arg6[%c77_107] : memref<100xf32, #tpu.memory_space<smem>>
    %c78_108 = arith.constant 78 : index
    %208 = memref.load %arg6[%c78_108] : memref<100xf32, #tpu.memory_space<smem>>
    %c79_109 = arith.constant 79 : index
    %209 = memref.load %arg6[%c79_109] : memref<100xf32, #tpu.memory_space<smem>>
    %c80_110 = arith.constant 80 : index
    %210 = memref.load %arg6[%c80_110] : memref<100xf32, #tpu.memory_space<smem>>
    %c81_111 = arith.constant 81 : index
    %211 = memref.load %arg6[%c81_111] : memref<100xf32, #tpu.memory_space<smem>>
    %c82_112 = arith.constant 82 : index
    %212 = memref.load %arg6[%c82_112] : memref<100xf32, #tpu.memory_space<smem>>
    %c83_113 = arith.constant 83 : index
    %213 = memref.load %arg6[%c83_113] : memref<100xf32, #tpu.memory_space<smem>>
    %c84_114 = arith.constant 84 : index
    %214 = memref.load %arg6[%c84_114] : memref<100xf32, #tpu.memory_space<smem>>
    %c85_115 = arith.constant 85 : index
    %215 = memref.load %arg6[%c85_115] : memref<100xf32, #tpu.memory_space<smem>>
    %c86_116 = arith.constant 86 : index
    %216 = memref.load %arg6[%c86_116] : memref<100xf32, #tpu.memory_space<smem>>
    %c87_117 = arith.constant 87 : index
    %217 = memref.load %arg6[%c87_117] : memref<100xf32, #tpu.memory_space<smem>>
    %c88_118 = arith.constant 88 : index
    %218 = memref.load %arg6[%c88_118] : memref<100xf32, #tpu.memory_space<smem>>
    %c89_119 = arith.constant 89 : index
    %219 = memref.load %arg6[%c89_119] : memref<100xf32, #tpu.memory_space<smem>>
    %c90_120 = arith.constant 90 : index
    %220 = memref.load %arg6[%c90_120] : memref<100xf32, #tpu.memory_space<smem>>
    %c91_121 = arith.constant 91 : index
    %221 = memref.load %arg6[%c91_121] : memref<100xf32, #tpu.memory_space<smem>>
    %c92_122 = arith.constant 92 : index
    %222 = memref.load %arg6[%c92_122] : memref<100xf32, #tpu.memory_space<smem>>
    %c93_123 = arith.constant 93 : index
    %223 = memref.load %arg6[%c93_123] : memref<100xf32, #tpu.memory_space<smem>>
    %c94_124 = arith.constant 94 : index
    %224 = memref.load %arg6[%c94_124] : memref<100xf32, #tpu.memory_space<smem>>
    %c95_125 = arith.constant 95 : index
    %225 = memref.load %arg6[%c95_125] : memref<100xf32, #tpu.memory_space<smem>>
    %c96_126 = arith.constant 96 : index
    %226 = memref.load %arg6[%c96_126] : memref<100xf32, #tpu.memory_space<smem>>
    %c97_127 = arith.constant 97 : index
    %227 = memref.load %arg6[%c97_127] : memref<100xf32, #tpu.memory_space<smem>>
    %c98_128 = arith.constant 98 : index
    %228 = memref.load %arg6[%c98_128] : memref<100xf32, #tpu.memory_space<smem>>
    %c99_129 = arith.constant 99 : index
    %229 = memref.load %arg6[%c99_129] : memref<100xf32, #tpu.memory_space<smem>>
    %c0_130 = arith.constant 0 : index
    %230 = memref.load %arg7[%c0_130] : memref<10xf32, #tpu.memory_space<smem>>
    %c1_131 = arith.constant 1 : index
    %231 = memref.load %arg7[%c1_131] : memref<10xf32, #tpu.memory_space<smem>>
    %c2_132 = arith.constant 2 : index
    %232 = memref.load %arg7[%c2_132] : memref<10xf32, #tpu.memory_space<smem>>
    %c3_133 = arith.constant 3 : index
    %233 = memref.load %arg7[%c3_133] : memref<10xf32, #tpu.memory_space<smem>>
    %c4_134 = arith.constant 4 : index
    %234 = memref.load %arg7[%c4_134] : memref<10xf32, #tpu.memory_space<smem>>
    %c5_135 = arith.constant 5 : index
    %235 = memref.load %arg7[%c5_135] : memref<10xf32, #tpu.memory_space<smem>>
    %c6_136 = arith.constant 6 : index
    %236 = memref.load %arg7[%c6_136] : memref<10xf32, #tpu.memory_space<smem>>
    %c7_137 = arith.constant 7 : index
    %237 = memref.load %arg7[%c7_137] : memref<10xf32, #tpu.memory_space<smem>>
    %c8_138 = arith.constant 8 : index
    %238 = memref.load %arg7[%c8_138] : memref<10xf32, #tpu.memory_space<smem>>
    %c9_139 = arith.constant 9 : index
    %239 = memref.load %arg7[%c9_139] : memref<10xf32, #tpu.memory_space<smem>>
    %c0_140 = arith.constant 0 : index
    %240 = memref.load %arg8[%c0_140] : memref<100xf32, #tpu.memory_space<smem>>
    %c1_141 = arith.constant 1 : index
    %241 = memref.load %arg8[%c1_141] : memref<100xf32, #tpu.memory_space<smem>>
    %c2_142 = arith.constant 2 : index
    %242 = memref.load %arg8[%c2_142] : memref<100xf32, #tpu.memory_space<smem>>
    %c3_143 = arith.constant 3 : index
    %243 = memref.load %arg8[%c3_143] : memref<100xf32, #tpu.memory_space<smem>>
    %c4_144 = arith.constant 4 : index
    %244 = memref.load %arg8[%c4_144] : memref<100xf32, #tpu.memory_space<smem>>
    %c5_145 = arith.constant 5 : index
    %245 = memref.load %arg8[%c5_145] : memref<100xf32, #tpu.memory_space<smem>>
    %c6_146 = arith.constant 6 : index
    %246 = memref.load %arg8[%c6_146] : memref<100xf32, #tpu.memory_space<smem>>
    %c7_147 = arith.constant 7 : index
    %247 = memref.load %arg8[%c7_147] : memref<100xf32, #tpu.memory_space<smem>>
    %c8_148 = arith.constant 8 : index
    %248 = memref.load %arg8[%c8_148] : memref<100xf32, #tpu.memory_space<smem>>
    %c9_149 = arith.constant 9 : index
    %249 = memref.load %arg8[%c9_149] : memref<100xf32, #tpu.memory_space<smem>>
    %c10_150 = arith.constant 10 : index
    %250 = memref.load %arg8[%c10_150] : memref<100xf32, #tpu.memory_space<smem>>
    %c11_151 = arith.constant 11 : index
    %251 = memref.load %arg8[%c11_151] : memref<100xf32, #tpu.memory_space<smem>>
    %c12_152 = arith.constant 12 : index
    %252 = memref.load %arg8[%c12_152] : memref<100xf32, #tpu.memory_space<smem>>
    %c13_153 = arith.constant 13 : index
    %253 = memref.load %arg8[%c13_153] : memref<100xf32, #tpu.memory_space<smem>>
    %c14_154 = arith.constant 14 : index
    %254 = memref.load %arg8[%c14_154] : memref<100xf32, #tpu.memory_space<smem>>
    %c15_155 = arith.constant 15 : index
    %255 = memref.load %arg8[%c15_155] : memref<100xf32, #tpu.memory_space<smem>>
    %c16_156 = arith.constant 16 : index
    %256 = memref.load %arg8[%c16_156] : memref<100xf32, #tpu.memory_space<smem>>
    %c17_157 = arith.constant 17 : index
    %257 = memref.load %arg8[%c17_157] : memref<100xf32, #tpu.memory_space<smem>>
    %c18_158 = arith.constant 18 : index
    %258 = memref.load %arg8[%c18_158] : memref<100xf32, #tpu.memory_space<smem>>
    %c19_159 = arith.constant 19 : index
    %259 = memref.load %arg8[%c19_159] : memref<100xf32, #tpu.memory_space<smem>>
    %c20_160 = arith.constant 20 : index
    %260 = memref.load %arg8[%c20_160] : memref<100xf32, #tpu.memory_space<smem>>
    %c21_161 = arith.constant 21 : index
    %261 = memref.load %arg8[%c21_161] : memref<100xf32, #tpu.memory_space<smem>>
    %c22_162 = arith.constant 22 : index
    %262 = memref.load %arg8[%c22_162] : memref<100xf32, #tpu.memory_space<smem>>
    %c23_163 = arith.constant 23 : index
    %263 = memref.load %arg8[%c23_163] : memref<100xf32, #tpu.memory_space<smem>>
    %c24_164 = arith.constant 24 : index
    %264 = memref.load %arg8[%c24_164] : memref<100xf32, #tpu.memory_space<smem>>
    %c25_165 = arith.constant 25 : index
    %265 = memref.load %arg8[%c25_165] : memref<100xf32, #tpu.memory_space<smem>>
    %c26_166 = arith.constant 26 : index
    %266 = memref.load %arg8[%c26_166] : memref<100xf32, #tpu.memory_space<smem>>
    %c27_167 = arith.constant 27 : index
    %267 = memref.load %arg8[%c27_167] : memref<100xf32, #tpu.memory_space<smem>>
    %c28_168 = arith.constant 28 : index
    %268 = memref.load %arg8[%c28_168] : memref<100xf32, #tpu.memory_space<smem>>
    %c29_169 = arith.constant 29 : index
    %269 = memref.load %arg8[%c29_169] : memref<100xf32, #tpu.memory_space<smem>>
    %c30_170 = arith.constant 30 : index
    %270 = memref.load %arg8[%c30_170] : memref<100xf32, #tpu.memory_space<smem>>
    %c31_171 = arith.constant 31 : index
    %271 = memref.load %arg8[%c31_171] : memref<100xf32, #tpu.memory_space<smem>>
    %c32_172 = arith.constant 32 : index
    %272 = memref.load %arg8[%c32_172] : memref<100xf32, #tpu.memory_space<smem>>
    %c33_173 = arith.constant 33 : index
    %273 = memref.load %arg8[%c33_173] : memref<100xf32, #tpu.memory_space<smem>>
    %c34_174 = arith.constant 34 : index
    %274 = memref.load %arg8[%c34_174] : memref<100xf32, #tpu.memory_space<smem>>
    %c35_175 = arith.constant 35 : index
    %275 = memref.load %arg8[%c35_175] : memref<100xf32, #tpu.memory_space<smem>>
    %c36_176 = arith.constant 36 : index
    %276 = memref.load %arg8[%c36_176] : memref<100xf32, #tpu.memory_space<smem>>
    %c37_177 = arith.constant 37 : index
    %277 = memref.load %arg8[%c37_177] : memref<100xf32, #tpu.memory_space<smem>>
    %c38_178 = arith.constant 38 : index
    %278 = memref.load %arg8[%c38_178] : memref<100xf32, #tpu.memory_space<smem>>
    %c39_179 = arith.constant 39 : index
    %279 = memref.load %arg8[%c39_179] : memref<100xf32, #tpu.memory_space<smem>>
    %c40_180 = arith.constant 40 : index
    %280 = memref.load %arg8[%c40_180] : memref<100xf32, #tpu.memory_space<smem>>
    %c41_181 = arith.constant 41 : index
    %281 = memref.load %arg8[%c41_181] : memref<100xf32, #tpu.memory_space<smem>>
    %c42_182 = arith.constant 42 : index
    %282 = memref.load %arg8[%c42_182] : memref<100xf32, #tpu.memory_space<smem>>
    %c43_183 = arith.constant 43 : index
    %283 = memref.load %arg8[%c43_183] : memref<100xf32, #tpu.memory_space<smem>>
    %c44_184 = arith.constant 44 : index
    %284 = memref.load %arg8[%c44_184] : memref<100xf32, #tpu.memory_space<smem>>
    %c45_185 = arith.constant 45 : index
    %285 = memref.load %arg8[%c45_185] : memref<100xf32, #tpu.memory_space<smem>>
    %c46_186 = arith.constant 46 : index
    %286 = memref.load %arg8[%c46_186] : memref<100xf32, #tpu.memory_space<smem>>
    %c47_187 = arith.constant 47 : index
    %287 = memref.load %arg8[%c47_187] : memref<100xf32, #tpu.memory_space<smem>>
    %c48_188 = arith.constant 48 : index
    %288 = memref.load %arg8[%c48_188] : memref<100xf32, #tpu.memory_space<smem>>
    %c49_189 = arith.constant 49 : index
    %289 = memref.load %arg8[%c49_189] : memref<100xf32, #tpu.memory_space<smem>>
    %c50_190 = arith.constant 50 : index
    %290 = memref.load %arg8[%c50_190] : memref<100xf32, #tpu.memory_space<smem>>
    %c51_191 = arith.constant 51 : index
    %291 = memref.load %arg8[%c51_191] : memref<100xf32, #tpu.memory_space<smem>>
    %c52_192 = arith.constant 52 : index
    %292 = memref.load %arg8[%c52_192] : memref<100xf32, #tpu.memory_space<smem>>
    %c53_193 = arith.constant 53 : index
    %293 = memref.load %arg8[%c53_193] : memref<100xf32, #tpu.memory_space<smem>>
    %c54_194 = arith.constant 54 : index
    %294 = memref.load %arg8[%c54_194] : memref<100xf32, #tpu.memory_space<smem>>
    %c55_195 = arith.constant 55 : index
    %295 = memref.load %arg8[%c55_195] : memref<100xf32, #tpu.memory_space<smem>>
    %c56_196 = arith.constant 56 : index
    %296 = memref.load %arg8[%c56_196] : memref<100xf32, #tpu.memory_space<smem>>
    %c57_197 = arith.constant 57 : index
    %297 = memref.load %arg8[%c57_197] : memref<100xf32, #tpu.memory_space<smem>>
    %c58_198 = arith.constant 58 : index
    %298 = memref.load %arg8[%c58_198] : memref<100xf32, #tpu.memory_space<smem>>
    %c59_199 = arith.constant 59 : index
    %299 = memref.load %arg8[%c59_199] : memref<100xf32, #tpu.memory_space<smem>>
    %c60_200 = arith.constant 60 : index
    %300 = memref.load %arg8[%c60_200] : memref<100xf32, #tpu.memory_space<smem>>
    %c61_201 = arith.constant 61 : index
    %301 = memref.load %arg8[%c61_201] : memref<100xf32, #tpu.memory_space<smem>>
    %c62_202 = arith.constant 62 : index
    %302 = memref.load %arg8[%c62_202] : memref<100xf32, #tpu.memory_space<smem>>
    %c63_203 = arith.constant 63 : index
    %303 = memref.load %arg8[%c63_203] : memref<100xf32, #tpu.memory_space<smem>>
    %c64_204 = arith.constant 64 : index
    %304 = memref.load %arg8[%c64_204] : memref<100xf32, #tpu.memory_space<smem>>
    %c65_205 = arith.constant 65 : index
    %305 = memref.load %arg8[%c65_205] : memref<100xf32, #tpu.memory_space<smem>>
    %c66_206 = arith.constant 66 : index
    %306 = memref.load %arg8[%c66_206] : memref<100xf32, #tpu.memory_space<smem>>
    %c67_207 = arith.constant 67 : index
    %307 = memref.load %arg8[%c67_207] : memref<100xf32, #tpu.memory_space<smem>>
    %c68_208 = arith.constant 68 : index
    %308 = memref.load %arg8[%c68_208] : memref<100xf32, #tpu.memory_space<smem>>
    %c69_209 = arith.constant 69 : index
    %309 = memref.load %arg8[%c69_209] : memref<100xf32, #tpu.memory_space<smem>>
    %c70_210 = arith.constant 70 : index
    %310 = memref.load %arg8[%c70_210] : memref<100xf32, #tpu.memory_space<smem>>
    %c71_211 = arith.constant 71 : index
    %311 = memref.load %arg8[%c71_211] : memref<100xf32, #tpu.memory_space<smem>>
    %c72_212 = arith.constant 72 : index
    %312 = memref.load %arg8[%c72_212] : memref<100xf32, #tpu.memory_space<smem>>
    %c73_213 = arith.constant 73 : index
    %313 = memref.load %arg8[%c73_213] : memref<100xf32, #tpu.memory_space<smem>>
    %c74_214 = arith.constant 74 : index
    %314 = memref.load %arg8[%c74_214] : memref<100xf32, #tpu.memory_space<smem>>
    %c75_215 = arith.constant 75 : index
    %315 = memref.load %arg8[%c75_215] : memref<100xf32, #tpu.memory_space<smem>>
    %c76_216 = arith.constant 76 : index
    %316 = memref.load %arg8[%c76_216] : memref<100xf32, #tpu.memory_space<smem>>
    %c77_217 = arith.constant 77 : index
    %317 = memref.load %arg8[%c77_217] : memref<100xf32, #tpu.memory_space<smem>>
    %c78_218 = arith.constant 78 : index
    %318 = memref.load %arg8[%c78_218] : memref<100xf32, #tpu.memory_space<smem>>
    %c79_219 = arith.constant 79 : index
    %319 = memref.load %arg8[%c79_219] : memref<100xf32, #tpu.memory_space<smem>>
    %c80_220 = arith.constant 80 : index
    %320 = memref.load %arg8[%c80_220] : memref<100xf32, #tpu.memory_space<smem>>
    %c81_221 = arith.constant 81 : index
    %321 = memref.load %arg8[%c81_221] : memref<100xf32, #tpu.memory_space<smem>>
    %c82_222 = arith.constant 82 : index
    %322 = memref.load %arg8[%c82_222] : memref<100xf32, #tpu.memory_space<smem>>
    %c83_223 = arith.constant 83 : index
    %323 = memref.load %arg8[%c83_223] : memref<100xf32, #tpu.memory_space<smem>>
    %c84_224 = arith.constant 84 : index
    %324 = memref.load %arg8[%c84_224] : memref<100xf32, #tpu.memory_space<smem>>
    %c85_225 = arith.constant 85 : index
    %325 = memref.load %arg8[%c85_225] : memref<100xf32, #tpu.memory_space<smem>>
    %c86_226 = arith.constant 86 : index
    %326 = memref.load %arg8[%c86_226] : memref<100xf32, #tpu.memory_space<smem>>
    %c87_227 = arith.constant 87 : index
    %327 = memref.load %arg8[%c87_227] : memref<100xf32, #tpu.memory_space<smem>>
    %c88_228 = arith.constant 88 : index
    %328 = memref.load %arg8[%c88_228] : memref<100xf32, #tpu.memory_space<smem>>
    %c89_229 = arith.constant 89 : index
    %329 = memref.load %arg8[%c89_229] : memref<100xf32, #tpu.memory_space<smem>>
    %c90_230 = arith.constant 90 : index
    %330 = memref.load %arg8[%c90_230] : memref<100xf32, #tpu.memory_space<smem>>
    %c91_231 = arith.constant 91 : index
    %331 = memref.load %arg8[%c91_231] : memref<100xf32, #tpu.memory_space<smem>>
    %c92_232 = arith.constant 92 : index
    %332 = memref.load %arg8[%c92_232] : memref<100xf32, #tpu.memory_space<smem>>
    %c93_233 = arith.constant 93 : index
    %333 = memref.load %arg8[%c93_233] : memref<100xf32, #tpu.memory_space<smem>>
    %c94_234 = arith.constant 94 : index
    %334 = memref.load %arg8[%c94_234] : memref<100xf32, #tpu.memory_space<smem>>
    %c95_235 = arith.constant 95 : index
    %335 = memref.load %arg8[%c95_235] : memref<100xf32, #tpu.memory_space<smem>>
    %c96_236 = arith.constant 96 : index
    %336 = memref.load %arg8[%c96_236] : memref<100xf32, #tpu.memory_space<smem>>
    %c97_237 = arith.constant 97 : index
    %337 = memref.load %arg8[%c97_237] : memref<100xf32, #tpu.memory_space<smem>>
    %c98_238 = arith.constant 98 : index
    %338 = memref.load %arg8[%c98_238] : memref<100xf32, #tpu.memory_space<smem>>
    %c99_239 = arith.constant 99 : index
    %339 = memref.load %arg8[%c99_239] : memref<100xf32, #tpu.memory_space<smem>>
    %c0_240 = arith.constant 0 : index
    %340 = memref.load %arg9[%c0_240] : memref<10xf32, #tpu.memory_space<smem>>
    %c1_241 = arith.constant 1 : index
    %341 = memref.load %arg9[%c1_241] : memref<10xf32, #tpu.memory_space<smem>>
    %c2_242 = arith.constant 2 : index
    %342 = memref.load %arg9[%c2_242] : memref<10xf32, #tpu.memory_space<smem>>
    %c3_243 = arith.constant 3 : index
    %343 = memref.load %arg9[%c3_243] : memref<10xf32, #tpu.memory_space<smem>>
    %c4_244 = arith.constant 4 : index
    %344 = memref.load %arg9[%c4_244] : memref<10xf32, #tpu.memory_space<smem>>
    %c5_245 = arith.constant 5 : index
    %345 = memref.load %arg9[%c5_245] : memref<10xf32, #tpu.memory_space<smem>>
    %c6_246 = arith.constant 6 : index
    %346 = memref.load %arg9[%c6_246] : memref<10xf32, #tpu.memory_space<smem>>
    %c7_247 = arith.constant 7 : index
    %347 = memref.load %arg9[%c7_247] : memref<10xf32, #tpu.memory_space<smem>>
    %c8_248 = arith.constant 8 : index
    %348 = memref.load %arg9[%c8_248] : memref<10xf32, #tpu.memory_space<smem>>
    %c9_249 = arith.constant 9 : index
    %349 = memref.load %arg9[%c9_249] : memref<10xf32, #tpu.memory_space<smem>>
    %c0_250 = arith.constant 0 : index
    %350 = memref.load %arg10[%c0_250] : memref<10xf32, #tpu.memory_space<smem>>
    %c1_251 = arith.constant 1 : index
    %351 = memref.load %arg10[%c1_251] : memref<10xf32, #tpu.memory_space<smem>>
    %c2_252 = arith.constant 2 : index
    %352 = memref.load %arg10[%c2_252] : memref<10xf32, #tpu.memory_space<smem>>
    %c3_253 = arith.constant 3 : index
    %353 = memref.load %arg10[%c3_253] : memref<10xf32, #tpu.memory_space<smem>>
    %c4_254 = arith.constant 4 : index
    %354 = memref.load %arg10[%c4_254] : memref<10xf32, #tpu.memory_space<smem>>
    %c5_255 = arith.constant 5 : index
    %355 = memref.load %arg10[%c5_255] : memref<10xf32, #tpu.memory_space<smem>>
    %c6_256 = arith.constant 6 : index
    %356 = memref.load %arg10[%c6_256] : memref<10xf32, #tpu.memory_space<smem>>
    %c7_257 = arith.constant 7 : index
    %357 = memref.load %arg10[%c7_257] : memref<10xf32, #tpu.memory_space<smem>>
    %c8_258 = arith.constant 8 : index
    %358 = memref.load %arg10[%c8_258] : memref<10xf32, #tpu.memory_space<smem>>
    %c9_259 = arith.constant 9 : index
    %359 = memref.load %arg10[%c9_259] : memref<10xf32, #tpu.memory_space<smem>>
    %c0_260 = arith.constant 0 : index
    %360 = memref.load %arg11[%c0_260] : memref<1xf32, #tpu.memory_space<smem>>
    %cst = arith.constant 0.000000e+00 : f32
    %361 = vector.broadcast %cst : f32 to vector<8x1xf32>
    %cst_261 = arith.constant 0.000000e+00 : f32
    %362 = vector.broadcast %cst_261 : f32 to vector<8x1xf32>
    %c0_262 = arith.constant 0 : index
    %c0_263 = arith.constant 0 : index
    %363 = vector.load %arg1[%c0_262, %c0_263] : memref<16x16xf32, #tpu.memory_space<vmem>>, vector<8x16xf32>
    %364 = vector.broadcast %0 : f32 to vector<8x16xf32>
    %365 = arith.mulf %364, %363 : vector<8x16xf32>
    %366 = vector.broadcast %10 : f32 to vector<8x16xf32>
    %367 = arith.addf %365, %366 : vector<8x16xf32>
    %cst_264 = arith.constant 0.000000e+00 : f32
    %368 = vector.broadcast %cst_264 : f32 to vector<8x16xf32>
    %369 = arith.maximumf %367, %368 : vector<8x16xf32>
    %370 = vector.broadcast %1 : f32 to vector<8x16xf32>
    %371 = arith.mulf %370, %363 : vector<8x16xf32>
    %372 = vector.broadcast %11 : f32 to vector<8x16xf32>
    %373 = arith.addf %371, %372 : vector<8x16xf32>
    %cst_265 = arith.constant 0.000000e+00 : f32
    %374 = vector.broadcast %cst_265 : f32 to vector<8x16xf32>
    %375 = arith.maximumf %373, %374 : vector<8x16xf32>
    %376 = vector.broadcast %2 : f32 to vector<8x16xf32>
    %377 = arith.mulf %376, %363 : vector<8x16xf32>
    %378 = vector.broadcast %12 : f32 to vector<8x16xf32>
    %379 = arith.addf %377, %378 : vector<8x16xf32>
    %cst_266 = arith.constant 0.000000e+00 : f32
    %380 = vector.broadcast %cst_266 : f32 to vector<8x16xf32>
    %381 = arith.maximumf %379, %380 : vector<8x16xf32>
    %382 = vector.broadcast %3 : f32 to vector<8x16xf32>
    %383 = arith.mulf %382, %363 : vector<8x16xf32>
    %384 = vector.broadcast %13 : f32 to vector<8x16xf32>
    %385 = arith.addf %383, %384 : vector<8x16xf32>
    %cst_267 = arith.constant 0.000000e+00 : f32
    %386 = vector.broadcast %cst_267 : f32 to vector<8x16xf32>
    %387 = arith.maximumf %385, %386 : vector<8x16xf32>
    %388 = vector.broadcast %4 : f32 to vector<8x16xf32>
    %389 = arith.mulf %388, %363 : vector<8x16xf32>
    %390 = vector.broadcast %14 : f32 to vector<8x16xf32>
    %391 = arith.addf %389, %390 : vector<8x16xf32>
    %cst_268 = arith.constant 0.000000e+00 : f32
    %392 = vector.broadcast %cst_268 : f32 to vector<8x16xf32>
    %393 = arith.maximumf %391, %392 : vector<8x16xf32>
    %394 = vector.broadcast %5 : f32 to vector<8x16xf32>
    %395 = arith.mulf %394, %363 : vector<8x16xf32>
    %396 = vector.broadcast %15 : f32 to vector<8x16xf32>
    %397 = arith.addf %395, %396 : vector<8x16xf32>
    %cst_269 = arith.constant 0.000000e+00 : f32
    %398 = vector.broadcast %cst_269 : f32 to vector<8x16xf32>
    %399 = arith.maximumf %397, %398 : vector<8x16xf32>
    %400 = vector.broadcast %6 : f32 to vector<8x16xf32>
    %401 = arith.mulf %400, %363 : vector<8x16xf32>
    %402 = vector.broadcast %16 : f32 to vector<8x16xf32>
    %403 = arith.addf %401, %402 : vector<8x16xf32>
    %cst_270 = arith.constant 0.000000e+00 : f32
    %404 = vector.broadcast %cst_270 : f32 to vector<8x16xf32>
    %405 = arith.maximumf %403, %404 : vector<8x16xf32>
    %406 = vector.broadcast %7 : f32 to vector<8x16xf32>
    %407 = arith.mulf %406, %363 : vector<8x16xf32>
    %408 = vector.broadcast %17 : f32 to vector<8x16xf32>
    %409 = arith.addf %407, %408 : vector<8x16xf32>
    %cst_271 = arith.constant 0.000000e+00 : f32
    %410 = vector.broadcast %cst_271 : f32 to vector<8x16xf32>
    %411 = arith.maximumf %409, %410 : vector<8x16xf32>
    %412 = vector.broadcast %8 : f32 to vector<8x16xf32>
    %413 = arith.mulf %412, %363 : vector<8x16xf32>
    %414 = vector.broadcast %18 : f32 to vector<8x16xf32>
    %415 = arith.addf %413, %414 : vector<8x16xf32>
    %cst_272 = arith.constant 0.000000e+00 : f32
    %416 = vector.broadcast %cst_272 : f32 to vector<8x16xf32>
    %417 = arith.maximumf %415, %416 : vector<8x16xf32>
    %418 = vector.broadcast %9 : f32 to vector<8x16xf32>
    %419 = arith.mulf %418, %363 : vector<8x16xf32>
    %420 = vector.broadcast %19 : f32 to vector<8x16xf32>
    %421 = arith.addf %419, %420 : vector<8x16xf32>
    %cst_273 = arith.constant 0.000000e+00 : f32
    %422 = vector.broadcast %cst_273 : f32 to vector<8x16xf32>
    %423 = arith.maximumf %421, %422 : vector<8x16xf32>
    %424 = vector.broadcast %20 : f32 to vector<8x16xf32>
    %425 = arith.mulf %424, %369 : vector<8x16xf32>
    %426 = vector.broadcast %120 : f32 to vector<8x16xf32>
    %427 = arith.addf %426, %425 : vector<8x16xf32>
    %428 = vector.broadcast %21 : f32 to vector<8x16xf32>
    %429 = arith.mulf %428, %375 : vector<8x16xf32>
    %430 = arith.addf %427, %429 : vector<8x16xf32>
    %431 = vector.broadcast %22 : f32 to vector<8x16xf32>
    %432 = arith.mulf %431, %381 : vector<8x16xf32>
    %433 = arith.addf %430, %432 : vector<8x16xf32>
    %434 = vector.broadcast %23 : f32 to vector<8x16xf32>
    %435 = arith.mulf %434, %387 : vector<8x16xf32>
    %436 = arith.addf %433, %435 : vector<8x16xf32>
    %437 = vector.broadcast %24 : f32 to vector<8x16xf32>
    %438 = arith.mulf %437, %393 : vector<8x16xf32>
    %439 = arith.addf %436, %438 : vector<8x16xf32>
    %440 = vector.broadcast %25 : f32 to vector<8x16xf32>
    %441 = arith.mulf %440, %399 : vector<8x16xf32>
    %442 = arith.addf %439, %441 : vector<8x16xf32>
    %443 = vector.broadcast %26 : f32 to vector<8x16xf32>
    %444 = arith.mulf %443, %405 : vector<8x16xf32>
    %445 = arith.addf %442, %444 : vector<8x16xf32>
    %446 = vector.broadcast %27 : f32 to vector<8x16xf32>
    %447 = arith.mulf %446, %411 : vector<8x16xf32>
    %448 = arith.addf %445, %447 : vector<8x16xf32>
    %449 = vector.broadcast %28 : f32 to vector<8x16xf32>
    %450 = arith.mulf %449, %417 : vector<8x16xf32>
    %451 = arith.addf %448, %450 : vector<8x16xf32>
    %452 = vector.broadcast %29 : f32 to vector<8x16xf32>
    %453 = arith.mulf %452, %423 : vector<8x16xf32>
    %454 = arith.addf %451, %453 : vector<8x16xf32>
    %cst_274 = arith.constant 0.000000e+00 : f32
    %455 = vector.broadcast %cst_274 : f32 to vector<8x16xf32>
    %456 = arith.maximumf %454, %455 : vector<8x16xf32>
    %457 = vector.broadcast %30 : f32 to vector<8x16xf32>
    %458 = arith.mulf %457, %369 : vector<8x16xf32>
    %459 = vector.broadcast %121 : f32 to vector<8x16xf32>
    %460 = arith.addf %459, %458 : vector<8x16xf32>
    %461 = vector.broadcast %31 : f32 to vector<8x16xf32>
    %462 = arith.mulf %461, %375 : vector<8x16xf32>
    %463 = arith.addf %460, %462 : vector<8x16xf32>
    %464 = vector.broadcast %32 : f32 to vector<8x16xf32>
    %465 = arith.mulf %464, %381 : vector<8x16xf32>
    %466 = arith.addf %463, %465 : vector<8x16xf32>
    %467 = vector.broadcast %33 : f32 to vector<8x16xf32>
    %468 = arith.mulf %467, %387 : vector<8x16xf32>
    %469 = arith.addf %466, %468 : vector<8x16xf32>
    %470 = vector.broadcast %34 : f32 to vector<8x16xf32>
    %471 = arith.mulf %470, %393 : vector<8x16xf32>
    %472 = arith.addf %469, %471 : vector<8x16xf32>
    %473 = vector.broadcast %35 : f32 to vector<8x16xf32>
    %474 = arith.mulf %473, %399 : vector<8x16xf32>
    %475 = arith.addf %472, %474 : vector<8x16xf32>
    %476 = vector.broadcast %36 : f32 to vector<8x16xf32>
    %477 = arith.mulf %476, %405 : vector<8x16xf32>
    %478 = arith.addf %475, %477 : vector<8x16xf32>
    %479 = vector.broadcast %37 : f32 to vector<8x16xf32>
    %480 = arith.mulf %479, %411 : vector<8x16xf32>
    %481 = arith.addf %478, %480 : vector<8x16xf32>
    %482 = vector.broadcast %38 : f32 to vector<8x16xf32>
    %483 = arith.mulf %482, %417 : vector<8x16xf32>
    %484 = arith.addf %481, %483 : vector<8x16xf32>
    %485 = vector.broadcast %39 : f32 to vector<8x16xf32>
    %486 = arith.mulf %485, %423 : vector<8x16xf32>
    %487 = arith.addf %484, %486 : vector<8x16xf32>
    %cst_275 = arith.constant 0.000000e+00 : f32
    %488 = vector.broadcast %cst_275 : f32 to vector<8x16xf32>
    %489 = arith.maximumf %487, %488 : vector<8x16xf32>
    %490 = vector.broadcast %40 : f32 to vector<8x16xf32>
    %491 = arith.mulf %490, %369 : vector<8x16xf32>
    %492 = vector.broadcast %122 : f32 to vector<8x16xf32>
    %493 = arith.addf %492, %491 : vector<8x16xf32>
    %494 = vector.broadcast %41 : f32 to vector<8x16xf32>
    %495 = arith.mulf %494, %375 : vector<8x16xf32>
    %496 = arith.addf %493, %495 : vector<8x16xf32>
    %497 = vector.broadcast %42 : f32 to vector<8x16xf32>
    %498 = arith.mulf %497, %381 : vector<8x16xf32>
    %499 = arith.addf %496, %498 : vector<8x16xf32>
    %500 = vector.broadcast %43 : f32 to vector<8x16xf32>
    %501 = arith.mulf %500, %387 : vector<8x16xf32>
    %502 = arith.addf %499, %501 : vector<8x16xf32>
    %503 = vector.broadcast %44 : f32 to vector<8x16xf32>
    %504 = arith.mulf %503, %393 : vector<8x16xf32>
    %505 = arith.addf %502, %504 : vector<8x16xf32>
    %506 = vector.broadcast %45 : f32 to vector<8x16xf32>
    %507 = arith.mulf %506, %399 : vector<8x16xf32>
    %508 = arith.addf %505, %507 : vector<8x16xf32>
    %509 = vector.broadcast %46 : f32 to vector<8x16xf32>
    %510 = arith.mulf %509, %405 : vector<8x16xf32>
    %511 = arith.addf %508, %510 : vector<8x16xf32>
    %512 = vector.broadcast %47 : f32 to vector<8x16xf32>
    %513 = arith.mulf %512, %411 : vector<8x16xf32>
    %514 = arith.addf %511, %513 : vector<8x16xf32>
    %515 = vector.broadcast %48 : f32 to vector<8x16xf32>
    %516 = arith.mulf %515, %417 : vector<8x16xf32>
    %517 = arith.addf %514, %516 : vector<8x16xf32>
    %518 = vector.broadcast %49 : f32 to vector<8x16xf32>
    %519 = arith.mulf %518, %423 : vector<8x16xf32>
    %520 = arith.addf %517, %519 : vector<8x16xf32>
    %cst_276 = arith.constant 0.000000e+00 : f32
    %521 = vector.broadcast %cst_276 : f32 to vector<8x16xf32>
    %522 = arith.maximumf %520, %521 : vector<8x16xf32>
    %523 = vector.broadcast %50 : f32 to vector<8x16xf32>
    %524 = arith.mulf %523, %369 : vector<8x16xf32>
    %525 = vector.broadcast %123 : f32 to vector<8x16xf32>
    %526 = arith.addf %525, %524 : vector<8x16xf32>
    %527 = vector.broadcast %51 : f32 to vector<8x16xf32>
    %528 = arith.mulf %527, %375 : vector<8x16xf32>
    %529 = arith.addf %526, %528 : vector<8x16xf32>
    %530 = vector.broadcast %52 : f32 to vector<8x16xf32>
    %531 = arith.mulf %530, %381 : vector<8x16xf32>
    %532 = arith.addf %529, %531 : vector<8x16xf32>
    %533 = vector.broadcast %53 : f32 to vector<8x16xf32>
    %534 = arith.mulf %533, %387 : vector<8x16xf32>
    %535 = arith.addf %532, %534 : vector<8x16xf32>
    %536 = vector.broadcast %54 : f32 to vector<8x16xf32>
    %537 = arith.mulf %536, %393 : vector<8x16xf32>
    %538 = arith.addf %535, %537 : vector<8x16xf32>
    %539 = vector.broadcast %55 : f32 to vector<8x16xf32>
    %540 = arith.mulf %539, %399 : vector<8x16xf32>
    %541 = arith.addf %538, %540 : vector<8x16xf32>
    %542 = vector.broadcast %56 : f32 to vector<8x16xf32>
    %543 = arith.mulf %542, %405 : vector<8x16xf32>
    %544 = arith.addf %541, %543 : vector<8x16xf32>
    %545 = vector.broadcast %57 : f32 to vector<8x16xf32>
    %546 = arith.mulf %545, %411 : vector<8x16xf32>
    %547 = arith.addf %544, %546 : vector<8x16xf32>
    %548 = vector.broadcast %58 : f32 to vector<8x16xf32>
    %549 = arith.mulf %548, %417 : vector<8x16xf32>
    %550 = arith.addf %547, %549 : vector<8x16xf32>
    %551 = vector.broadcast %59 : f32 to vector<8x16xf32>
    %552 = arith.mulf %551, %423 : vector<8x16xf32>
    %553 = arith.addf %550, %552 : vector<8x16xf32>
    %cst_277 = arith.constant 0.000000e+00 : f32
    %554 = vector.broadcast %cst_277 : f32 to vector<8x16xf32>
    %555 = arith.maximumf %553, %554 : vector<8x16xf32>
    %556 = vector.broadcast %60 : f32 to vector<8x16xf32>
    %557 = arith.mulf %556, %369 : vector<8x16xf32>
    %558 = vector.broadcast %124 : f32 to vector<8x16xf32>
    %559 = arith.addf %558, %557 : vector<8x16xf32>
    %560 = vector.broadcast %61 : f32 to vector<8x16xf32>
    %561 = arith.mulf %560, %375 : vector<8x16xf32>
    %562 = arith.addf %559, %561 : vector<8x16xf32>
    %563 = vector.broadcast %62 : f32 to vector<8x16xf32>
    %564 = arith.mulf %563, %381 : vector<8x16xf32>
    %565 = arith.addf %562, %564 : vector<8x16xf32>
    %566 = vector.broadcast %63 : f32 to vector<8x16xf32>
    %567 = arith.mulf %566, %387 : vector<8x16xf32>
    %568 = arith.addf %565, %567 : vector<8x16xf32>
    %569 = vector.broadcast %64 : f32 to vector<8x16xf32>
    %570 = arith.mulf %569, %393 : vector<8x16xf32>
    %571 = arith.addf %568, %570 : vector<8x16xf32>
    %572 = vector.broadcast %65 : f32 to vector<8x16xf32>
    %573 = arith.mulf %572, %399 : vector<8x16xf32>
    %574 = arith.addf %571, %573 : vector<8x16xf32>
    %575 = vector.broadcast %66 : f32 to vector<8x16xf32>
    %576 = arith.mulf %575, %405 : vector<8x16xf32>
    %577 = arith.addf %574, %576 : vector<8x16xf32>
    %578 = vector.broadcast %67 : f32 to vector<8x16xf32>
    %579 = arith.mulf %578, %411 : vector<8x16xf32>
    %580 = arith.addf %577, %579 : vector<8x16xf32>
    %581 = vector.broadcast %68 : f32 to vector<8x16xf32>
    %582 = arith.mulf %581, %417 : vector<8x16xf32>
    %583 = arith.addf %580, %582 : vector<8x16xf32>
    %584 = vector.broadcast %69 : f32 to vector<8x16xf32>
    %585 = arith.mulf %584, %423 : vector<8x16xf32>
    %586 = arith.addf %583, %585 : vector<8x16xf32>
    %cst_278 = arith.constant 0.000000e+00 : f32
    %587 = vector.broadcast %cst_278 : f32 to vector<8x16xf32>
    %588 = arith.maximumf %586, %587 : vector<8x16xf32>
    %589 = vector.broadcast %70 : f32 to vector<8x16xf32>
    %590 = arith.mulf %589, %369 : vector<8x16xf32>
    %591 = vector.broadcast %125 : f32 to vector<8x16xf32>
    %592 = arith.addf %591, %590 : vector<8x16xf32>
    %593 = vector.broadcast %71 : f32 to vector<8x16xf32>
    %594 = arith.mulf %593, %375 : vector<8x16xf32>
    %595 = arith.addf %592, %594 : vector<8x16xf32>
    %596 = vector.broadcast %72 : f32 to vector<8x16xf32>
    %597 = arith.mulf %596, %381 : vector<8x16xf32>
    %598 = arith.addf %595, %597 : vector<8x16xf32>
    %599 = vector.broadcast %73 : f32 to vector<8x16xf32>
    %600 = arith.mulf %599, %387 : vector<8x16xf32>
    %601 = arith.addf %598, %600 : vector<8x16xf32>
    %602 = vector.broadcast %74 : f32 to vector<8x16xf32>
    %603 = arith.mulf %602, %393 : vector<8x16xf32>
    %604 = arith.addf %601, %603 : vector<8x16xf32>
    %605 = vector.broadcast %75 : f32 to vector<8x16xf32>
    %606 = arith.mulf %605, %399 : vector<8x16xf32>
    %607 = arith.addf %604, %606 : vector<8x16xf32>
    %608 = vector.broadcast %76 : f32 to vector<8x16xf32>
    %609 = arith.mulf %608, %405 : vector<8x16xf32>
    %610 = arith.addf %607, %609 : vector<8x16xf32>
    %611 = vector.broadcast %77 : f32 to vector<8x16xf32>
    %612 = arith.mulf %611, %411 : vector<8x16xf32>
    %613 = arith.addf %610, %612 : vector<8x16xf32>
    %614 = vector.broadcast %78 : f32 to vector<8x16xf32>
    %615 = arith.mulf %614, %417 : vector<8x16xf32>
    %616 = arith.addf %613, %615 : vector<8x16xf32>
    %617 = vector.broadcast %79 : f32 to vector<8x16xf32>
    %618 = arith.mulf %617, %423 : vector<8x16xf32>
    %619 = arith.addf %616, %618 : vector<8x16xf32>
    %cst_279 = arith.constant 0.000000e+00 : f32
    %620 = vector.broadcast %cst_279 : f32 to vector<8x16xf32>
    %621 = arith.maximumf %619, %620 : vector<8x16xf32>
    %622 = vector.broadcast %80 : f32 to vector<8x16xf32>
    %623 = arith.mulf %622, %369 : vector<8x16xf32>
    %624 = vector.broadcast %126 : f32 to vector<8x16xf32>
    %625 = arith.addf %624, %623 : vector<8x16xf32>
    %626 = vector.broadcast %81 : f32 to vector<8x16xf32>
    %627 = arith.mulf %626, %375 : vector<8x16xf32>
    %628 = arith.addf %625, %627 : vector<8x16xf32>
    %629 = vector.broadcast %82 : f32 to vector<8x16xf32>
    %630 = arith.mulf %629, %381 : vector<8x16xf32>
    %631 = arith.addf %628, %630 : vector<8x16xf32>
    %632 = vector.broadcast %83 : f32 to vector<8x16xf32>
    %633 = arith.mulf %632, %387 : vector<8x16xf32>
    %634 = arith.addf %631, %633 : vector<8x16xf32>
    %635 = vector.broadcast %84 : f32 to vector<8x16xf32>
    %636 = arith.mulf %635, %393 : vector<8x16xf32>
    %637 = arith.addf %634, %636 : vector<8x16xf32>
    %638 = vector.broadcast %85 : f32 to vector<8x16xf32>
    %639 = arith.mulf %638, %399 : vector<8x16xf32>
    %640 = arith.addf %637, %639 : vector<8x16xf32>
    %641 = vector.broadcast %86 : f32 to vector<8x16xf32>
    %642 = arith.mulf %641, %405 : vector<8x16xf32>
    %643 = arith.addf %640, %642 : vector<8x16xf32>
    %644 = vector.broadcast %87 : f32 to vector<8x16xf32>
    %645 = arith.mulf %644, %411 : vector<8x16xf32>
    %646 = arith.addf %643, %645 : vector<8x16xf32>
    %647 = vector.broadcast %88 : f32 to vector<8x16xf32>
    %648 = arith.mulf %647, %417 : vector<8x16xf32>
    %649 = arith.addf %646, %648 : vector<8x16xf32>
    %650 = vector.broadcast %89 : f32 to vector<8x16xf32>
    %651 = arith.mulf %650, %423 : vector<8x16xf32>
    %652 = arith.addf %649, %651 : vector<8x16xf32>
    %cst_280 = arith.constant 0.000000e+00 : f32
    %653 = vector.broadcast %cst_280 : f32 to vector<8x16xf32>
    %654 = arith.maximumf %652, %653 : vector<8x16xf32>
    %655 = vector.broadcast %90 : f32 to vector<8x16xf32>
    %656 = arith.mulf %655, %369 : vector<8x16xf32>
    %657 = vector.broadcast %127 : f32 to vector<8x16xf32>
    %658 = arith.addf %657, %656 : vector<8x16xf32>
    %659 = vector.broadcast %91 : f32 to vector<8x16xf32>
    %660 = arith.mulf %659, %375 : vector<8x16xf32>
    %661 = arith.addf %658, %660 : vector<8x16xf32>
    %662 = vector.broadcast %92 : f32 to vector<8x16xf32>
    %663 = arith.mulf %662, %381 : vector<8x16xf32>
    %664 = arith.addf %661, %663 : vector<8x16xf32>
    %665 = vector.broadcast %93 : f32 to vector<8x16xf32>
    %666 = arith.mulf %665, %387 : vector<8x16xf32>
    %667 = arith.addf %664, %666 : vector<8x16xf32>
    %668 = vector.broadcast %94 : f32 to vector<8x16xf32>
    %669 = arith.mulf %668, %393 : vector<8x16xf32>
    %670 = arith.addf %667, %669 : vector<8x16xf32>
    %671 = vector.broadcast %95 : f32 to vector<8x16xf32>
    %672 = arith.mulf %671, %399 : vector<8x16xf32>
    %673 = arith.addf %670, %672 : vector<8x16xf32>
    %674 = vector.broadcast %96 : f32 to vector<8x16xf32>
    %675 = arith.mulf %674, %405 : vector<8x16xf32>
    %676 = arith.addf %673, %675 : vector<8x16xf32>
    %677 = vector.broadcast %97 : f32 to vector<8x16xf32>
    %678 = arith.mulf %677, %411 : vector<8x16xf32>
    %679 = arith.addf %676, %678 : vector<8x16xf32>
    %680 = vector.broadcast %98 : f32 to vector<8x16xf32>
    %681 = arith.mulf %680, %417 : vector<8x16xf32>
    %682 = arith.addf %679, %681 : vector<8x16xf32>
    %683 = vector.broadcast %99 : f32 to vector<8x16xf32>
    %684 = arith.mulf %683, %423 : vector<8x16xf32>
    %685 = arith.addf %682, %684 : vector<8x16xf32>
    %cst_281 = arith.constant 0.000000e+00 : f32
    %686 = vector.broadcast %cst_281 : f32 to vector<8x16xf32>
    %687 = arith.maximumf %685, %686 : vector<8x16xf32>
    %688 = vector.broadcast %100 : f32 to vector<8x16xf32>
    %689 = arith.mulf %688, %369 : vector<8x16xf32>
    %690 = vector.broadcast %128 : f32 to vector<8x16xf32>
    %691 = arith.addf %690, %689 : vector<8x16xf32>
    %692 = vector.broadcast %101 : f32 to vector<8x16xf32>
    %693 = arith.mulf %692, %375 : vector<8x16xf32>
    %694 = arith.addf %691, %693 : vector<8x16xf32>
    %695 = vector.broadcast %102 : f32 to vector<8x16xf32>
    %696 = arith.mulf %695, %381 : vector<8x16xf32>
    %697 = arith.addf %694, %696 : vector<8x16xf32>
    %698 = vector.broadcast %103 : f32 to vector<8x16xf32>
    %699 = arith.mulf %698, %387 : vector<8x16xf32>
    %700 = arith.addf %697, %699 : vector<8x16xf32>
    %701 = vector.broadcast %104 : f32 to vector<8x16xf32>
    %702 = arith.mulf %701, %393 : vector<8x16xf32>
    %703 = arith.addf %700, %702 : vector<8x16xf32>
    %704 = vector.broadcast %105 : f32 to vector<8x16xf32>
    %705 = arith.mulf %704, %399 : vector<8x16xf32>
    %706 = arith.addf %703, %705 : vector<8x16xf32>
    %707 = vector.broadcast %106 : f32 to vector<8x16xf32>
    %708 = arith.mulf %707, %405 : vector<8x16xf32>
    %709 = arith.addf %706, %708 : vector<8x16xf32>
    %710 = vector.broadcast %107 : f32 to vector<8x16xf32>
    %711 = arith.mulf %710, %411 : vector<8x16xf32>
    %712 = arith.addf %709, %711 : vector<8x16xf32>
    %713 = vector.broadcast %108 : f32 to vector<8x16xf32>
    %714 = arith.mulf %713, %417 : vector<8x16xf32>
    %715 = arith.addf %712, %714 : vector<8x16xf32>
    %716 = vector.broadcast %109 : f32 to vector<8x16xf32>
    %717 = arith.mulf %716, %423 : vector<8x16xf32>
    %718 = arith.addf %715, %717 : vector<8x16xf32>
    %cst_282 = arith.constant 0.000000e+00 : f32
    %719 = vector.broadcast %cst_282 : f32 to vector<8x16xf32>
    %720 = arith.maximumf %718, %719 : vector<8x16xf32>
    %721 = vector.broadcast %110 : f32 to vector<8x16xf32>
    %722 = arith.mulf %721, %369 : vector<8x16xf32>
    %723 = vector.broadcast %129 : f32 to vector<8x16xf32>
    %724 = arith.addf %723, %722 : vector<8x16xf32>
    %725 = vector.broadcast %111 : f32 to vector<8x16xf32>
    %726 = arith.mulf %725, %375 : vector<8x16xf32>
    %727 = arith.addf %724, %726 : vector<8x16xf32>
    %728 = vector.broadcast %112 : f32 to vector<8x16xf32>
    %729 = arith.mulf %728, %381 : vector<8x16xf32>
    %730 = arith.addf %727, %729 : vector<8x16xf32>
    %731 = vector.broadcast %113 : f32 to vector<8x16xf32>
    %732 = arith.mulf %731, %387 : vector<8x16xf32>
    %733 = arith.addf %730, %732 : vector<8x16xf32>
    %734 = vector.broadcast %114 : f32 to vector<8x16xf32>
    %735 = arith.mulf %734, %393 : vector<8x16xf32>
    %736 = arith.addf %733, %735 : vector<8x16xf32>
    %737 = vector.broadcast %115 : f32 to vector<8x16xf32>
    %738 = arith.mulf %737, %399 : vector<8x16xf32>
    %739 = arith.addf %736, %738 : vector<8x16xf32>
    %740 = vector.broadcast %116 : f32 to vector<8x16xf32>
    %741 = arith.mulf %740, %405 : vector<8x16xf32>
    %742 = arith.addf %739, %741 : vector<8x16xf32>
    %743 = vector.broadcast %117 : f32 to vector<8x16xf32>
    %744 = arith.mulf %743, %411 : vector<8x16xf32>
    %745 = arith.addf %742, %744 : vector<8x16xf32>
    %746 = vector.broadcast %118 : f32 to vector<8x16xf32>
    %747 = arith.mulf %746, %417 : vector<8x16xf32>
    %748 = arith.addf %745, %747 : vector<8x16xf32>
    %749 = vector.broadcast %119 : f32 to vector<8x16xf32>
    %750 = arith.mulf %749, %423 : vector<8x16xf32>
    %751 = arith.addf %748, %750 : vector<8x16xf32>
    %cst_283 = arith.constant 0.000000e+00 : f32
    %752 = vector.broadcast %cst_283 : f32 to vector<8x16xf32>
    %753 = arith.maximumf %751, %752 : vector<8x16xf32>
    %754 = vector.broadcast %130 : f32 to vector<8x16xf32>
    %755 = arith.mulf %754, %456 : vector<8x16xf32>
    %756 = vector.broadcast %230 : f32 to vector<8x16xf32>
    %757 = arith.addf %756, %755 : vector<8x16xf32>
    %758 = vector.broadcast %131 : f32 to vector<8x16xf32>
    %759 = arith.mulf %758, %489 : vector<8x16xf32>
    %760 = arith.addf %757, %759 : vector<8x16xf32>
    %761 = vector.broadcast %132 : f32 to vector<8x16xf32>
    %762 = arith.mulf %761, %522 : vector<8x16xf32>
    %763 = arith.addf %760, %762 : vector<8x16xf32>
    %764 = vector.broadcast %133 : f32 to vector<8x16xf32>
    %765 = arith.mulf %764, %555 : vector<8x16xf32>
    %766 = arith.addf %763, %765 : vector<8x16xf32>
    %767 = vector.broadcast %134 : f32 to vector<8x16xf32>
    %768 = arith.mulf %767, %588 : vector<8x16xf32>
    %769 = arith.addf %766, %768 : vector<8x16xf32>
    %770 = vector.broadcast %135 : f32 to vector<8x16xf32>
    %771 = arith.mulf %770, %621 : vector<8x16xf32>
    %772 = arith.addf %769, %771 : vector<8x16xf32>
    %773 = vector.broadcast %136 : f32 to vector<8x16xf32>
    %774 = arith.mulf %773, %654 : vector<8x16xf32>
    %775 = arith.addf %772, %774 : vector<8x16xf32>
    %776 = vector.broadcast %137 : f32 to vector<8x16xf32>
    %777 = arith.mulf %776, %687 : vector<8x16xf32>
    %778 = arith.addf %775, %777 : vector<8x16xf32>
    %779 = vector.broadcast %138 : f32 to vector<8x16xf32>
    %780 = arith.mulf %779, %720 : vector<8x16xf32>
    %781 = arith.addf %778, %780 : vector<8x16xf32>
    %782 = vector.broadcast %139 : f32 to vector<8x16xf32>
    %783 = arith.mulf %782, %753 : vector<8x16xf32>
    %784 = arith.addf %781, %783 : vector<8x16xf32>
    %cst_284 = arith.constant 0.000000e+00 : f32
    %785 = vector.broadcast %cst_284 : f32 to vector<8x16xf32>
    %786 = arith.maximumf %784, %785 : vector<8x16xf32>
    %787 = vector.broadcast %140 : f32 to vector<8x16xf32>
    %788 = arith.mulf %787, %456 : vector<8x16xf32>
    %789 = vector.broadcast %231 : f32 to vector<8x16xf32>
    %790 = arith.addf %789, %788 : vector<8x16xf32>
    %791 = vector.broadcast %141 : f32 to vector<8x16xf32>
    %792 = arith.mulf %791, %489 : vector<8x16xf32>
    %793 = arith.addf %790, %792 : vector<8x16xf32>
    %794 = vector.broadcast %142 : f32 to vector<8x16xf32>
    %795 = arith.mulf %794, %522 : vector<8x16xf32>
    %796 = arith.addf %793, %795 : vector<8x16xf32>
    %797 = vector.broadcast %143 : f32 to vector<8x16xf32>
    %798 = arith.mulf %797, %555 : vector<8x16xf32>
    %799 = arith.addf %796, %798 : vector<8x16xf32>
    %800 = vector.broadcast %144 : f32 to vector<8x16xf32>
    %801 = arith.mulf %800, %588 : vector<8x16xf32>
    %802 = arith.addf %799, %801 : vector<8x16xf32>
    %803 = vector.broadcast %145 : f32 to vector<8x16xf32>
    %804 = arith.mulf %803, %621 : vector<8x16xf32>
    %805 = arith.addf %802, %804 : vector<8x16xf32>
    %806 = vector.broadcast %146 : f32 to vector<8x16xf32>
    %807 = arith.mulf %806, %654 : vector<8x16xf32>
    %808 = arith.addf %805, %807 : vector<8x16xf32>
    %809 = vector.broadcast %147 : f32 to vector<8x16xf32>
    %810 = arith.mulf %809, %687 : vector<8x16xf32>
    %811 = arith.addf %808, %810 : vector<8x16xf32>
    %812 = vector.broadcast %148 : f32 to vector<8x16xf32>
    %813 = arith.mulf %812, %720 : vector<8x16xf32>
    %814 = arith.addf %811, %813 : vector<8x16xf32>
    %815 = vector.broadcast %149 : f32 to vector<8x16xf32>
    %816 = arith.mulf %815, %753 : vector<8x16xf32>
    %817 = arith.addf %814, %816 : vector<8x16xf32>
    %cst_285 = arith.constant 0.000000e+00 : f32
    %818 = vector.broadcast %cst_285 : f32 to vector<8x16xf32>
    %819 = arith.maximumf %817, %818 : vector<8x16xf32>
    %820 = vector.broadcast %150 : f32 to vector<8x16xf32>
    %821 = arith.mulf %820, %456 : vector<8x16xf32>
    %822 = vector.broadcast %232 : f32 to vector<8x16xf32>
    %823 = arith.addf %822, %821 : vector<8x16xf32>
    %824 = vector.broadcast %151 : f32 to vector<8x16xf32>
    %825 = arith.mulf %824, %489 : vector<8x16xf32>
    %826 = arith.addf %823, %825 : vector<8x16xf32>
    %827 = vector.broadcast %152 : f32 to vector<8x16xf32>
    %828 = arith.mulf %827, %522 : vector<8x16xf32>
    %829 = arith.addf %826, %828 : vector<8x16xf32>
    %830 = vector.broadcast %153 : f32 to vector<8x16xf32>
    %831 = arith.mulf %830, %555 : vector<8x16xf32>
    %832 = arith.addf %829, %831 : vector<8x16xf32>
    %833 = vector.broadcast %154 : f32 to vector<8x16xf32>
    %834 = arith.mulf %833, %588 : vector<8x16xf32>
    %835 = arith.addf %832, %834 : vector<8x16xf32>
    %836 = vector.broadcast %155 : f32 to vector<8x16xf32>
    %837 = arith.mulf %836, %621 : vector<8x16xf32>
    %838 = arith.addf %835, %837 : vector<8x16xf32>
    %839 = vector.broadcast %156 : f32 to vector<8x16xf32>
    %840 = arith.mulf %839, %654 : vector<8x16xf32>
    %841 = arith.addf %838, %840 : vector<8x16xf32>
    %842 = vector.broadcast %157 : f32 to vector<8x16xf32>
    %843 = arith.mulf %842, %687 : vector<8x16xf32>
    %844 = arith.addf %841, %843 : vector<8x16xf32>
    %845 = vector.broadcast %158 : f32 to vector<8x16xf32>
    %846 = arith.mulf %845, %720 : vector<8x16xf32>
    %847 = arith.addf %844, %846 : vector<8x16xf32>
    %848 = vector.broadcast %159 : f32 to vector<8x16xf32>
    %849 = arith.mulf %848, %753 : vector<8x16xf32>
    %850 = arith.addf %847, %849 : vector<8x16xf32>
    %cst_286 = arith.constant 0.000000e+00 : f32
    %851 = vector.broadcast %cst_286 : f32 to vector<8x16xf32>
    %852 = arith.maximumf %850, %851 : vector<8x16xf32>
    %853 = vector.broadcast %160 : f32 to vector<8x16xf32>
    %854 = arith.mulf %853, %456 : vector<8x16xf32>
    %855 = vector.broadcast %233 : f32 to vector<8x16xf32>
    %856 = arith.addf %855, %854 : vector<8x16xf32>
    %857 = vector.broadcast %161 : f32 to vector<8x16xf32>
    %858 = arith.mulf %857, %489 : vector<8x16xf32>
    %859 = arith.addf %856, %858 : vector<8x16xf32>
    %860 = vector.broadcast %162 : f32 to vector<8x16xf32>
    %861 = arith.mulf %860, %522 : vector<8x16xf32>
    %862 = arith.addf %859, %861 : vector<8x16xf32>
    %863 = vector.broadcast %163 : f32 to vector<8x16xf32>
    %864 = arith.mulf %863, %555 : vector<8x16xf32>
    %865 = arith.addf %862, %864 : vector<8x16xf32>
    %866 = vector.broadcast %164 : f32 to vector<8x16xf32>
    %867 = arith.mulf %866, %588 : vector<8x16xf32>
    %868 = arith.addf %865, %867 : vector<8x16xf32>
    %869 = vector.broadcast %165 : f32 to vector<8x16xf32>
    %870 = arith.mulf %869, %621 : vector<8x16xf32>
    %871 = arith.addf %868, %870 : vector<8x16xf32>
    %872 = vector.broadcast %166 : f32 to vector<8x16xf32>
    %873 = arith.mulf %872, %654 : vector<8x16xf32>
    %874 = arith.addf %871, %873 : vector<8x16xf32>
    %875 = vector.broadcast %167 : f32 to vector<8x16xf32>
    %876 = arith.mulf %875, %687 : vector<8x16xf32>
    %877 = arith.addf %874, %876 : vector<8x16xf32>
    %878 = vector.broadcast %168 : f32 to vector<8x16xf32>
    %879 = arith.mulf %878, %720 : vector<8x16xf32>
    %880 = arith.addf %877, %879 : vector<8x16xf32>
    %881 = vector.broadcast %169 : f32 to vector<8x16xf32>
    %882 = arith.mulf %881, %753 : vector<8x16xf32>
    %883 = arith.addf %880, %882 : vector<8x16xf32>
    %cst_287 = arith.constant 0.000000e+00 : f32
    %884 = vector.broadcast %cst_287 : f32 to vector<8x16xf32>
    %885 = arith.maximumf %883, %884 : vector<8x16xf32>
    %886 = vector.broadcast %170 : f32 to vector<8x16xf32>
    %887 = arith.mulf %886, %456 : vector<8x16xf32>
    %888 = vector.broadcast %234 : f32 to vector<8x16xf32>
    %889 = arith.addf %888, %887 : vector<8x16xf32>
    %890 = vector.broadcast %171 : f32 to vector<8x16xf32>
    %891 = arith.mulf %890, %489 : vector<8x16xf32>
    %892 = arith.addf %889, %891 : vector<8x16xf32>
    %893 = vector.broadcast %172 : f32 to vector<8x16xf32>
    %894 = arith.mulf %893, %522 : vector<8x16xf32>
    %895 = arith.addf %892, %894 : vector<8x16xf32>
    %896 = vector.broadcast %173 : f32 to vector<8x16xf32>
    %897 = arith.mulf %896, %555 : vector<8x16xf32>
    %898 = arith.addf %895, %897 : vector<8x16xf32>
    %899 = vector.broadcast %174 : f32 to vector<8x16xf32>
    %900 = arith.mulf %899, %588 : vector<8x16xf32>
    %901 = arith.addf %898, %900 : vector<8x16xf32>
    %902 = vector.broadcast %175 : f32 to vector<8x16xf32>
    %903 = arith.mulf %902, %621 : vector<8x16xf32>
    %904 = arith.addf %901, %903 : vector<8x16xf32>
    %905 = vector.broadcast %176 : f32 to vector<8x16xf32>
    %906 = arith.mulf %905, %654 : vector<8x16xf32>
    %907 = arith.addf %904, %906 : vector<8x16xf32>
    %908 = vector.broadcast %177 : f32 to vector<8x16xf32>
    %909 = arith.mulf %908, %687 : vector<8x16xf32>
    %910 = arith.addf %907, %909 : vector<8x16xf32>
    %911 = vector.broadcast %178 : f32 to vector<8x16xf32>
    %912 = arith.mulf %911, %720 : vector<8x16xf32>
    %913 = arith.addf %910, %912 : vector<8x16xf32>
    %914 = vector.broadcast %179 : f32 to vector<8x16xf32>
    %915 = arith.mulf %914, %753 : vector<8x16xf32>
    %916 = arith.addf %913, %915 : vector<8x16xf32>
    %cst_288 = arith.constant 0.000000e+00 : f32
    %917 = vector.broadcast %cst_288 : f32 to vector<8x16xf32>
    %918 = arith.maximumf %916, %917 : vector<8x16xf32>
    %919 = vector.broadcast %180 : f32 to vector<8x16xf32>
    %920 = arith.mulf %919, %456 : vector<8x16xf32>
    %921 = vector.broadcast %235 : f32 to vector<8x16xf32>
    %922 = arith.addf %921, %920 : vector<8x16xf32>
    %923 = vector.broadcast %181 : f32 to vector<8x16xf32>
    %924 = arith.mulf %923, %489 : vector<8x16xf32>
    %925 = arith.addf %922, %924 : vector<8x16xf32>
    %926 = vector.broadcast %182 : f32 to vector<8x16xf32>
    %927 = arith.mulf %926, %522 : vector<8x16xf32>
    %928 = arith.addf %925, %927 : vector<8x16xf32>
    %929 = vector.broadcast %183 : f32 to vector<8x16xf32>
    %930 = arith.mulf %929, %555 : vector<8x16xf32>
    %931 = arith.addf %928, %930 : vector<8x16xf32>
    %932 = vector.broadcast %184 : f32 to vector<8x16xf32>
    %933 = arith.mulf %932, %588 : vector<8x16xf32>
    %934 = arith.addf %931, %933 : vector<8x16xf32>
    %935 = vector.broadcast %185 : f32 to vector<8x16xf32>
    %936 = arith.mulf %935, %621 : vector<8x16xf32>
    %937 = arith.addf %934, %936 : vector<8x16xf32>
    %938 = vector.broadcast %186 : f32 to vector<8x16xf32>
    %939 = arith.mulf %938, %654 : vector<8x16xf32>
    %940 = arith.addf %937, %939 : vector<8x16xf32>
    %941 = vector.broadcast %187 : f32 to vector<8x16xf32>
    %942 = arith.mulf %941, %687 : vector<8x16xf32>
    %943 = arith.addf %940, %942 : vector<8x16xf32>
    %944 = vector.broadcast %188 : f32 to vector<8x16xf32>
    %945 = arith.mulf %944, %720 : vector<8x16xf32>
    %946 = arith.addf %943, %945 : vector<8x16xf32>
    %947 = vector.broadcast %189 : f32 to vector<8x16xf32>
    %948 = arith.mulf %947, %753 : vector<8x16xf32>
    %949 = arith.addf %946, %948 : vector<8x16xf32>
    %cst_289 = arith.constant 0.000000e+00 : f32
    %950 = vector.broadcast %cst_289 : f32 to vector<8x16xf32>
    %951 = arith.maximumf %949, %950 : vector<8x16xf32>
    %952 = vector.broadcast %190 : f32 to vector<8x16xf32>
    %953 = arith.mulf %952, %456 : vector<8x16xf32>
    %954 = vector.broadcast %236 : f32 to vector<8x16xf32>
    %955 = arith.addf %954, %953 : vector<8x16xf32>
    %956 = vector.broadcast %191 : f32 to vector<8x16xf32>
    %957 = arith.mulf %956, %489 : vector<8x16xf32>
    %958 = arith.addf %955, %957 : vector<8x16xf32>
    %959 = vector.broadcast %192 : f32 to vector<8x16xf32>
    %960 = arith.mulf %959, %522 : vector<8x16xf32>
    %961 = arith.addf %958, %960 : vector<8x16xf32>
    %962 = vector.broadcast %193 : f32 to vector<8x16xf32>
    %963 = arith.mulf %962, %555 : vector<8x16xf32>
    %964 = arith.addf %961, %963 : vector<8x16xf32>
    %965 = vector.broadcast %194 : f32 to vector<8x16xf32>
    %966 = arith.mulf %965, %588 : vector<8x16xf32>
    %967 = arith.addf %964, %966 : vector<8x16xf32>
    %968 = vector.broadcast %195 : f32 to vector<8x16xf32>
    %969 = arith.mulf %968, %621 : vector<8x16xf32>
    %970 = arith.addf %967, %969 : vector<8x16xf32>
    %971 = vector.broadcast %196 : f32 to vector<8x16xf32>
    %972 = arith.mulf %971, %654 : vector<8x16xf32>
    %973 = arith.addf %970, %972 : vector<8x16xf32>
    %974 = vector.broadcast %197 : f32 to vector<8x16xf32>
    %975 = arith.mulf %974, %687 : vector<8x16xf32>
    %976 = arith.addf %973, %975 : vector<8x16xf32>
    %977 = vector.broadcast %198 : f32 to vector<8x16xf32>
    %978 = arith.mulf %977, %720 : vector<8x16xf32>
    %979 = arith.addf %976, %978 : vector<8x16xf32>
    %980 = vector.broadcast %199 : f32 to vector<8x16xf32>
    %981 = arith.mulf %980, %753 : vector<8x16xf32>
    %982 = arith.addf %979, %981 : vector<8x16xf32>
    %cst_290 = arith.constant 0.000000e+00 : f32
    %983 = vector.broadcast %cst_290 : f32 to vector<8x16xf32>
    %984 = arith.maximumf %982, %983 : vector<8x16xf32>
    %985 = vector.broadcast %200 : f32 to vector<8x16xf32>
    %986 = arith.mulf %985, %456 : vector<8x16xf32>
    %987 = vector.broadcast %237 : f32 to vector<8x16xf32>
    %988 = arith.addf %987, %986 : vector<8x16xf32>
    %989 = vector.broadcast %201 : f32 to vector<8x16xf32>
    %990 = arith.mulf %989, %489 : vector<8x16xf32>
    %991 = arith.addf %988, %990 : vector<8x16xf32>
    %992 = vector.broadcast %202 : f32 to vector<8x16xf32>
    %993 = arith.mulf %992, %522 : vector<8x16xf32>
    %994 = arith.addf %991, %993 : vector<8x16xf32>
    %995 = vector.broadcast %203 : f32 to vector<8x16xf32>
    %996 = arith.mulf %995, %555 : vector<8x16xf32>
    %997 = arith.addf %994, %996 : vector<8x16xf32>
    %998 = vector.broadcast %204 : f32 to vector<8x16xf32>
    %999 = arith.mulf %998, %588 : vector<8x16xf32>
    %1000 = arith.addf %997, %999 : vector<8x16xf32>
    %1001 = vector.broadcast %205 : f32 to vector<8x16xf32>
    %1002 = arith.mulf %1001, %621 : vector<8x16xf32>
    %1003 = arith.addf %1000, %1002 : vector<8x16xf32>
    %1004 = vector.broadcast %206 : f32 to vector<8x16xf32>
    %1005 = arith.mulf %1004, %654 : vector<8x16xf32>
    %1006 = arith.addf %1003, %1005 : vector<8x16xf32>
    %1007 = vector.broadcast %207 : f32 to vector<8x16xf32>
    %1008 = arith.mulf %1007, %687 : vector<8x16xf32>
    %1009 = arith.addf %1006, %1008 : vector<8x16xf32>
    %1010 = vector.broadcast %208 : f32 to vector<8x16xf32>
    %1011 = arith.mulf %1010, %720 : vector<8x16xf32>
    %1012 = arith.addf %1009, %1011 : vector<8x16xf32>
    %1013 = vector.broadcast %209 : f32 to vector<8x16xf32>
    %1014 = arith.mulf %1013, %753 : vector<8x16xf32>
    %1015 = arith.addf %1012, %1014 : vector<8x16xf32>
    %cst_291 = arith.constant 0.000000e+00 : f32
    %1016 = vector.broadcast %cst_291 : f32 to vector<8x16xf32>
    %1017 = arith.maximumf %1015, %1016 : vector<8x16xf32>
    %1018 = vector.broadcast %210 : f32 to vector<8x16xf32>
    %1019 = arith.mulf %1018, %456 : vector<8x16xf32>
    %1020 = vector.broadcast %238 : f32 to vector<8x16xf32>
    %1021 = arith.addf %1020, %1019 : vector<8x16xf32>
    %1022 = vector.broadcast %211 : f32 to vector<8x16xf32>
    %1023 = arith.mulf %1022, %489 : vector<8x16xf32>
    %1024 = arith.addf %1021, %1023 : vector<8x16xf32>
    %1025 = vector.broadcast %212 : f32 to vector<8x16xf32>
    %1026 = arith.mulf %1025, %522 : vector<8x16xf32>
    %1027 = arith.addf %1024, %1026 : vector<8x16xf32>
    %1028 = vector.broadcast %213 : f32 to vector<8x16xf32>
    %1029 = arith.mulf %1028, %555 : vector<8x16xf32>
    %1030 = arith.addf %1027, %1029 : vector<8x16xf32>
    %1031 = vector.broadcast %214 : f32 to vector<8x16xf32>
    %1032 = arith.mulf %1031, %588 : vector<8x16xf32>
    %1033 = arith.addf %1030, %1032 : vector<8x16xf32>
    %1034 = vector.broadcast %215 : f32 to vector<8x16xf32>
    %1035 = arith.mulf %1034, %621 : vector<8x16xf32>
    %1036 = arith.addf %1033, %1035 : vector<8x16xf32>
    %1037 = vector.broadcast %216 : f32 to vector<8x16xf32>
    %1038 = arith.mulf %1037, %654 : vector<8x16xf32>
    %1039 = arith.addf %1036, %1038 : vector<8x16xf32>
    %1040 = vector.broadcast %217 : f32 to vector<8x16xf32>
    %1041 = arith.mulf %1040, %687 : vector<8x16xf32>
    %1042 = arith.addf %1039, %1041 : vector<8x16xf32>
    %1043 = vector.broadcast %218 : f32 to vector<8x16xf32>
    %1044 = arith.mulf %1043, %720 : vector<8x16xf32>
    %1045 = arith.addf %1042, %1044 : vector<8x16xf32>
    %1046 = vector.broadcast %219 : f32 to vector<8x16xf32>
    %1047 = arith.mulf %1046, %753 : vector<8x16xf32>
    %1048 = arith.addf %1045, %1047 : vector<8x16xf32>
    %cst_292 = arith.constant 0.000000e+00 : f32
    %1049 = vector.broadcast %cst_292 : f32 to vector<8x16xf32>
    %1050 = arith.maximumf %1048, %1049 : vector<8x16xf32>
    %1051 = vector.broadcast %220 : f32 to vector<8x16xf32>
    %1052 = arith.mulf %1051, %456 : vector<8x16xf32>
    %1053 = vector.broadcast %239 : f32 to vector<8x16xf32>
    %1054 = arith.addf %1053, %1052 : vector<8x16xf32>
    %1055 = vector.broadcast %221 : f32 to vector<8x16xf32>
    %1056 = arith.mulf %1055, %489 : vector<8x16xf32>
    %1057 = arith.addf %1054, %1056 : vector<8x16xf32>
    %1058 = vector.broadcast %222 : f32 to vector<8x16xf32>
    %1059 = arith.mulf %1058, %522 : vector<8x16xf32>
    %1060 = arith.addf %1057, %1059 : vector<8x16xf32>
    %1061 = vector.broadcast %223 : f32 to vector<8x16xf32>
    %1062 = arith.mulf %1061, %555 : vector<8x16xf32>
    %1063 = arith.addf %1060, %1062 : vector<8x16xf32>
    %1064 = vector.broadcast %224 : f32 to vector<8x16xf32>
    %1065 = arith.mulf %1064, %588 : vector<8x16xf32>
    %1066 = arith.addf %1063, %1065 : vector<8x16xf32>
    %1067 = vector.broadcast %225 : f32 to vector<8x16xf32>
    %1068 = arith.mulf %1067, %621 : vector<8x16xf32>
    %1069 = arith.addf %1066, %1068 : vector<8x16xf32>
    %1070 = vector.broadcast %226 : f32 to vector<8x16xf32>
    %1071 = arith.mulf %1070, %654 : vector<8x16xf32>
    %1072 = arith.addf %1069, %1071 : vector<8x16xf32>
    %1073 = vector.broadcast %227 : f32 to vector<8x16xf32>
    %1074 = arith.mulf %1073, %687 : vector<8x16xf32>
    %1075 = arith.addf %1072, %1074 : vector<8x16xf32>
    %1076 = vector.broadcast %228 : f32 to vector<8x16xf32>
    %1077 = arith.mulf %1076, %720 : vector<8x16xf32>
    %1078 = arith.addf %1075, %1077 : vector<8x16xf32>
    %1079 = vector.broadcast %229 : f32 to vector<8x16xf32>
    %1080 = arith.mulf %1079, %753 : vector<8x16xf32>
    %1081 = arith.addf %1078, %1080 : vector<8x16xf32>
    %cst_293 = arith.constant 0.000000e+00 : f32
    %1082 = vector.broadcast %cst_293 : f32 to vector<8x16xf32>
    %1083 = arith.maximumf %1081, %1082 : vector<8x16xf32>
    %1084 = vector.broadcast %240 : f32 to vector<8x16xf32>
    %1085 = arith.mulf %1084, %786 : vector<8x16xf32>
    %1086 = vector.broadcast %340 : f32 to vector<8x16xf32>
    %1087 = arith.addf %1086, %1085 : vector<8x16xf32>
    %1088 = vector.broadcast %241 : f32 to vector<8x16xf32>
    %1089 = arith.mulf %1088, %819 : vector<8x16xf32>
    %1090 = arith.addf %1087, %1089 : vector<8x16xf32>
    %1091 = vector.broadcast %242 : f32 to vector<8x16xf32>
    %1092 = arith.mulf %1091, %852 : vector<8x16xf32>
    %1093 = arith.addf %1090, %1092 : vector<8x16xf32>
    %1094 = vector.broadcast %243 : f32 to vector<8x16xf32>
    %1095 = arith.mulf %1094, %885 : vector<8x16xf32>
    %1096 = arith.addf %1093, %1095 : vector<8x16xf32>
    %1097 = vector.broadcast %244 : f32 to vector<8x16xf32>
    %1098 = arith.mulf %1097, %918 : vector<8x16xf32>
    %1099 = arith.addf %1096, %1098 : vector<8x16xf32>
    %1100 = vector.broadcast %245 : f32 to vector<8x16xf32>
    %1101 = arith.mulf %1100, %951 : vector<8x16xf32>
    %1102 = arith.addf %1099, %1101 : vector<8x16xf32>
    %1103 = vector.broadcast %246 : f32 to vector<8x16xf32>
    %1104 = arith.mulf %1103, %984 : vector<8x16xf32>
    %1105 = arith.addf %1102, %1104 : vector<8x16xf32>
    %1106 = vector.broadcast %247 : f32 to vector<8x16xf32>
    %1107 = arith.mulf %1106, %1017 : vector<8x16xf32>
    %1108 = arith.addf %1105, %1107 : vector<8x16xf32>
    %1109 = vector.broadcast %248 : f32 to vector<8x16xf32>
    %1110 = arith.mulf %1109, %1050 : vector<8x16xf32>
    %1111 = arith.addf %1108, %1110 : vector<8x16xf32>
    %1112 = vector.broadcast %249 : f32 to vector<8x16xf32>
    %1113 = arith.mulf %1112, %1083 : vector<8x16xf32>
    %1114 = arith.addf %1111, %1113 : vector<8x16xf32>
    %cst_294 = arith.constant 0.000000e+00 : f32
    %1115 = vector.broadcast %cst_294 : f32 to vector<8x16xf32>
    %1116 = arith.maximumf %1114, %1115 : vector<8x16xf32>
    %1117 = vector.broadcast %250 : f32 to vector<8x16xf32>
    %1118 = arith.mulf %1117, %786 : vector<8x16xf32>
    %1119 = vector.broadcast %341 : f32 to vector<8x16xf32>
    %1120 = arith.addf %1119, %1118 : vector<8x16xf32>
    %1121 = vector.broadcast %251 : f32 to vector<8x16xf32>
    %1122 = arith.mulf %1121, %819 : vector<8x16xf32>
    %1123 = arith.addf %1120, %1122 : vector<8x16xf32>
    %1124 = vector.broadcast %252 : f32 to vector<8x16xf32>
    %1125 = arith.mulf %1124, %852 : vector<8x16xf32>
    %1126 = arith.addf %1123, %1125 : vector<8x16xf32>
    %1127 = vector.broadcast %253 : f32 to vector<8x16xf32>
    %1128 = arith.mulf %1127, %885 : vector<8x16xf32>
    %1129 = arith.addf %1126, %1128 : vector<8x16xf32>
    %1130 = vector.broadcast %254 : f32 to vector<8x16xf32>
    %1131 = arith.mulf %1130, %918 : vector<8x16xf32>
    %1132 = arith.addf %1129, %1131 : vector<8x16xf32>
    %1133 = vector.broadcast %255 : f32 to vector<8x16xf32>
    %1134 = arith.mulf %1133, %951 : vector<8x16xf32>
    %1135 = arith.addf %1132, %1134 : vector<8x16xf32>
    %1136 = vector.broadcast %256 : f32 to vector<8x16xf32>
    %1137 = arith.mulf %1136, %984 : vector<8x16xf32>
    %1138 = arith.addf %1135, %1137 : vector<8x16xf32>
    %1139 = vector.broadcast %257 : f32 to vector<8x16xf32>
    %1140 = arith.mulf %1139, %1017 : vector<8x16xf32>
    %1141 = arith.addf %1138, %1140 : vector<8x16xf32>
    %1142 = vector.broadcast %258 : f32 to vector<8x16xf32>
    %1143 = arith.mulf %1142, %1050 : vector<8x16xf32>
    %1144 = arith.addf %1141, %1143 : vector<8x16xf32>
    %1145 = vector.broadcast %259 : f32 to vector<8x16xf32>
    %1146 = arith.mulf %1145, %1083 : vector<8x16xf32>
    %1147 = arith.addf %1144, %1146 : vector<8x16xf32>
    %cst_295 = arith.constant 0.000000e+00 : f32
    %1148 = vector.broadcast %cst_295 : f32 to vector<8x16xf32>
    %1149 = arith.maximumf %1147, %1148 : vector<8x16xf32>
    %1150 = vector.broadcast %260 : f32 to vector<8x16xf32>
    %1151 = arith.mulf %1150, %786 : vector<8x16xf32>
    %1152 = vector.broadcast %342 : f32 to vector<8x16xf32>
    %1153 = arith.addf %1152, %1151 : vector<8x16xf32>
    %1154 = vector.broadcast %261 : f32 to vector<8x16xf32>
    %1155 = arith.mulf %1154, %819 : vector<8x16xf32>
    %1156 = arith.addf %1153, %1155 : vector<8x16xf32>
    %1157 = vector.broadcast %262 : f32 to vector<8x16xf32>
    %1158 = arith.mulf %1157, %852 : vector<8x16xf32>
    %1159 = arith.addf %1156, %1158 : vector<8x16xf32>
    %1160 = vector.broadcast %263 : f32 to vector<8x16xf32>
    %1161 = arith.mulf %1160, %885 : vector<8x16xf32>
    %1162 = arith.addf %1159, %1161 : vector<8x16xf32>
    %1163 = vector.broadcast %264 : f32 to vector<8x16xf32>
    %1164 = arith.mulf %1163, %918 : vector<8x16xf32>
    %1165 = arith.addf %1162, %1164 : vector<8x16xf32>
    %1166 = vector.broadcast %265 : f32 to vector<8x16xf32>
    %1167 = arith.mulf %1166, %951 : vector<8x16xf32>
    %1168 = arith.addf %1165, %1167 : vector<8x16xf32>
    %1169 = vector.broadcast %266 : f32 to vector<8x16xf32>
    %1170 = arith.mulf %1169, %984 : vector<8x16xf32>
    %1171 = arith.addf %1168, %1170 : vector<8x16xf32>
    %1172 = vector.broadcast %267 : f32 to vector<8x16xf32>
    %1173 = arith.mulf %1172, %1017 : vector<8x16xf32>
    %1174 = arith.addf %1171, %1173 : vector<8x16xf32>
    %1175 = vector.broadcast %268 : f32 to vector<8x16xf32>
    %1176 = arith.mulf %1175, %1050 : vector<8x16xf32>
    %1177 = arith.addf %1174, %1176 : vector<8x16xf32>
    %1178 = vector.broadcast %269 : f32 to vector<8x16xf32>
    %1179 = arith.mulf %1178, %1083 : vector<8x16xf32>
    %1180 = arith.addf %1177, %1179 : vector<8x16xf32>
    %cst_296 = arith.constant 0.000000e+00 : f32
    %1181 = vector.broadcast %cst_296 : f32 to vector<8x16xf32>
    %1182 = arith.maximumf %1180, %1181 : vector<8x16xf32>
    %1183 = vector.broadcast %270 : f32 to vector<8x16xf32>
    %1184 = arith.mulf %1183, %786 : vector<8x16xf32>
    %1185 = vector.broadcast %343 : f32 to vector<8x16xf32>
    %1186 = arith.addf %1185, %1184 : vector<8x16xf32>
    %1187 = vector.broadcast %271 : f32 to vector<8x16xf32>
    %1188 = arith.mulf %1187, %819 : vector<8x16xf32>
    %1189 = arith.addf %1186, %1188 : vector<8x16xf32>
    %1190 = vector.broadcast %272 : f32 to vector<8x16xf32>
    %1191 = arith.mulf %1190, %852 : vector<8x16xf32>
    %1192 = arith.addf %1189, %1191 : vector<8x16xf32>
    %1193 = vector.broadcast %273 : f32 to vector<8x16xf32>
    %1194 = arith.mulf %1193, %885 : vector<8x16xf32>
    %1195 = arith.addf %1192, %1194 : vector<8x16xf32>
    %1196 = vector.broadcast %274 : f32 to vector<8x16xf32>
    %1197 = arith.mulf %1196, %918 : vector<8x16xf32>
    %1198 = arith.addf %1195, %1197 : vector<8x16xf32>
    %1199 = vector.broadcast %275 : f32 to vector<8x16xf32>
    %1200 = arith.mulf %1199, %951 : vector<8x16xf32>
    %1201 = arith.addf %1198, %1200 : vector<8x16xf32>
    %1202 = vector.broadcast %276 : f32 to vector<8x16xf32>
    %1203 = arith.mulf %1202, %984 : vector<8x16xf32>
    %1204 = arith.addf %1201, %1203 : vector<8x16xf32>
    %1205 = vector.broadcast %277 : f32 to vector<8x16xf32>
    %1206 = arith.mulf %1205, %1017 : vector<8x16xf32>
    %1207 = arith.addf %1204, %1206 : vector<8x16xf32>
    %1208 = vector.broadcast %278 : f32 to vector<8x16xf32>
    %1209 = arith.mulf %1208, %1050 : vector<8x16xf32>
    %1210 = arith.addf %1207, %1209 : vector<8x16xf32>
    %1211 = vector.broadcast %279 : f32 to vector<8x16xf32>
    %1212 = arith.mulf %1211, %1083 : vector<8x16xf32>
    %1213 = arith.addf %1210, %1212 : vector<8x16xf32>
    %cst_297 = arith.constant 0.000000e+00 : f32
    %1214 = vector.broadcast %cst_297 : f32 to vector<8x16xf32>
    %1215 = arith.maximumf %1213, %1214 : vector<8x16xf32>
    %1216 = vector.broadcast %280 : f32 to vector<8x16xf32>
    %1217 = arith.mulf %1216, %786 : vector<8x16xf32>
    %1218 = vector.broadcast %344 : f32 to vector<8x16xf32>
    %1219 = arith.addf %1218, %1217 : vector<8x16xf32>
    %1220 = vector.broadcast %281 : f32 to vector<8x16xf32>
    %1221 = arith.mulf %1220, %819 : vector<8x16xf32>
    %1222 = arith.addf %1219, %1221 : vector<8x16xf32>
    %1223 = vector.broadcast %282 : f32 to vector<8x16xf32>
    %1224 = arith.mulf %1223, %852 : vector<8x16xf32>
    %1225 = arith.addf %1222, %1224 : vector<8x16xf32>
    %1226 = vector.broadcast %283 : f32 to vector<8x16xf32>
    %1227 = arith.mulf %1226, %885 : vector<8x16xf32>
    %1228 = arith.addf %1225, %1227 : vector<8x16xf32>
    %1229 = vector.broadcast %284 : f32 to vector<8x16xf32>
    %1230 = arith.mulf %1229, %918 : vector<8x16xf32>
    %1231 = arith.addf %1228, %1230 : vector<8x16xf32>
    %1232 = vector.broadcast %285 : f32 to vector<8x16xf32>
    %1233 = arith.mulf %1232, %951 : vector<8x16xf32>
    %1234 = arith.addf %1231, %1233 : vector<8x16xf32>
    %1235 = vector.broadcast %286 : f32 to vector<8x16xf32>
    %1236 = arith.mulf %1235, %984 : vector<8x16xf32>
    %1237 = arith.addf %1234, %1236 : vector<8x16xf32>
    %1238 = vector.broadcast %287 : f32 to vector<8x16xf32>
    %1239 = arith.mulf %1238, %1017 : vector<8x16xf32>
    %1240 = arith.addf %1237, %1239 : vector<8x16xf32>
    %1241 = vector.broadcast %288 : f32 to vector<8x16xf32>
    %1242 = arith.mulf %1241, %1050 : vector<8x16xf32>
    %1243 = arith.addf %1240, %1242 : vector<8x16xf32>
    %1244 = vector.broadcast %289 : f32 to vector<8x16xf32>
    %1245 = arith.mulf %1244, %1083 : vector<8x16xf32>
    %1246 = arith.addf %1243, %1245 : vector<8x16xf32>
    %cst_298 = arith.constant 0.000000e+00 : f32
    %1247 = vector.broadcast %cst_298 : f32 to vector<8x16xf32>
    %1248 = arith.maximumf %1246, %1247 : vector<8x16xf32>
    %1249 = vector.broadcast %290 : f32 to vector<8x16xf32>
    %1250 = arith.mulf %1249, %786 : vector<8x16xf32>
    %1251 = vector.broadcast %345 : f32 to vector<8x16xf32>
    %1252 = arith.addf %1251, %1250 : vector<8x16xf32>
    %1253 = vector.broadcast %291 : f32 to vector<8x16xf32>
    %1254 = arith.mulf %1253, %819 : vector<8x16xf32>
    %1255 = arith.addf %1252, %1254 : vector<8x16xf32>
    %1256 = vector.broadcast %292 : f32 to vector<8x16xf32>
    %1257 = arith.mulf %1256, %852 : vector<8x16xf32>
    %1258 = arith.addf %1255, %1257 : vector<8x16xf32>
    %1259 = vector.broadcast %293 : f32 to vector<8x16xf32>
    %1260 = arith.mulf %1259, %885 : vector<8x16xf32>
    %1261 = arith.addf %1258, %1260 : vector<8x16xf32>
    %1262 = vector.broadcast %294 : f32 to vector<8x16xf32>
    %1263 = arith.mulf %1262, %918 : vector<8x16xf32>
    %1264 = arith.addf %1261, %1263 : vector<8x16xf32>
    %1265 = vector.broadcast %295 : f32 to vector<8x16xf32>
    %1266 = arith.mulf %1265, %951 : vector<8x16xf32>
    %1267 = arith.addf %1264, %1266 : vector<8x16xf32>
    %1268 = vector.broadcast %296 : f32 to vector<8x16xf32>
    %1269 = arith.mulf %1268, %984 : vector<8x16xf32>
    %1270 = arith.addf %1267, %1269 : vector<8x16xf32>
    %1271 = vector.broadcast %297 : f32 to vector<8x16xf32>
    %1272 = arith.mulf %1271, %1017 : vector<8x16xf32>
    %1273 = arith.addf %1270, %1272 : vector<8x16xf32>
    %1274 = vector.broadcast %298 : f32 to vector<8x16xf32>
    %1275 = arith.mulf %1274, %1050 : vector<8x16xf32>
    %1276 = arith.addf %1273, %1275 : vector<8x16xf32>
    %1277 = vector.broadcast %299 : f32 to vector<8x16xf32>
    %1278 = arith.mulf %1277, %1083 : vector<8x16xf32>
    %1279 = arith.addf %1276, %1278 : vector<8x16xf32>
    %cst_299 = arith.constant 0.000000e+00 : f32
    %1280 = vector.broadcast %cst_299 : f32 to vector<8x16xf32>
    %1281 = arith.maximumf %1279, %1280 : vector<8x16xf32>
    %1282 = vector.broadcast %300 : f32 to vector<8x16xf32>
    %1283 = arith.mulf %1282, %786 : vector<8x16xf32>
    %1284 = vector.broadcast %346 : f32 to vector<8x16xf32>
    %1285 = arith.addf %1284, %1283 : vector<8x16xf32>
    %1286 = vector.broadcast %301 : f32 to vector<8x16xf32>
    %1287 = arith.mulf %1286, %819 : vector<8x16xf32>
    %1288 = arith.addf %1285, %1287 : vector<8x16xf32>
    %1289 = vector.broadcast %302 : f32 to vector<8x16xf32>
    %1290 = arith.mulf %1289, %852 : vector<8x16xf32>
    %1291 = arith.addf %1288, %1290 : vector<8x16xf32>
    %1292 = vector.broadcast %303 : f32 to vector<8x16xf32>
    %1293 = arith.mulf %1292, %885 : vector<8x16xf32>
    %1294 = arith.addf %1291, %1293 : vector<8x16xf32>
    %1295 = vector.broadcast %304 : f32 to vector<8x16xf32>
    %1296 = arith.mulf %1295, %918 : vector<8x16xf32>
    %1297 = arith.addf %1294, %1296 : vector<8x16xf32>
    %1298 = vector.broadcast %305 : f32 to vector<8x16xf32>
    %1299 = arith.mulf %1298, %951 : vector<8x16xf32>
    %1300 = arith.addf %1297, %1299 : vector<8x16xf32>
    %1301 = vector.broadcast %306 : f32 to vector<8x16xf32>
    %1302 = arith.mulf %1301, %984 : vector<8x16xf32>
    %1303 = arith.addf %1300, %1302 : vector<8x16xf32>
    %1304 = vector.broadcast %307 : f32 to vector<8x16xf32>
    %1305 = arith.mulf %1304, %1017 : vector<8x16xf32>
    %1306 = arith.addf %1303, %1305 : vector<8x16xf32>
    %1307 = vector.broadcast %308 : f32 to vector<8x16xf32>
    %1308 = arith.mulf %1307, %1050 : vector<8x16xf32>
    %1309 = arith.addf %1306, %1308 : vector<8x16xf32>
    %1310 = vector.broadcast %309 : f32 to vector<8x16xf32>
    %1311 = arith.mulf %1310, %1083 : vector<8x16xf32>
    %1312 = arith.addf %1309, %1311 : vector<8x16xf32>
    %cst_300 = arith.constant 0.000000e+00 : f32
    %1313 = vector.broadcast %cst_300 : f32 to vector<8x16xf32>
    %1314 = arith.maximumf %1312, %1313 : vector<8x16xf32>
    %1315 = vector.broadcast %310 : f32 to vector<8x16xf32>
    %1316 = arith.mulf %1315, %786 : vector<8x16xf32>
    %1317 = vector.broadcast %347 : f32 to vector<8x16xf32>
    %1318 = arith.addf %1317, %1316 : vector<8x16xf32>
    %1319 = vector.broadcast %311 : f32 to vector<8x16xf32>
    %1320 = arith.mulf %1319, %819 : vector<8x16xf32>
    %1321 = arith.addf %1318, %1320 : vector<8x16xf32>
    %1322 = vector.broadcast %312 : f32 to vector<8x16xf32>
    %1323 = arith.mulf %1322, %852 : vector<8x16xf32>
    %1324 = arith.addf %1321, %1323 : vector<8x16xf32>
    %1325 = vector.broadcast %313 : f32 to vector<8x16xf32>
    %1326 = arith.mulf %1325, %885 : vector<8x16xf32>
    %1327 = arith.addf %1324, %1326 : vector<8x16xf32>
    %1328 = vector.broadcast %314 : f32 to vector<8x16xf32>
    %1329 = arith.mulf %1328, %918 : vector<8x16xf32>
    %1330 = arith.addf %1327, %1329 : vector<8x16xf32>
    %1331 = vector.broadcast %315 : f32 to vector<8x16xf32>
    %1332 = arith.mulf %1331, %951 : vector<8x16xf32>
    %1333 = arith.addf %1330, %1332 : vector<8x16xf32>
    %1334 = vector.broadcast %316 : f32 to vector<8x16xf32>
    %1335 = arith.mulf %1334, %984 : vector<8x16xf32>
    %1336 = arith.addf %1333, %1335 : vector<8x16xf32>
    %1337 = vector.broadcast %317 : f32 to vector<8x16xf32>
    %1338 = arith.mulf %1337, %1017 : vector<8x16xf32>
    %1339 = arith.addf %1336, %1338 : vector<8x16xf32>
    %1340 = vector.broadcast %318 : f32 to vector<8x16xf32>
    %1341 = arith.mulf %1340, %1050 : vector<8x16xf32>
    %1342 = arith.addf %1339, %1341 : vector<8x16xf32>
    %1343 = vector.broadcast %319 : f32 to vector<8x16xf32>
    %1344 = arith.mulf %1343, %1083 : vector<8x16xf32>
    %1345 = arith.addf %1342, %1344 : vector<8x16xf32>
    %cst_301 = arith.constant 0.000000e+00 : f32
    %1346 = vector.broadcast %cst_301 : f32 to vector<8x16xf32>
    %1347 = arith.maximumf %1345, %1346 : vector<8x16xf32>
    %1348 = vector.broadcast %320 : f32 to vector<8x16xf32>
    %1349 = arith.mulf %1348, %786 : vector<8x16xf32>
    %1350 = vector.broadcast %348 : f32 to vector<8x16xf32>
    %1351 = arith.addf %1350, %1349 : vector<8x16xf32>
    %1352 = vector.broadcast %321 : f32 to vector<8x16xf32>
    %1353 = arith.mulf %1352, %819 : vector<8x16xf32>
    %1354 = arith.addf %1351, %1353 : vector<8x16xf32>
    %1355 = vector.broadcast %322 : f32 to vector<8x16xf32>
    %1356 = arith.mulf %1355, %852 : vector<8x16xf32>
    %1357 = arith.addf %1354, %1356 : vector<8x16xf32>
    %1358 = vector.broadcast %323 : f32 to vector<8x16xf32>
    %1359 = arith.mulf %1358, %885 : vector<8x16xf32>
    %1360 = arith.addf %1357, %1359 : vector<8x16xf32>
    %1361 = vector.broadcast %324 : f32 to vector<8x16xf32>
    %1362 = arith.mulf %1361, %918 : vector<8x16xf32>
    %1363 = arith.addf %1360, %1362 : vector<8x16xf32>
    %1364 = vector.broadcast %325 : f32 to vector<8x16xf32>
    %1365 = arith.mulf %1364, %951 : vector<8x16xf32>
    %1366 = arith.addf %1363, %1365 : vector<8x16xf32>
    %1367 = vector.broadcast %326 : f32 to vector<8x16xf32>
    %1368 = arith.mulf %1367, %984 : vector<8x16xf32>
    %1369 = arith.addf %1366, %1368 : vector<8x16xf32>
    %1370 = vector.broadcast %327 : f32 to vector<8x16xf32>
    %1371 = arith.mulf %1370, %1017 : vector<8x16xf32>
    %1372 = arith.addf %1369, %1371 : vector<8x16xf32>
    %1373 = vector.broadcast %328 : f32 to vector<8x16xf32>
    %1374 = arith.mulf %1373, %1050 : vector<8x16xf32>
    %1375 = arith.addf %1372, %1374 : vector<8x16xf32>
    %1376 = vector.broadcast %329 : f32 to vector<8x16xf32>
    %1377 = arith.mulf %1376, %1083 : vector<8x16xf32>
    %1378 = arith.addf %1375, %1377 : vector<8x16xf32>
    %cst_302 = arith.constant 0.000000e+00 : f32
    %1379 = vector.broadcast %cst_302 : f32 to vector<8x16xf32>
    %1380 = arith.maximumf %1378, %1379 : vector<8x16xf32>
    %1381 = vector.broadcast %330 : f32 to vector<8x16xf32>
    %1382 = arith.mulf %1381, %786 : vector<8x16xf32>
    %1383 = vector.broadcast %349 : f32 to vector<8x16xf32>
    %1384 = arith.addf %1383, %1382 : vector<8x16xf32>
    %1385 = vector.broadcast %331 : f32 to vector<8x16xf32>
    %1386 = arith.mulf %1385, %819 : vector<8x16xf32>
    %1387 = arith.addf %1384, %1386 : vector<8x16xf32>
    %1388 = vector.broadcast %332 : f32 to vector<8x16xf32>
    %1389 = arith.mulf %1388, %852 : vector<8x16xf32>
    %1390 = arith.addf %1387, %1389 : vector<8x16xf32>
    %1391 = vector.broadcast %333 : f32 to vector<8x16xf32>
    %1392 = arith.mulf %1391, %885 : vector<8x16xf32>
    %1393 = arith.addf %1390, %1392 : vector<8x16xf32>
    %1394 = vector.broadcast %334 : f32 to vector<8x16xf32>
    %1395 = arith.mulf %1394, %918 : vector<8x16xf32>
    %1396 = arith.addf %1393, %1395 : vector<8x16xf32>
    %1397 = vector.broadcast %335 : f32 to vector<8x16xf32>
    %1398 = arith.mulf %1397, %951 : vector<8x16xf32>
    %1399 = arith.addf %1396, %1398 : vector<8x16xf32>
    %1400 = vector.broadcast %336 : f32 to vector<8x16xf32>
    %1401 = arith.mulf %1400, %984 : vector<8x16xf32>
    %1402 = arith.addf %1399, %1401 : vector<8x16xf32>
    %1403 = vector.broadcast %337 : f32 to vector<8x16xf32>
    %1404 = arith.mulf %1403, %1017 : vector<8x16xf32>
    %1405 = arith.addf %1402, %1404 : vector<8x16xf32>
    %1406 = vector.broadcast %338 : f32 to vector<8x16xf32>
    %1407 = arith.mulf %1406, %1050 : vector<8x16xf32>
    %1408 = arith.addf %1405, %1407 : vector<8x16xf32>
    %1409 = vector.broadcast %339 : f32 to vector<8x16xf32>
    %1410 = arith.mulf %1409, %1083 : vector<8x16xf32>
    %1411 = arith.addf %1408, %1410 : vector<8x16xf32>
    %cst_303 = arith.constant 0.000000e+00 : f32
    %1412 = vector.broadcast %cst_303 : f32 to vector<8x16xf32>
    %1413 = arith.maximumf %1411, %1412 : vector<8x16xf32>
    %1414 = vector.broadcast %350 : f32 to vector<8x16xf32>
    %1415 = arith.mulf %1414, %1116 : vector<8x16xf32>
    %1416 = vector.broadcast %360 : f32 to vector<8x16xf32>
    %1417 = arith.addf %1416, %1415 : vector<8x16xf32>
    %1418 = vector.broadcast %351 : f32 to vector<8x16xf32>
    %1419 = arith.mulf %1418, %1149 : vector<8x16xf32>
    %1420 = arith.addf %1417, %1419 : vector<8x16xf32>
    %1421 = vector.broadcast %352 : f32 to vector<8x16xf32>
    %1422 = arith.mulf %1421, %1182 : vector<8x16xf32>
    %1423 = arith.addf %1420, %1422 : vector<8x16xf32>
    %1424 = vector.broadcast %353 : f32 to vector<8x16xf32>
    %1425 = arith.mulf %1424, %1215 : vector<8x16xf32>
    %1426 = arith.addf %1423, %1425 : vector<8x16xf32>
    %1427 = vector.broadcast %354 : f32 to vector<8x16xf32>
    %1428 = arith.mulf %1427, %1248 : vector<8x16xf32>
    %1429 = arith.addf %1426, %1428 : vector<8x16xf32>
    %1430 = vector.broadcast %355 : f32 to vector<8x16xf32>
    %1431 = arith.mulf %1430, %1281 : vector<8x16xf32>
    %1432 = arith.addf %1429, %1431 : vector<8x16xf32>
    %1433 = vector.broadcast %356 : f32 to vector<8x16xf32>
    %1434 = arith.mulf %1433, %1314 : vector<8x16xf32>
    %1435 = arith.addf %1432, %1434 : vector<8x16xf32>
    %1436 = vector.broadcast %357 : f32 to vector<8x16xf32>
    %1437 = arith.mulf %1436, %1347 : vector<8x16xf32>
    %1438 = arith.addf %1435, %1437 : vector<8x16xf32>
    %1439 = vector.broadcast %358 : f32 to vector<8x16xf32>
    %1440 = arith.mulf %1439, %1380 : vector<8x16xf32>
    %1441 = arith.addf %1438, %1440 : vector<8x16xf32>
    %1442 = vector.broadcast %359 : f32 to vector<8x16xf32>
    %1443 = arith.mulf %1442, %1413 : vector<8x16xf32>
    %1444 = arith.addf %1441, %1443 : vector<8x16xf32>
    %c0_304 = arith.constant 0 : index
    %c0_305 = arith.constant 0 : index
    %1445 = vector.load %arg1[%c0_304, %c0_305] : memref<16x16xf32, #tpu.memory_space<vmem>>, vector<8x16xf32>
    tpu.vector_store %arg1[%c0_304, %c0_305], %1444 {strides = array<i32>} : memref<16x16xf32, #tpu.memory_space<vmem>>, vector<8x16xf32>,
    %cst_306 = arith.constant dense<0.000000e+00> : vector<8xf32>
    %1446 = vector.multi_reduction <add>, %1444, %cst_306 [1] : vector<8x16xf32> to vector<8xf32>
    %1447 = vector.shape_cast %1446 : vector<8xf32> to vector<8x1xf32>
    %1448 = arith.addf %361, %1447 : vector<8x1xf32>
    %1449 = arith.mulf %1444, %1444 : vector<8x16xf32>
    %cst_307 = arith.constant dense<0.000000e+00> : vector<8xf32>
    %1450 = vector.multi_reduction <add>, %1449, %cst_307 [1] : vector<8x16xf32> to vector<8xf32>
    %1451 = vector.shape_cast %1450 : vector<8xf32> to vector<8x1xf32>
    %1452 = arith.addf %362, %1451 : vector<8x1xf32>
    %cst_308 = arith.constant 6.250000e-02 : f32
    %1453 = vector.broadcast %cst_308 : f32 to vector<8x1xf32>
    %1454 = arith.mulf %1448, %1453 : vector<8x1xf32>
    %1455 = arith.mulf %1448, %1454 : vector<8x1xf32>
    %1456 = arith.subf %1452, %1455 : vector<8x1xf32>
    %1457 = math.rsqrt %1456 : vector<8x1xf32>
    %c0_309 = arith.constant 0 : index
    %c0_310 = arith.constant 0 : index
    %1458 = vector.load %arg1[%c0_309, %c0_310] : memref<16x16xf32, #tpu.memory_space<vmem>>, vector<8x16xf32>
    %1459 = vector.broadcast %1454 : vector<8x1xf32> to vector<8x16xf32>
    %1460 = arith.subf %1458, %1459 : vector<8x16xf32>
    %1461 = vector.broadcast %1457 : vector<8x1xf32> to vector<8x16xf32>
    %1462 = arith.mulf %1460, %1461 : vector<8x16xf32>
    %c0_311 = arith.constant 0 : index
    %c0_312 = arith.constant 0 : index
    %1463 = vector.load %arg1[%c0_311, %c0_312] : memref<16x16xf32, #tpu.memory_space<vmem>>, vector<8x16xf32>
    tpu.vector_store %arg1[%c0_311, %c0_312], %1462 {strides = array<i32>} : memref<16x16xf32, #tpu.memory_space<vmem>>, vector<8x16xf32>,
    %cst_313 = arith.constant 0.000000e+00 : f32
    %1464 = vector.broadcast %cst_313 : f32 to vector<8x1xf32>
    %cst_314 = arith.constant 0.000000e+00 : f32
    %1465 = vector.broadcast %cst_314 : f32 to vector<8x1xf32>
    %c8_315 = arith.constant 8 : index
    %c0_316 = arith.constant 0 : index
    %1466 = vector.load %arg1[%c8_315, %c0_316] : memref<16x16xf32, #tpu.memory_space<vmem>>, vector<8x16xf32>
    %1467 = vector.broadcast %0 : f32 to vector<8x16xf32>
    %1468 = arith.mulf %1467, %1466 : vector<8x16xf32>
    %1469 = vector.broadcast %10 : f32 to vector<8x16xf32>
    %1470 = arith.addf %1468, %1469 : vector<8x16xf32>
    %cst_317 = arith.constant 0.000000e+00 : f32
    %1471 = vector.broadcast %cst_317 : f32 to vector<8x16xf32>
    %1472 = arith.maximumf %1470, %1471 : vector<8x16xf32>
    %1473 = vector.broadcast %1 : f32 to vector<8x16xf32>
    %1474 = arith.mulf %1473, %1466 : vector<8x16xf32>
    %1475 = vector.broadcast %11 : f32 to vector<8x16xf32>
    %1476 = arith.addf %1474, %1475 : vector<8x16xf32>
    %cst_318 = arith.constant 0.000000e+00 : f32
    %1477 = vector.broadcast %cst_318 : f32 to vector<8x16xf32>
    %1478 = arith.maximumf %1476, %1477 : vector<8x16xf32>
    %1479 = vector.broadcast %2 : f32 to vector<8x16xf32>
    %1480 = arith.mulf %1479, %1466 : vector<8x16xf32>
    %1481 = vector.broadcast %12 : f32 to vector<8x16xf32>
    %1482 = arith.addf %1480, %1481 : vector<8x16xf32>
    %cst_319 = arith.constant 0.000000e+00 : f32
    %1483 = vector.broadcast %cst_319 : f32 to vector<8x16xf32>
    %1484 = arith.maximumf %1482, %1483 : vector<8x16xf32>
    %1485 = vector.broadcast %3 : f32 to vector<8x16xf32>
    %1486 = arith.mulf %1485, %1466 : vector<8x16xf32>
    %1487 = vector.broadcast %13 : f32 to vector<8x16xf32>
    %1488 = arith.addf %1486, %1487 : vector<8x16xf32>
    %cst_320 = arith.constant 0.000000e+00 : f32
    %1489 = vector.broadcast %cst_320 : f32 to vector<8x16xf32>
    %1490 = arith.maximumf %1488, %1489 : vector<8x16xf32>
    %1491 = vector.broadcast %4 : f32 to vector<8x16xf32>
    %1492 = arith.mulf %1491, %1466 : vector<8x16xf32>
    %1493 = vector.broadcast %14 : f32 to vector<8x16xf32>
    %1494 = arith.addf %1492, %1493 : vector<8x16xf32>
    %cst_321 = arith.constant 0.000000e+00 : f32
    %1495 = vector.broadcast %cst_321 : f32 to vector<8x16xf32>
    %1496 = arith.maximumf %1494, %1495 : vector<8x16xf32>
    %1497 = vector.broadcast %5 : f32 to vector<8x16xf32>
    %1498 = arith.mulf %1497, %1466 : vector<8x16xf32>
    %1499 = vector.broadcast %15 : f32 to vector<8x16xf32>
    %1500 = arith.addf %1498, %1499 : vector<8x16xf32>
    %cst_322 = arith.constant 0.000000e+00 : f32
    %1501 = vector.broadcast %cst_322 : f32 to vector<8x16xf32>
    %1502 = arith.maximumf %1500, %1501 : vector<8x16xf32>
    %1503 = vector.broadcast %6 : f32 to vector<8x16xf32>
    %1504 = arith.mulf %1503, %1466 : vector<8x16xf32>
    %1505 = vector.broadcast %16 : f32 to vector<8x16xf32>
    %1506 = arith.addf %1504, %1505 : vector<8x16xf32>
    %cst_323 = arith.constant 0.000000e+00 : f32
    %1507 = vector.broadcast %cst_323 : f32 to vector<8x16xf32>
    %1508 = arith.maximumf %1506, %1507 : vector<8x16xf32>
    %1509 = vector.broadcast %7 : f32 to vector<8x16xf32>
    %1510 = arith.mulf %1509, %1466 : vector<8x16xf32>
    %1511 = vector.broadcast %17 : f32 to vector<8x16xf32>
    %1512 = arith.addf %1510, %1511 : vector<8x16xf32>
    %cst_324 = arith.constant 0.000000e+00 : f32
    %1513 = vector.broadcast %cst_324 : f32 to vector<8x16xf32>
    %1514 = arith.maximumf %1512, %1513 : vector<8x16xf32>
    %1515 = vector.broadcast %8 : f32 to vector<8x16xf32>
    %1516 = arith.mulf %1515, %1466 : vector<8x16xf32>
    %1517 = vector.broadcast %18 : f32 to vector<8x16xf32>
    %1518 = arith.addf %1516, %1517 : vector<8x16xf32>
    %cst_325 = arith.constant 0.000000e+00 : f32
    %1519 = vector.broadcast %cst_325 : f32 to vector<8x16xf32>
    %1520 = arith.maximumf %1518, %1519 : vector<8x16xf32>
    %1521 = vector.broadcast %9 : f32 to vector<8x16xf32>
    %1522 = arith.mulf %1521, %1466 : vector<8x16xf32>
    %1523 = vector.broadcast %19 : f32 to vector<8x16xf32>
    %1524 = arith.addf %1522, %1523 : vector<8x16xf32>
    %cst_326 = arith.constant 0.000000e+00 : f32
    %1525 = vector.broadcast %cst_326 : f32 to vector<8x16xf32>
    %1526 = arith.maximumf %1524, %1525 : vector<8x16xf32>
    %1527 = vector.broadcast %20 : f32 to vector<8x16xf32>
    %1528 = arith.mulf %1527, %1472 : vector<8x16xf32>
    %1529 = vector.broadcast %120 : f32 to vector<8x16xf32>
    %1530 = arith.addf %1529, %1528 : vector<8x16xf32>
    %1531 = vector.broadcast %21 : f32 to vector<8x16xf32>
    %1532 = arith.mulf %1531, %1478 : vector<8x16xf32>
    %1533 = arith.addf %1530, %1532 : vector<8x16xf32>
    %1534 = vector.broadcast %22 : f32 to vector<8x16xf32>
    %1535 = arith.mulf %1534, %1484 : vector<8x16xf32>
    %1536 = arith.addf %1533, %1535 : vector<8x16xf32>
    %1537 = vector.broadcast %23 : f32 to vector<8x16xf32>
    %1538 = arith.mulf %1537, %1490 : vector<8x16xf32>
    %1539 = arith.addf %1536, %1538 : vector<8x16xf32>
    %1540 = vector.broadcast %24 : f32 to vector<8x16xf32>
    %1541 = arith.mulf %1540, %1496 : vector<8x16xf32>
    %1542 = arith.addf %1539, %1541 : vector<8x16xf32>
    %1543 = vector.broadcast %25 : f32 to vector<8x16xf32>
    %1544 = arith.mulf %1543, %1502 : vector<8x16xf32>
    %1545 = arith.addf %1542, %1544 : vector<8x16xf32>
    %1546 = vector.broadcast %26 : f32 to vector<8x16xf32>
    %1547 = arith.mulf %1546, %1508 : vector<8x16xf32>
    %1548 = arith.addf %1545, %1547 : vector<8x16xf32>
    %1549 = vector.broadcast %27 : f32 to vector<8x16xf32>
    %1550 = arith.mulf %1549, %1514 : vector<8x16xf32>
    %1551 = arith.addf %1548, %1550 : vector<8x16xf32>
    %1552 = vector.broadcast %28 : f32 to vector<8x16xf32>
    %1553 = arith.mulf %1552, %1520 : vector<8x16xf32>
    %1554 = arith.addf %1551, %1553 : vector<8x16xf32>
    %1555 = vector.broadcast %29 : f32 to vector<8x16xf32>
    %1556 = arith.mulf %1555, %1526 : vector<8x16xf32>
    %1557 = arith.addf %1554, %1556 : vector<8x16xf32>
    %cst_327 = arith.constant 0.000000e+00 : f32
    %1558 = vector.broadcast %cst_327 : f32 to vector<8x16xf32>
    %1559 = arith.maximumf %1557, %1558 : vector<8x16xf32>
    %1560 = vector.broadcast %30 : f32 to vector<8x16xf32>
    %1561 = arith.mulf %1560, %1472 : vector<8x16xf32>
    %1562 = vector.broadcast %121 : f32 to vector<8x16xf32>
    %1563 = arith.addf %1562, %1561 : vector<8x16xf32>
    %1564 = vector.broadcast %31 : f32 to vector<8x16xf32>
    %1565 = arith.mulf %1564, %1478 : vector<8x16xf32>
    %1566 = arith.addf %1563, %1565 : vector<8x16xf32>
    %1567 = vector.broadcast %32 : f32 to vector<8x16xf32>
    %1568 = arith.mulf %1567, %1484 : vector<8x16xf32>
    %1569 = arith.addf %1566, %1568 : vector<8x16xf32>
    %1570 = vector.broadcast %33 : f32 to vector<8x16xf32>
    %1571 = arith.mulf %1570, %1490 : vector<8x16xf32>
    %1572 = arith.addf %1569, %1571 : vector<8x16xf32>
    %1573 = vector.broadcast %34 : f32 to vector<8x16xf32>
    %1574 = arith.mulf %1573, %1496 : vector<8x16xf32>
    %1575 = arith.addf %1572, %1574 : vector<8x16xf32>
    %1576 = vector.broadcast %35 : f32 to vector<8x16xf32>
    %1577 = arith.mulf %1576, %1502 : vector<8x16xf32>
    %1578 = arith.addf %1575, %1577 : vector<8x16xf32>
    %1579 = vector.broadcast %36 : f32 to vector<8x16xf32>
    %1580 = arith.mulf %1579, %1508 : vector<8x16xf32>
    %1581 = arith.addf %1578, %1580 : vector<8x16xf32>
    %1582 = vector.broadcast %37 : f32 to vector<8x16xf32>
    %1583 = arith.mulf %1582, %1514 : vector<8x16xf32>
    %1584 = arith.addf %1581, %1583 : vector<8x16xf32>
    %1585 = vector.broadcast %38 : f32 to vector<8x16xf32>
    %1586 = arith.mulf %1585, %1520 : vector<8x16xf32>
    %1587 = arith.addf %1584, %1586 : vector<8x16xf32>
    %1588 = vector.broadcast %39 : f32 to vector<8x16xf32>
    %1589 = arith.mulf %1588, %1526 : vector<8x16xf32>
    %1590 = arith.addf %1587, %1589 : vector<8x16xf32>
    %cst_328 = arith.constant 0.000000e+00 : f32
    %1591 = vector.broadcast %cst_328 : f32 to vector<8x16xf32>
    %1592 = arith.maximumf %1590, %1591 : vector<8x16xf32>
    %1593 = vector.broadcast %40 : f32 to vector<8x16xf32>
    %1594 = arith.mulf %1593, %1472 : vector<8x16xf32>
    %1595 = vector.broadcast %122 : f32 to vector<8x16xf32>
    %1596 = arith.addf %1595, %1594 : vector<8x16xf32>
    %1597 = vector.broadcast %41 : f32 to vector<8x16xf32>
    %1598 = arith.mulf %1597, %1478 : vector<8x16xf32>
    %1599 = arith.addf %1596, %1598 : vector<8x16xf32>
    %1600 = vector.broadcast %42 : f32 to vector<8x16xf32>
    %1601 = arith.mulf %1600, %1484 : vector<8x16xf32>
    %1602 = arith.addf %1599, %1601 : vector<8x16xf32>
    %1603 = vector.broadcast %43 : f32 to vector<8x16xf32>
    %1604 = arith.mulf %1603, %1490 : vector<8x16xf32>
    %1605 = arith.addf %1602, %1604 : vector<8x16xf32>
    %1606 = vector.broadcast %44 : f32 to vector<8x16xf32>
    %1607 = arith.mulf %1606, %1496 : vector<8x16xf32>
    %1608 = arith.addf %1605, %1607 : vector<8x16xf32>
    %1609 = vector.broadcast %45 : f32 to vector<8x16xf32>
    %1610 = arith.mulf %1609, %1502 : vector<8x16xf32>
    %1611 = arith.addf %1608, %1610 : vector<8x16xf32>
    %1612 = vector.broadcast %46 : f32 to vector<8x16xf32>
    %1613 = arith.mulf %1612, %1508 : vector<8x16xf32>
    %1614 = arith.addf %1611, %1613 : vector<8x16xf32>
    %1615 = vector.broadcast %47 : f32 to vector<8x16xf32>
    %1616 = arith.mulf %1615, %1514 : vector<8x16xf32>
    %1617 = arith.addf %1614, %1616 : vector<8x16xf32>
    %1618 = vector.broadcast %48 : f32 to vector<8x16xf32>
    %1619 = arith.mulf %1618, %1520 : vector<8x16xf32>
    %1620 = arith.addf %1617, %1619 : vector<8x16xf32>
    %1621 = vector.broadcast %49 : f32 to vector<8x16xf32>
    %1622 = arith.mulf %1621, %1526 : vector<8x16xf32>
    %1623 = arith.addf %1620, %1622 : vector<8x16xf32>
    %cst_329 = arith.constant 0.000000e+00 : f32
    %1624 = vector.broadcast %cst_329 : f32 to vector<8x16xf32>
    %1625 = arith.maximumf %1623, %1624 : vector<8x16xf32>
    %1626 = vector.broadcast %50 : f32 to vector<8x16xf32>
    %1627 = arith.mulf %1626, %1472 : vector<8x16xf32>
    %1628 = vector.broadcast %123 : f32 to vector<8x16xf32>
    %1629 = arith.addf %1628, %1627 : vector<8x16xf32>
    %1630 = vector.broadcast %51 : f32 to vector<8x16xf32>
    %1631 = arith.mulf %1630, %1478 : vector<8x16xf32>
    %1632 = arith.addf %1629, %1631 : vector<8x16xf32>
    %1633 = vector.broadcast %52 : f32 to vector<8x16xf32>
    %1634 = arith.mulf %1633, %1484 : vector<8x16xf32>
    %1635 = arith.addf %1632, %1634 : vector<8x16xf32>
    %1636 = vector.broadcast %53 : f32 to vector<8x16xf32>
    %1637 = arith.mulf %1636, %1490 : vector<8x16xf32>
    %1638 = arith.addf %1635, %1637 : vector<8x16xf32>
    %1639 = vector.broadcast %54 : f32 to vector<8x16xf32>
    %1640 = arith.mulf %1639, %1496 : vector<8x16xf32>
    %1641 = arith.addf %1638, %1640 : vector<8x16xf32>
    %1642 = vector.broadcast %55 : f32 to vector<8x16xf32>
    %1643 = arith.mulf %1642, %1502 : vector<8x16xf32>
    %1644 = arith.addf %1641, %1643 : vector<8x16xf32>
    %1645 = vector.broadcast %56 : f32 to vector<8x16xf32>
    %1646 = arith.mulf %1645, %1508 : vector<8x16xf32>
    %1647 = arith.addf %1644, %1646 : vector<8x16xf32>
    %1648 = vector.broadcast %57 : f32 to vector<8x16xf32>
    %1649 = arith.mulf %1648, %1514 : vector<8x16xf32>
    %1650 = arith.addf %1647, %1649 : vector<8x16xf32>
    %1651 = vector.broadcast %58 : f32 to vector<8x16xf32>
    %1652 = arith.mulf %1651, %1520 : vector<8x16xf32>
    %1653 = arith.addf %1650, %1652 : vector<8x16xf32>
    %1654 = vector.broadcast %59 : f32 to vector<8x16xf32>
    %1655 = arith.mulf %1654, %1526 : vector<8x16xf32>
    %1656 = arith.addf %1653, %1655 : vector<8x16xf32>
    %cst_330 = arith.constant 0.000000e+00 : f32
    %1657 = vector.broadcast %cst_330 : f32 to vector<8x16xf32>
    %1658 = arith.maximumf %1656, %1657 : vector<8x16xf32>
    %1659 = vector.broadcast %60 : f32 to vector<8x16xf32>
    %1660 = arith.mulf %1659, %1472 : vector<8x16xf32>
    %1661 = vector.broadcast %124 : f32 to vector<8x16xf32>
    %1662 = arith.addf %1661, %1660 : vector<8x16xf32>
    %1663 = vector.broadcast %61 : f32 to vector<8x16xf32>
    %1664 = arith.mulf %1663, %1478 : vector<8x16xf32>
    %1665 = arith.addf %1662, %1664 : vector<8x16xf32>
    %1666 = vector.broadcast %62 : f32 to vector<8x16xf32>
    %1667 = arith.mulf %1666, %1484 : vector<8x16xf32>
    %1668 = arith.addf %1665, %1667 : vector<8x16xf32>
    %1669 = vector.broadcast %63 : f32 to vector<8x16xf32>
    %1670 = arith.mulf %1669, %1490 : vector<8x16xf32>
    %1671 = arith.addf %1668, %1670 : vector<8x16xf32>
    %1672 = vector.broadcast %64 : f32 to vector<8x16xf32>
    %1673 = arith.mulf %1672, %1496 : vector<8x16xf32>
    %1674 = arith.addf %1671, %1673 : vector<8x16xf32>
    %1675 = vector.broadcast %65 : f32 to vector<8x16xf32>
    %1676 = arith.mulf %1675, %1502 : vector<8x16xf32>
    %1677 = arith.addf %1674, %1676 : vector<8x16xf32>
    %1678 = vector.broadcast %66 : f32 to vector<8x16xf32>
    %1679 = arith.mulf %1678, %1508 : vector<8x16xf32>
    %1680 = arith.addf %1677, %1679 : vector<8x16xf32>
    %1681 = vector.broadcast %67 : f32 to vector<8x16xf32>
    %1682 = arith.mulf %1681, %1514 : vector<8x16xf32>
    %1683 = arith.addf %1680, %1682 : vector<8x16xf32>
    %1684 = vector.broadcast %68 : f32 to vector<8x16xf32>
    %1685 = arith.mulf %1684, %1520 : vector<8x16xf32>
    %1686 = arith.addf %1683, %1685 : vector<8x16xf32>
    %1687 = vector.broadcast %69 : f32 to vector<8x16xf32>
    %1688 = arith.mulf %1687, %1526 : vector<8x16xf32>
    %1689 = arith.addf %1686, %1688 : vector<8x16xf32>
    %cst_331 = arith.constant 0.000000e+00 : f32
    %1690 = vector.broadcast %cst_331 : f32 to vector<8x16xf32>
    %1691 = arith.maximumf %1689, %1690 : vector<8x16xf32>
    %1692 = vector.broadcast %70 : f32 to vector<8x16xf32>
    %1693 = arith.mulf %1692, %1472 : vector<8x16xf32>
    %1694 = vector.broadcast %125 : f32 to vector<8x16xf32>
    %1695 = arith.addf %1694, %1693 : vector<8x16xf32>
    %1696 = vector.broadcast %71 : f32 to vector<8x16xf32>
    %1697 = arith.mulf %1696, %1478 : vector<8x16xf32>
    %1698 = arith.addf %1695, %1697 : vector<8x16xf32>
    %1699 = vector.broadcast %72 : f32 to vector<8x16xf32>
    %1700 = arith.mulf %1699, %1484 : vector<8x16xf32>
    %1701 = arith.addf %1698, %1700 : vector<8x16xf32>
    %1702 = vector.broadcast %73 : f32 to vector<8x16xf32>
    %1703 = arith.mulf %1702, %1490 : vector<8x16xf32>
    %1704 = arith.addf %1701, %1703 : vector<8x16xf32>
    %1705 = vector.broadcast %74 : f32 to vector<8x16xf32>
    %1706 = arith.mulf %1705, %1496 : vector<8x16xf32>
    %1707 = arith.addf %1704, %1706 : vector<8x16xf32>
    %1708 = vector.broadcast %75 : f32 to vector<8x16xf32>
    %1709 = arith.mulf %1708, %1502 : vector<8x16xf32>
    %1710 = arith.addf %1707, %1709 : vector<8x16xf32>
    %1711 = vector.broadcast %76 : f32 to vector<8x16xf32>
    %1712 = arith.mulf %1711, %1508 : vector<8x16xf32>
    %1713 = arith.addf %1710, %1712 : vector<8x16xf32>
    %1714 = vector.broadcast %77 : f32 to vector<8x16xf32>
    %1715 = arith.mulf %1714, %1514 : vector<8x16xf32>
    %1716 = arith.addf %1713, %1715 : vector<8x16xf32>
    %1717 = vector.broadcast %78 : f32 to vector<8x16xf32>
    %1718 = arith.mulf %1717, %1520 : vector<8x16xf32>
    %1719 = arith.addf %1716, %1718 : vector<8x16xf32>
    %1720 = vector.broadcast %79 : f32 to vector<8x16xf32>
    %1721 = arith.mulf %1720, %1526 : vector<8x16xf32>
    %1722 = arith.addf %1719, %1721 : vector<8x16xf32>
    %cst_332 = arith.constant 0.000000e+00 : f32
    %1723 = vector.broadcast %cst_332 : f32 to vector<8x16xf32>
    %1724 = arith.maximumf %1722, %1723 : vector<8x16xf32>
    %1725 = vector.broadcast %80 : f32 to vector<8x16xf32>
    %1726 = arith.mulf %1725, %1472 : vector<8x16xf32>
    %1727 = vector.broadcast %126 : f32 to vector<8x16xf32>
    %1728 = arith.addf %1727, %1726 : vector<8x16xf32>
    %1729 = vector.broadcast %81 : f32 to vector<8x16xf32>
    %1730 = arith.mulf %1729, %1478 : vector<8x16xf32>
    %1731 = arith.addf %1728, %1730 : vector<8x16xf32>
    %1732 = vector.broadcast %82 : f32 to vector<8x16xf32>
    %1733 = arith.mulf %1732, %1484 : vector<8x16xf32>
    %1734 = arith.addf %1731, %1733 : vector<8x16xf32>
    %1735 = vector.broadcast %83 : f32 to vector<8x16xf32>
    %1736 = arith.mulf %1735, %1490 : vector<8x16xf32>
    %1737 = arith.addf %1734, %1736 : vector<8x16xf32>
    %1738 = vector.broadcast %84 : f32 to vector<8x16xf32>
    %1739 = arith.mulf %1738, %1496 : vector<8x16xf32>
    %1740 = arith.addf %1737, %1739 : vector<8x16xf32>
    %1741 = vector.broadcast %85 : f32 to vector<8x16xf32>
    %1742 = arith.mulf %1741, %1502 : vector<8x16xf32>
    %1743 = arith.addf %1740, %1742 : vector<8x16xf32>
    %1744 = vector.broadcast %86 : f32 to vector<8x16xf32>
    %1745 = arith.mulf %1744, %1508 : vector<8x16xf32>
    %1746 = arith.addf %1743, %1745 : vector<8x16xf32>
    %1747 = vector.broadcast %87 : f32 to vector<8x16xf32>
    %1748 = arith.mulf %1747, %1514 : vector<8x16xf32>
    %1749 = arith.addf %1746, %1748 : vector<8x16xf32>
    %1750 = vector.broadcast %88 : f32 to vector<8x16xf32>
    %1751 = arith.mulf %1750, %1520 : vector<8x16xf32>
    %1752 = arith.addf %1749, %1751 : vector<8x16xf32>
    %1753 = vector.broadcast %89 : f32 to vector<8x16xf32>
    %1754 = arith.mulf %1753, %1526 : vector<8x16xf32>
    %1755 = arith.addf %1752, %1754 : vector<8x16xf32>
    %cst_333 = arith.constant 0.000000e+00 : f32
    %1756 = vector.broadcast %cst_333 : f32 to vector<8x16xf32>
    %1757 = arith.maximumf %1755, %1756 : vector<8x16xf32>
    %1758 = vector.broadcast %90 : f32 to vector<8x16xf32>
    %1759 = arith.mulf %1758, %1472 : vector<8x16xf32>
    %1760 = vector.broadcast %127 : f32 to vector<8x16xf32>
    %1761 = arith.addf %1760, %1759 : vector<8x16xf32>
    %1762 = vector.broadcast %91 : f32 to vector<8x16xf32>
    %1763 = arith.mulf %1762, %1478 : vector<8x16xf32>
    %1764 = arith.addf %1761, %1763 : vector<8x16xf32>
    %1765 = vector.broadcast %92 : f32 to vector<8x16xf32>
    %1766 = arith.mulf %1765, %1484 : vector<8x16xf32>
    %1767 = arith.addf %1764, %1766 : vector<8x16xf32>
    %1768 = vector.broadcast %93 : f32 to vector<8x16xf32>
    %1769 = arith.mulf %1768, %1490 : vector<8x16xf32>
    %1770 = arith.addf %1767, %1769 : vector<8x16xf32>
    %1771 = vector.broadcast %94 : f32 to vector<8x16xf32>
    %1772 = arith.mulf %1771, %1496 : vector<8x16xf32>
    %1773 = arith.addf %1770, %1772 : vector<8x16xf32>
    %1774 = vector.broadcast %95 : f32 to vector<8x16xf32>
    %1775 = arith.mulf %1774, %1502 : vector<8x16xf32>
    %1776 = arith.addf %1773, %1775 : vector<8x16xf32>
    %1777 = vector.broadcast %96 : f32 to vector<8x16xf32>
    %1778 = arith.mulf %1777, %1508 : vector<8x16xf32>
    %1779 = arith.addf %1776, %1778 : vector<8x16xf32>
    %1780 = vector.broadcast %97 : f32 to vector<8x16xf32>
    %1781 = arith.mulf %1780, %1514 : vector<8x16xf32>
    %1782 = arith.addf %1779, %1781 : vector<8x16xf32>
    %1783 = vector.broadcast %98 : f32 to vector<8x16xf32>
    %1784 = arith.mulf %1783, %1520 : vector<8x16xf32>
    %1785 = arith.addf %1782, %1784 : vector<8x16xf32>
    %1786 = vector.broadcast %99 : f32 to vector<8x16xf32>
    %1787 = arith.mulf %1786, %1526 : vector<8x16xf32>
    %1788 = arith.addf %1785, %1787 : vector<8x16xf32>
    %cst_334 = arith.constant 0.000000e+00 : f32
    %1789 = vector.broadcast %cst_334 : f32 to vector<8x16xf32>
    %1790 = arith.maximumf %1788, %1789 : vector<8x16xf32>
    %1791 = vector.broadcast %100 : f32 to vector<8x16xf32>
    %1792 = arith.mulf %1791, %1472 : vector<8x16xf32>
    %1793 = vector.broadcast %128 : f32 to vector<8x16xf32>
    %1794 = arith.addf %1793, %1792 : vector<8x16xf32>
    %1795 = vector.broadcast %101 : f32 to vector<8x16xf32>
    %1796 = arith.mulf %1795, %1478 : vector<8x16xf32>
    %1797 = arith.addf %1794, %1796 : vector<8x16xf32>
    %1798 = vector.broadcast %102 : f32 to vector<8x16xf32>
    %1799 = arith.mulf %1798, %1484 : vector<8x16xf32>
    %1800 = arith.addf %1797, %1799 : vector<8x16xf32>
    %1801 = vector.broadcast %103 : f32 to vector<8x16xf32>
    %1802 = arith.mulf %1801, %1490 : vector<8x16xf32>
    %1803 = arith.addf %1800, %1802 : vector<8x16xf32>
    %1804 = vector.broadcast %104 : f32 to vector<8x16xf32>
    %1805 = arith.mulf %1804, %1496 : vector<8x16xf32>
    %1806 = arith.addf %1803, %1805 : vector<8x16xf32>
    %1807 = vector.broadcast %105 : f32 to vector<8x16xf32>
    %1808 = arith.mulf %1807, %1502 : vector<8x16xf32>
    %1809 = arith.addf %1806, %1808 : vector<8x16xf32>
    %1810 = vector.broadcast %106 : f32 to vector<8x16xf32>
    %1811 = arith.mulf %1810, %1508 : vector<8x16xf32>
    %1812 = arith.addf %1809, %1811 : vector<8x16xf32>
    %1813 = vector.broadcast %107 : f32 to vector<8x16xf32>
    %1814 = arith.mulf %1813, %1514 : vector<8x16xf32>
    %1815 = arith.addf %1812, %1814 : vector<8x16xf32>
    %1816 = vector.broadcast %108 : f32 to vector<8x16xf32>
    %1817 = arith.mulf %1816, %1520 : vector<8x16xf32>
    %1818 = arith.addf %1815, %1817 : vector<8x16xf32>
    %1819 = vector.broadcast %109 : f32 to vector<8x16xf32>
    %1820 = arith.mulf %1819, %1526 : vector<8x16xf32>
    %1821 = arith.addf %1818, %1820 : vector<8x16xf32>
    %cst_335 = arith.constant 0.000000e+00 : f32
    %1822 = vector.broadcast %cst_335 : f32 to vector<8x16xf32>
    %1823 = arith.maximumf %1821, %1822 : vector<8x16xf32>
    %1824 = vector.broadcast %110 : f32 to vector<8x16xf32>
    %1825 = arith.mulf %1824, %1472 : vector<8x16xf32>
    %1826 = vector.broadcast %129 : f32 to vector<8x16xf32>
    %1827 = arith.addf %1826, %1825 : vector<8x16xf32>
    %1828 = vector.broadcast %111 : f32 to vector<8x16xf32>
    %1829 = arith.mulf %1828, %1478 : vector<8x16xf32>
    %1830 = arith.addf %1827, %1829 : vector<8x16xf32>
    %1831 = vector.broadcast %112 : f32 to vector<8x16xf32>
    %1832 = arith.mulf %1831, %1484 : vector<8x16xf32>
    %1833 = arith.addf %1830, %1832 : vector<8x16xf32>
    %1834 = vector.broadcast %113 : f32 to vector<8x16xf32>
    %1835 = arith.mulf %1834, %1490 : vector<8x16xf32>
    %1836 = arith.addf %1833, %1835 : vector<8x16xf32>
    %1837 = vector.broadcast %114 : f32 to vector<8x16xf32>
    %1838 = arith.mulf %1837, %1496 : vector<8x16xf32>
    %1839 = arith.addf %1836, %1838 : vector<8x16xf32>
    %1840 = vector.broadcast %115 : f32 to vector<8x16xf32>
    %1841 = arith.mulf %1840, %1502 : vector<8x16xf32>
    %1842 = arith.addf %1839, %1841 : vector<8x16xf32>
    %1843 = vector.broadcast %116 : f32 to vector<8x16xf32>
    %1844 = arith.mulf %1843, %1508 : vector<8x16xf32>
    %1845 = arith.addf %1842, %1844 : vector<8x16xf32>
    %1846 = vector.broadcast %117 : f32 to vector<8x16xf32>
    %1847 = arith.mulf %1846, %1514 : vector<8x16xf32>
    %1848 = arith.addf %1845, %1847 : vector<8x16xf32>
    %1849 = vector.broadcast %118 : f32 to vector<8x16xf32>
    %1850 = arith.mulf %1849, %1520 : vector<8x16xf32>
    %1851 = arith.addf %1848, %1850 : vector<8x16xf32>
    %1852 = vector.broadcast %119 : f32 to vector<8x16xf32>
    %1853 = arith.mulf %1852, %1526 : vector<8x16xf32>
    %1854 = arith.addf %1851, %1853 : vector<8x16xf32>
    %cst_336 = arith.constant 0.000000e+00 : f32
    %1855 = vector.broadcast %cst_336 : f32 to vector<8x16xf32>
    %1856 = arith.maximumf %1854, %1855 : vector<8x16xf32>
    %1857 = vector.broadcast %130 : f32 to vector<8x16xf32>
    %1858 = arith.mulf %1857, %1559 : vector<8x16xf32>
    %1859 = vector.broadcast %230 : f32 to vector<8x16xf32>
    %1860 = arith.addf %1859, %1858 : vector<8x16xf32>
    %1861 = vector.broadcast %131 : f32 to vector<8x16xf32>
    %1862 = arith.mulf %1861, %1592 : vector<8x16xf32>
    %1863 = arith.addf %1860, %1862 : vector<8x16xf32>
    %1864 = vector.broadcast %132 : f32 to vector<8x16xf32>
    %1865 = arith.mulf %1864, %1625 : vector<8x16xf32>
    %1866 = arith.addf %1863, %1865 : vector<8x16xf32>
    %1867 = vector.broadcast %133 : f32 to vector<8x16xf32>
    %1868 = arith.mulf %1867, %1658 : vector<8x16xf32>
    %1869 = arith.addf %1866, %1868 : vector<8x16xf32>
    %1870 = vector.broadcast %134 : f32 to vector<8x16xf32>
    %1871 = arith.mulf %1870, %1691 : vector<8x16xf32>
    %1872 = arith.addf %1869, %1871 : vector<8x16xf32>
    %1873 = vector.broadcast %135 : f32 to vector<8x16xf32>
    %1874 = arith.mulf %1873, %1724 : vector<8x16xf32>
    %1875 = arith.addf %1872, %1874 : vector<8x16xf32>
    %1876 = vector.broadcast %136 : f32 to vector<8x16xf32>
    %1877 = arith.mulf %1876, %1757 : vector<8x16xf32>
    %1878 = arith.addf %1875, %1877 : vector<8x16xf32>
    %1879 = vector.broadcast %137 : f32 to vector<8x16xf32>
    %1880 = arith.mulf %1879, %1790 : vector<8x16xf32>
    %1881 = arith.addf %1878, %1880 : vector<8x16xf32>
    %1882 = vector.broadcast %138 : f32 to vector<8x16xf32>
    %1883 = arith.mulf %1882, %1823 : vector<8x16xf32>
    %1884 = arith.addf %1881, %1883 : vector<8x16xf32>
    %1885 = vector.broadcast %139 : f32 to vector<8x16xf32>
    %1886 = arith.mulf %1885, %1856 : vector<8x16xf32>
    %1887 = arith.addf %1884, %1886 : vector<8x16xf32>
    %cst_337 = arith.constant 0.000000e+00 : f32
    %1888 = vector.broadcast %cst_337 : f32 to vector<8x16xf32>
    %1889 = arith.maximumf %1887, %1888 : vector<8x16xf32>
    %1890 = vector.broadcast %140 : f32 to vector<8x16xf32>
    %1891 = arith.mulf %1890, %1559 : vector<8x16xf32>
    %1892 = vector.broadcast %231 : f32 to vector<8x16xf32>
    %1893 = arith.addf %1892, %1891 : vector<8x16xf32>
    %1894 = vector.broadcast %141 : f32 to vector<8x16xf32>
    %1895 = arith.mulf %1894, %1592 : vector<8x16xf32>
    %1896 = arith.addf %1893, %1895 : vector<8x16xf32>
    %1897 = vector.broadcast %142 : f32 to vector<8x16xf32>
    %1898 = arith.mulf %1897, %1625 : vector<8x16xf32>
    %1899 = arith.addf %1896, %1898 : vector<8x16xf32>
    %1900 = vector.broadcast %143 : f32 to vector<8x16xf32>
    %1901 = arith.mulf %1900, %1658 : vector<8x16xf32>
    %1902 = arith.addf %1899, %1901 : vector<8x16xf32>
    %1903 = vector.broadcast %144 : f32 to vector<8x16xf32>
    %1904 = arith.mulf %1903, %1691 : vector<8x16xf32>
    %1905 = arith.addf %1902, %1904 : vector<8x16xf32>
    %1906 = vector.broadcast %145 : f32 to vector<8x16xf32>
    %1907 = arith.mulf %1906, %1724 : vector<8x16xf32>
    %1908 = arith.addf %1905, %1907 : vector<8x16xf32>
    %1909 = vector.broadcast %146 : f32 to vector<8x16xf32>
    %1910 = arith.mulf %1909, %1757 : vector<8x16xf32>
    %1911 = arith.addf %1908, %1910 : vector<8x16xf32>
    %1912 = vector.broadcast %147 : f32 to vector<8x16xf32>
    %1913 = arith.mulf %1912, %1790 : vector<8x16xf32>
    %1914 = arith.addf %1911, %1913 : vector<8x16xf32>
    %1915 = vector.broadcast %148 : f32 to vector<8x16xf32>
    %1916 = arith.mulf %1915, %1823 : vector<8x16xf32>
    %1917 = arith.addf %1914, %1916 : vector<8x16xf32>
    %1918 = vector.broadcast %149 : f32 to vector<8x16xf32>
    %1919 = arith.mulf %1918, %1856 : vector<8x16xf32>
    %1920 = arith.addf %1917, %1919 : vector<8x16xf32>
    %cst_338 = arith.constant 0.000000e+00 : f32
    %1921 = vector.broadcast %cst_338 : f32 to vector<8x16xf32>
    %1922 = arith.maximumf %1920, %1921 : vector<8x16xf32>
    %1923 = vector.broadcast %150 : f32 to vector<8x16xf32>
    %1924 = arith.mulf %1923, %1559 : vector<8x16xf32>
    %1925 = vector.broadcast %232 : f32 to vector<8x16xf32>
    %1926 = arith.addf %1925, %1924 : vector<8x16xf32>
    %1927 = vector.broadcast %151 : f32 to vector<8x16xf32>
    %1928 = arith.mulf %1927, %1592 : vector<8x16xf32>
    %1929 = arith.addf %1926, %1928 : vector<8x16xf32>
    %1930 = vector.broadcast %152 : f32 to vector<8x16xf32>
    %1931 = arith.mulf %1930, %1625 : vector<8x16xf32>
    %1932 = arith.addf %1929, %1931 : vector<8x16xf32>
    %1933 = vector.broadcast %153 : f32 to vector<8x16xf32>
    %1934 = arith.mulf %1933, %1658 : vector<8x16xf32>
    %1935 = arith.addf %1932, %1934 : vector<8x16xf32>
    %1936 = vector.broadcast %154 : f32 to vector<8x16xf32>
    %1937 = arith.mulf %1936, %1691 : vector<8x16xf32>
    %1938 = arith.addf %1935, %1937 : vector<8x16xf32>
    %1939 = vector.broadcast %155 : f32 to vector<8x16xf32>
    %1940 = arith.mulf %1939, %1724 : vector<8x16xf32>
    %1941 = arith.addf %1938, %1940 : vector<8x16xf32>
    %1942 = vector.broadcast %156 : f32 to vector<8x16xf32>
    %1943 = arith.mulf %1942, %1757 : vector<8x16xf32>
    %1944 = arith.addf %1941, %1943 : vector<8x16xf32>
    %1945 = vector.broadcast %157 : f32 to vector<8x16xf32>
    %1946 = arith.mulf %1945, %1790 : vector<8x16xf32>
    %1947 = arith.addf %1944, %1946 : vector<8x16xf32>
    %1948 = vector.broadcast %158 : f32 to vector<8x16xf32>
    %1949 = arith.mulf %1948, %1823 : vector<8x16xf32>
    %1950 = arith.addf %1947, %1949 : vector<8x16xf32>
    %1951 = vector.broadcast %159 : f32 to vector<8x16xf32>
    %1952 = arith.mulf %1951, %1856 : vector<8x16xf32>
    %1953 = arith.addf %1950, %1952 : vector<8x16xf32>
    %cst_339 = arith.constant 0.000000e+00 : f32
    %1954 = vector.broadcast %cst_339 : f32 to vector<8x16xf32>
    %1955 = arith.maximumf %1953, %1954 : vector<8x16xf32>
    %1956 = vector.broadcast %160 : f32 to vector<8x16xf32>
    %1957 = arith.mulf %1956, %1559 : vector<8x16xf32>
    %1958 = vector.broadcast %233 : f32 to vector<8x16xf32>
    %1959 = arith.addf %1958, %1957 : vector<8x16xf32>
    %1960 = vector.broadcast %161 : f32 to vector<8x16xf32>
    %1961 = arith.mulf %1960, %1592 : vector<8x16xf32>
    %1962 = arith.addf %1959, %1961 : vector<8x16xf32>
    %1963 = vector.broadcast %162 : f32 to vector<8x16xf32>
    %1964 = arith.mulf %1963, %1625 : vector<8x16xf32>
    %1965 = arith.addf %1962, %1964 : vector<8x16xf32>
    %1966 = vector.broadcast %163 : f32 to vector<8x16xf32>
    %1967 = arith.mulf %1966, %1658 : vector<8x16xf32>
    %1968 = arith.addf %1965, %1967 : vector<8x16xf32>
    %1969 = vector.broadcast %164 : f32 to vector<8x16xf32>
    %1970 = arith.mulf %1969, %1691 : vector<8x16xf32>
    %1971 = arith.addf %1968, %1970 : vector<8x16xf32>
    %1972 = vector.broadcast %165 : f32 to vector<8x16xf32>
    %1973 = arith.mulf %1972, %1724 : vector<8x16xf32>
    %1974 = arith.addf %1971, %1973 : vector<8x16xf32>
    %1975 = vector.broadcast %166 : f32 to vector<8x16xf32>
    %1976 = arith.mulf %1975, %1757 : vector<8x16xf32>
    %1977 = arith.addf %1974, %1976 : vector<8x16xf32>
    %1978 = vector.broadcast %167 : f32 to vector<8x16xf32>
    %1979 = arith.mulf %1978, %1790 : vector<8x16xf32>
    %1980 = arith.addf %1977, %1979 : vector<8x16xf32>
    %1981 = vector.broadcast %168 : f32 to vector<8x16xf32>
    %1982 = arith.mulf %1981, %1823 : vector<8x16xf32>
    %1983 = arith.addf %1980, %1982 : vector<8x16xf32>
    %1984 = vector.broadcast %169 : f32 to vector<8x16xf32>
    %1985 = arith.mulf %1984, %1856 : vector<8x16xf32>
    %1986 = arith.addf %1983, %1985 : vector<8x16xf32>
    %cst_340 = arith.constant 0.000000e+00 : f32
    %1987 = vector.broadcast %cst_340 : f32 to vector<8x16xf32>
    %1988 = arith.maximumf %1986, %1987 : vector<8x16xf32>
    %1989 = vector.broadcast %170 : f32 to vector<8x16xf32>
    %1990 = arith.mulf %1989, %1559 : vector<8x16xf32>
    %1991 = vector.broadcast %234 : f32 to vector<8x16xf32>
    %1992 = arith.addf %1991, %1990 : vector<8x16xf32>
    %1993 = vector.broadcast %171 : f32 to vector<8x16xf32>
    %1994 = arith.mulf %1993, %1592 : vector<8x16xf32>
    %1995 = arith.addf %1992, %1994 : vector<8x16xf32>
    %1996 = vector.broadcast %172 : f32 to vector<8x16xf32>
    %1997 = arith.mulf %1996, %1625 : vector<8x16xf32>
    %1998 = arith.addf %1995, %1997 : vector<8x16xf32>
    %1999 = vector.broadcast %173 : f32 to vector<8x16xf32>
    %2000 = arith.mulf %1999, %1658 : vector<8x16xf32>
    %2001 = arith.addf %1998, %2000 : vector<8x16xf32>
    %2002 = vector.broadcast %174 : f32 to vector<8x16xf32>
    %2003 = arith.mulf %2002, %1691 : vector<8x16xf32>
    %2004 = arith.addf %2001, %2003 : vector<8x16xf32>
    %2005 = vector.broadcast %175 : f32 to vector<8x16xf32>
    %2006 = arith.mulf %2005, %1724 : vector<8x16xf32>
    %2007 = arith.addf %2004, %2006 : vector<8x16xf32>
    %2008 = vector.broadcast %176 : f32 to vector<8x16xf32>
    %2009 = arith.mulf %2008, %1757 : vector<8x16xf32>
    %2010 = arith.addf %2007, %2009 : vector<8x16xf32>
    %2011 = vector.broadcast %177 : f32 to vector<8x16xf32>
    %2012 = arith.mulf %2011, %1790 : vector<8x16xf32>
    %2013 = arith.addf %2010, %2012 : vector<8x16xf32>
    %2014 = vector.broadcast %178 : f32 to vector<8x16xf32>
    %2015 = arith.mulf %2014, %1823 : vector<8x16xf32>
    %2016 = arith.addf %2013, %2015 : vector<8x16xf32>
    %2017 = vector.broadcast %179 : f32 to vector<8x16xf32>
    %2018 = arith.mulf %2017, %1856 : vector<8x16xf32>
    %2019 = arith.addf %2016, %2018 : vector<8x16xf32>
    %cst_341 = arith.constant 0.000000e+00 : f32
    %2020 = vector.broadcast %cst_341 : f32 to vector<8x16xf32>
    %2021 = arith.maximumf %2019, %2020 : vector<8x16xf32>
    %2022 = vector.broadcast %180 : f32 to vector<8x16xf32>
    %2023 = arith.mulf %2022, %1559 : vector<8x16xf32>
    %2024 = vector.broadcast %235 : f32 to vector<8x16xf32>
    %2025 = arith.addf %2024, %2023 : vector<8x16xf32>
    %2026 = vector.broadcast %181 : f32 to vector<8x16xf32>
    %2027 = arith.mulf %2026, %1592 : vector<8x16xf32>
    %2028 = arith.addf %2025, %2027 : vector<8x16xf32>
    %2029 = vector.broadcast %182 : f32 to vector<8x16xf32>
    %2030 = arith.mulf %2029, %1625 : vector<8x16xf32>
    %2031 = arith.addf %2028, %2030 : vector<8x16xf32>
    %2032 = vector.broadcast %183 : f32 to vector<8x16xf32>
    %2033 = arith.mulf %2032, %1658 : vector<8x16xf32>
    %2034 = arith.addf %2031, %2033 : vector<8x16xf32>
    %2035 = vector.broadcast %184 : f32 to vector<8x16xf32>
    %2036 = arith.mulf %2035, %1691 : vector<8x16xf32>
    %2037 = arith.addf %2034, %2036 : vector<8x16xf32>
    %2038 = vector.broadcast %185 : f32 to vector<8x16xf32>
    %2039 = arith.mulf %2038, %1724 : vector<8x16xf32>
    %2040 = arith.addf %2037, %2039 : vector<8x16xf32>
    %2041 = vector.broadcast %186 : f32 to vector<8x16xf32>
    %2042 = arith.mulf %2041, %1757 : vector<8x16xf32>
    %2043 = arith.addf %2040, %2042 : vector<8x16xf32>
    %2044 = vector.broadcast %187 : f32 to vector<8x16xf32>
    %2045 = arith.mulf %2044, %1790 : vector<8x16xf32>
    %2046 = arith.addf %2043, %2045 : vector<8x16xf32>
    %2047 = vector.broadcast %188 : f32 to vector<8x16xf32>
    %2048 = arith.mulf %2047, %1823 : vector<8x16xf32>
    %2049 = arith.addf %2046, %2048 : vector<8x16xf32>
    %2050 = vector.broadcast %189 : f32 to vector<8x16xf32>
    %2051 = arith.mulf %2050, %1856 : vector<8x16xf32>
    %2052 = arith.addf %2049, %2051 : vector<8x16xf32>
    %cst_342 = arith.constant 0.000000e+00 : f32
    %2053 = vector.broadcast %cst_342 : f32 to vector<8x16xf32>
    %2054 = arith.maximumf %2052, %2053 : vector<8x16xf32>
    %2055 = vector.broadcast %190 : f32 to vector<8x16xf32>
    %2056 = arith.mulf %2055, %1559 : vector<8x16xf32>
    %2057 = vector.broadcast %236 : f32 to vector<8x16xf32>
    %2058 = arith.addf %2057, %2056 : vector<8x16xf32>
    %2059 = vector.broadcast %191 : f32 to vector<8x16xf32>
    %2060 = arith.mulf %2059, %1592 : vector<8x16xf32>
    %2061 = arith.addf %2058, %2060 : vector<8x16xf32>
    %2062 = vector.broadcast %192 : f32 to vector<8x16xf32>
    %2063 = arith.mulf %2062, %1625 : vector<8x16xf32>
    %2064 = arith.addf %2061, %2063 : vector<8x16xf32>
    %2065 = vector.broadcast %193 : f32 to vector<8x16xf32>
    %2066 = arith.mulf %2065, %1658 : vector<8x16xf32>
    %2067 = arith.addf %2064, %2066 : vector<8x16xf32>
    %2068 = vector.broadcast %194 : f32 to vector<8x16xf32>
    %2069 = arith.mulf %2068, %1691 : vector<8x16xf32>
    %2070 = arith.addf %2067, %2069 : vector<8x16xf32>
    %2071 = vector.broadcast %195 : f32 to vector<8x16xf32>
    %2072 = arith.mulf %2071, %1724 : vector<8x16xf32>
    %2073 = arith.addf %2070, %2072 : vector<8x16xf32>
    %2074 = vector.broadcast %196 : f32 to vector<8x16xf32>
    %2075 = arith.mulf %2074, %1757 : vector<8x16xf32>
    %2076 = arith.addf %2073, %2075 : vector<8x16xf32>
    %2077 = vector.broadcast %197 : f32 to vector<8x16xf32>
    %2078 = arith.mulf %2077, %1790 : vector<8x16xf32>
    %2079 = arith.addf %2076, %2078 : vector<8x16xf32>
    %2080 = vector.broadcast %198 : f32 to vector<8x16xf32>
    %2081 = arith.mulf %2080, %1823 : vector<8x16xf32>
    %2082 = arith.addf %2079, %2081 : vector<8x16xf32>
    %2083 = vector.broadcast %199 : f32 to vector<8x16xf32>
    %2084 = arith.mulf %2083, %1856 : vector<8x16xf32>
    %2085 = arith.addf %2082, %2084 : vector<8x16xf32>
    %cst_343 = arith.constant 0.000000e+00 : f32
    %2086 = vector.broadcast %cst_343 : f32 to vector<8x16xf32>
    %2087 = arith.maximumf %2085, %2086 : vector<8x16xf32>
    %2088 = vector.broadcast %200 : f32 to vector<8x16xf32>
    %2089 = arith.mulf %2088, %1559 : vector<8x16xf32>
    %2090 = vector.broadcast %237 : f32 to vector<8x16xf32>
    %2091 = arith.addf %2090, %2089 : vector<8x16xf32>
    %2092 = vector.broadcast %201 : f32 to vector<8x16xf32>
    %2093 = arith.mulf %2092, %1592 : vector<8x16xf32>
    %2094 = arith.addf %2091, %2093 : vector<8x16xf32>
    %2095 = vector.broadcast %202 : f32 to vector<8x16xf32>
    %2096 = arith.mulf %2095, %1625 : vector<8x16xf32>
    %2097 = arith.addf %2094, %2096 : vector<8x16xf32>
    %2098 = vector.broadcast %203 : f32 to vector<8x16xf32>
    %2099 = arith.mulf %2098, %1658 : vector<8x16xf32>
    %2100 = arith.addf %2097, %2099 : vector<8x16xf32>
    %2101 = vector.broadcast %204 : f32 to vector<8x16xf32>
    %2102 = arith.mulf %2101, %1691 : vector<8x16xf32>
    %2103 = arith.addf %2100, %2102 : vector<8x16xf32>
    %2104 = vector.broadcast %205 : f32 to vector<8x16xf32>
    %2105 = arith.mulf %2104, %1724 : vector<8x16xf32>
    %2106 = arith.addf %2103, %2105 : vector<8x16xf32>
    %2107 = vector.broadcast %206 : f32 to vector<8x16xf32>
    %2108 = arith.mulf %2107, %1757 : vector<8x16xf32>
    %2109 = arith.addf %2106, %2108 : vector<8x16xf32>
    %2110 = vector.broadcast %207 : f32 to vector<8x16xf32>
    %2111 = arith.mulf %2110, %1790 : vector<8x16xf32>
    %2112 = arith.addf %2109, %2111 : vector<8x16xf32>
    %2113 = vector.broadcast %208 : f32 to vector<8x16xf32>
    %2114 = arith.mulf %2113, %1823 : vector<8x16xf32>
    %2115 = arith.addf %2112, %2114 : vector<8x16xf32>
    %2116 = vector.broadcast %209 : f32 to vector<8x16xf32>
    %2117 = arith.mulf %2116, %1856 : vector<8x16xf32>
    %2118 = arith.addf %2115, %2117 : vector<8x16xf32>
    %cst_344 = arith.constant 0.000000e+00 : f32
    %2119 = vector.broadcast %cst_344 : f32 to vector<8x16xf32>
    %2120 = arith.maximumf %2118, %2119 : vector<8x16xf32>
    %2121 = vector.broadcast %210 : f32 to vector<8x16xf32>
    %2122 = arith.mulf %2121, %1559 : vector<8x16xf32>
    %2123 = vector.broadcast %238 : f32 to vector<8x16xf32>
    %2124 = arith.addf %2123, %2122 : vector<8x16xf32>
    %2125 = vector.broadcast %211 : f32 to vector<8x16xf32>
    %2126 = arith.mulf %2125, %1592 : vector<8x16xf32>
    %2127 = arith.addf %2124, %2126 : vector<8x16xf32>
    %2128 = vector.broadcast %212 : f32 to vector<8x16xf32>
    %2129 = arith.mulf %2128, %1625 : vector<8x16xf32>
    %2130 = arith.addf %2127, %2129 : vector<8x16xf32>
    %2131 = vector.broadcast %213 : f32 to vector<8x16xf32>
    %2132 = arith.mulf %2131, %1658 : vector<8x16xf32>
    %2133 = arith.addf %2130, %2132 : vector<8x16xf32>
    %2134 = vector.broadcast %214 : f32 to vector<8x16xf32>
    %2135 = arith.mulf %2134, %1691 : vector<8x16xf32>
    %2136 = arith.addf %2133, %2135 : vector<8x16xf32>
    %2137 = vector.broadcast %215 : f32 to vector<8x16xf32>
    %2138 = arith.mulf %2137, %1724 : vector<8x16xf32>
    %2139 = arith.addf %2136, %2138 : vector<8x16xf32>
    %2140 = vector.broadcast %216 : f32 to vector<8x16xf32>
    %2141 = arith.mulf %2140, %1757 : vector<8x16xf32>
    %2142 = arith.addf %2139, %2141 : vector<8x16xf32>
    %2143 = vector.broadcast %217 : f32 to vector<8x16xf32>
    %2144 = arith.mulf %2143, %1790 : vector<8x16xf32>
    %2145 = arith.addf %2142, %2144 : vector<8x16xf32>
    %2146 = vector.broadcast %218 : f32 to vector<8x16xf32>
    %2147 = arith.mulf %2146, %1823 : vector<8x16xf32>
    %2148 = arith.addf %2145, %2147 : vector<8x16xf32>
    %2149 = vector.broadcast %219 : f32 to vector<8x16xf32>
    %2150 = arith.mulf %2149, %1856 : vector<8x16xf32>
    %2151 = arith.addf %2148, %2150 : vector<8x16xf32>
    %cst_345 = arith.constant 0.000000e+00 : f32
    %2152 = vector.broadcast %cst_345 : f32 to vector<8x16xf32>
    %2153 = arith.maximumf %2151, %2152 : vector<8x16xf32>
    %2154 = vector.broadcast %220 : f32 to vector<8x16xf32>
    %2155 = arith.mulf %2154, %1559 : vector<8x16xf32>
    %2156 = vector.broadcast %239 : f32 to vector<8x16xf32>
    %2157 = arith.addf %2156, %2155 : vector<8x16xf32>
    %2158 = vector.broadcast %221 : f32 to vector<8x16xf32>
    %2159 = arith.mulf %2158, %1592 : vector<8x16xf32>
    %2160 = arith.addf %2157, %2159 : vector<8x16xf32>
    %2161 = vector.broadcast %222 : f32 to vector<8x16xf32>
    %2162 = arith.mulf %2161, %1625 : vector<8x16xf32>
    %2163 = arith.addf %2160, %2162 : vector<8x16xf32>
    %2164 = vector.broadcast %223 : f32 to vector<8x16xf32>
    %2165 = arith.mulf %2164, %1658 : vector<8x16xf32>
    %2166 = arith.addf %2163, %2165 : vector<8x16xf32>
    %2167 = vector.broadcast %224 : f32 to vector<8x16xf32>
    %2168 = arith.mulf %2167, %1691 : vector<8x16xf32>
    %2169 = arith.addf %2166, %2168 : vector<8x16xf32>
    %2170 = vector.broadcast %225 : f32 to vector<8x16xf32>
    %2171 = arith.mulf %2170, %1724 : vector<8x16xf32>
    %2172 = arith.addf %2169, %2171 : vector<8x16xf32>
    %2173 = vector.broadcast %226 : f32 to vector<8x16xf32>
    %2174 = arith.mulf %2173, %1757 : vector<8x16xf32>
    %2175 = arith.addf %2172, %2174 : vector<8x16xf32>
    %2176 = vector.broadcast %227 : f32 to vector<8x16xf32>
    %2177 = arith.mulf %2176, %1790 : vector<8x16xf32>
    %2178 = arith.addf %2175, %2177 : vector<8x16xf32>
    %2179 = vector.broadcast %228 : f32 to vector<8x16xf32>
    %2180 = arith.mulf %2179, %1823 : vector<8x16xf32>
    %2181 = arith.addf %2178, %2180 : vector<8x16xf32>
    %2182 = vector.broadcast %229 : f32 to vector<8x16xf32>
    %2183 = arith.mulf %2182, %1856 : vector<8x16xf32>
    %2184 = arith.addf %2181, %2183 : vector<8x16xf32>
    %cst_346 = arith.constant 0.000000e+00 : f32
    %2185 = vector.broadcast %cst_346 : f32 to vector<8x16xf32>
    %2186 = arith.maximumf %2184, %2185 : vector<8x16xf32>
    %2187 = vector.broadcast %240 : f32 to vector<8x16xf32>
    %2188 = arith.mulf %2187, %1889 : vector<8x16xf32>
    %2189 = vector.broadcast %340 : f32 to vector<8x16xf32>
    %2190 = arith.addf %2189, %2188 : vector<8x16xf32>
    %2191 = vector.broadcast %241 : f32 to vector<8x16xf32>
    %2192 = arith.mulf %2191, %1922 : vector<8x16xf32>
    %2193 = arith.addf %2190, %2192 : vector<8x16xf32>
    %2194 = vector.broadcast %242 : f32 to vector<8x16xf32>
    %2195 = arith.mulf %2194, %1955 : vector<8x16xf32>
    %2196 = arith.addf %2193, %2195 : vector<8x16xf32>
    %2197 = vector.broadcast %243 : f32 to vector<8x16xf32>
    %2198 = arith.mulf %2197, %1988 : vector<8x16xf32>
    %2199 = arith.addf %2196, %2198 : vector<8x16xf32>
    %2200 = vector.broadcast %244 : f32 to vector<8x16xf32>
    %2201 = arith.mulf %2200, %2021 : vector<8x16xf32>
    %2202 = arith.addf %2199, %2201 : vector<8x16xf32>
    %2203 = vector.broadcast %245 : f32 to vector<8x16xf32>
    %2204 = arith.mulf %2203, %2054 : vector<8x16xf32>
    %2205 = arith.addf %2202, %2204 : vector<8x16xf32>
    %2206 = vector.broadcast %246 : f32 to vector<8x16xf32>
    %2207 = arith.mulf %2206, %2087 : vector<8x16xf32>
    %2208 = arith.addf %2205, %2207 : vector<8x16xf32>
    %2209 = vector.broadcast %247 : f32 to vector<8x16xf32>
    %2210 = arith.mulf %2209, %2120 : vector<8x16xf32>
    %2211 = arith.addf %2208, %2210 : vector<8x16xf32>
    %2212 = vector.broadcast %248 : f32 to vector<8x16xf32>
    %2213 = arith.mulf %2212, %2153 : vector<8x16xf32>
    %2214 = arith.addf %2211, %2213 : vector<8x16xf32>
    %2215 = vector.broadcast %249 : f32 to vector<8x16xf32>
    %2216 = arith.mulf %2215, %2186 : vector<8x16xf32>
    %2217 = arith.addf %2214, %2216 : vector<8x16xf32>
    %cst_347 = arith.constant 0.000000e+00 : f32
    %2218 = vector.broadcast %cst_347 : f32 to vector<8x16xf32>
    %2219 = arith.maximumf %2217, %2218 : vector<8x16xf32>
    %2220 = vector.broadcast %250 : f32 to vector<8x16xf32>
    %2221 = arith.mulf %2220, %1889 : vector<8x16xf32>
    %2222 = vector.broadcast %341 : f32 to vector<8x16xf32>
    %2223 = arith.addf %2222, %2221 : vector<8x16xf32>
    %2224 = vector.broadcast %251 : f32 to vector<8x16xf32>
    %2225 = arith.mulf %2224, %1922 : vector<8x16xf32>
    %2226 = arith.addf %2223, %2225 : vector<8x16xf32>
    %2227 = vector.broadcast %252 : f32 to vector<8x16xf32>
    %2228 = arith.mulf %2227, %1955 : vector<8x16xf32>
    %2229 = arith.addf %2226, %2228 : vector<8x16xf32>
    %2230 = vector.broadcast %253 : f32 to vector<8x16xf32>
    %2231 = arith.mulf %2230, %1988 : vector<8x16xf32>
    %2232 = arith.addf %2229, %2231 : vector<8x16xf32>
    %2233 = vector.broadcast %254 : f32 to vector<8x16xf32>
    %2234 = arith.mulf %2233, %2021 : vector<8x16xf32>
    %2235 = arith.addf %2232, %2234 : vector<8x16xf32>
    %2236 = vector.broadcast %255 : f32 to vector<8x16xf32>
    %2237 = arith.mulf %2236, %2054 : vector<8x16xf32>
    %2238 = arith.addf %2235, %2237 : vector<8x16xf32>
    %2239 = vector.broadcast %256 : f32 to vector<8x16xf32>
    %2240 = arith.mulf %2239, %2087 : vector<8x16xf32>
    %2241 = arith.addf %2238, %2240 : vector<8x16xf32>
    %2242 = vector.broadcast %257 : f32 to vector<8x16xf32>
    %2243 = arith.mulf %2242, %2120 : vector<8x16xf32>
    %2244 = arith.addf %2241, %2243 : vector<8x16xf32>
    %2245 = vector.broadcast %258 : f32 to vector<8x16xf32>
    %2246 = arith.mulf %2245, %2153 : vector<8x16xf32>
    %2247 = arith.addf %2244, %2246 : vector<8x16xf32>
    %2248 = vector.broadcast %259 : f32 to vector<8x16xf32>
    %2249 = arith.mulf %2248, %2186 : vector<8x16xf32>
    %2250 = arith.addf %2247, %2249 : vector<8x16xf32>
    %cst_348 = arith.constant 0.000000e+00 : f32
    %2251 = vector.broadcast %cst_348 : f32 to vector<8x16xf32>
    %2252 = arith.maximumf %2250, %2251 : vector<8x16xf32>
    %2253 = vector.broadcast %260 : f32 to vector<8x16xf32>
    %2254 = arith.mulf %2253, %1889 : vector<8x16xf32>
    %2255 = vector.broadcast %342 : f32 to vector<8x16xf32>
    %2256 = arith.addf %2255, %2254 : vector<8x16xf32>
    %2257 = vector.broadcast %261 : f32 to vector<8x16xf32>
    %2258 = arith.mulf %2257, %1922 : vector<8x16xf32>
    %2259 = arith.addf %2256, %2258 : vector<8x16xf32>
    %2260 = vector.broadcast %262 : f32 to vector<8x16xf32>
    %2261 = arith.mulf %2260, %1955 : vector<8x16xf32>
    %2262 = arith.addf %2259, %2261 : vector<8x16xf32>
    %2263 = vector.broadcast %263 : f32 to vector<8x16xf32>
    %2264 = arith.mulf %2263, %1988 : vector<8x16xf32>
    %2265 = arith.addf %2262, %2264 : vector<8x16xf32>
    %2266 = vector.broadcast %264 : f32 to vector<8x16xf32>
    %2267 = arith.mulf %2266, %2021 : vector<8x16xf32>
    %2268 = arith.addf %2265, %2267 : vector<8x16xf32>
    %2269 = vector.broadcast %265 : f32 to vector<8x16xf32>
    %2270 = arith.mulf %2269, %2054 : vector<8x16xf32>
    %2271 = arith.addf %2268, %2270 : vector<8x16xf32>
    %2272 = vector.broadcast %266 : f32 to vector<8x16xf32>
    %2273 = arith.mulf %2272, %2087 : vector<8x16xf32>
    %2274 = arith.addf %2271, %2273 : vector<8x16xf32>
    %2275 = vector.broadcast %267 : f32 to vector<8x16xf32>
    %2276 = arith.mulf %2275, %2120 : vector<8x16xf32>
    %2277 = arith.addf %2274, %2276 : vector<8x16xf32>
    %2278 = vector.broadcast %268 : f32 to vector<8x16xf32>
    %2279 = arith.mulf %2278, %2153 : vector<8x16xf32>
    %2280 = arith.addf %2277, %2279 : vector<8x16xf32>
    %2281 = vector.broadcast %269 : f32 to vector<8x16xf32>
    %2282 = arith.mulf %2281, %2186 : vector<8x16xf32>
    %2283 = arith.addf %2280, %2282 : vector<8x16xf32>
    %cst_349 = arith.constant 0.000000e+00 : f32
    %2284 = vector.broadcast %cst_349 : f32 to vector<8x16xf32>
    %2285 = arith.maximumf %2283, %2284 : vector<8x16xf32>
    %2286 = vector.broadcast %270 : f32 to vector<8x16xf32>
    %2287 = arith.mulf %2286, %1889 : vector<8x16xf32>
    %2288 = vector.broadcast %343 : f32 to vector<8x16xf32>
    %2289 = arith.addf %2288, %2287 : vector<8x16xf32>
    %2290 = vector.broadcast %271 : f32 to vector<8x16xf32>
    %2291 = arith.mulf %2290, %1922 : vector<8x16xf32>
    %2292 = arith.addf %2289, %2291 : vector<8x16xf32>
    %2293 = vector.broadcast %272 : f32 to vector<8x16xf32>
    %2294 = arith.mulf %2293, %1955 : vector<8x16xf32>
    %2295 = arith.addf %2292, %2294 : vector<8x16xf32>
    %2296 = vector.broadcast %273 : f32 to vector<8x16xf32>
    %2297 = arith.mulf %2296, %1988 : vector<8x16xf32>
    %2298 = arith.addf %2295, %2297 : vector<8x16xf32>
    %2299 = vector.broadcast %274 : f32 to vector<8x16xf32>
    %2300 = arith.mulf %2299, %2021 : vector<8x16xf32>
    %2301 = arith.addf %2298, %2300 : vector<8x16xf32>
    %2302 = vector.broadcast %275 : f32 to vector<8x16xf32>
    %2303 = arith.mulf %2302, %2054 : vector<8x16xf32>
    %2304 = arith.addf %2301, %2303 : vector<8x16xf32>
    %2305 = vector.broadcast %276 : f32 to vector<8x16xf32>
    %2306 = arith.mulf %2305, %2087 : vector<8x16xf32>
    %2307 = arith.addf %2304, %2306 : vector<8x16xf32>
    %2308 = vector.broadcast %277 : f32 to vector<8x16xf32>
    %2309 = arith.mulf %2308, %2120 : vector<8x16xf32>
    %2310 = arith.addf %2307, %2309 : vector<8x16xf32>
    %2311 = vector.broadcast %278 : f32 to vector<8x16xf32>
    %2312 = arith.mulf %2311, %2153 : vector<8x16xf32>
    %2313 = arith.addf %2310, %2312 : vector<8x16xf32>
    %2314 = vector.broadcast %279 : f32 to vector<8x16xf32>
    %2315 = arith.mulf %2314, %2186 : vector<8x16xf32>
    %2316 = arith.addf %2313, %2315 : vector<8x16xf32>
    %cst_350 = arith.constant 0.000000e+00 : f32
    %2317 = vector.broadcast %cst_350 : f32 to vector<8x16xf32>
    %2318 = arith.maximumf %2316, %2317 : vector<8x16xf32>
    %2319 = vector.broadcast %280 : f32 to vector<8x16xf32>
    %2320 = arith.mulf %2319, %1889 : vector<8x16xf32>
    %2321 = vector.broadcast %344 : f32 to vector<8x16xf32>
    %2322 = arith.addf %2321, %2320 : vector<8x16xf32>
    %2323 = vector.broadcast %281 : f32 to vector<8x16xf32>
    %2324 = arith.mulf %2323, %1922 : vector<8x16xf32>
    %2325 = arith.addf %2322, %2324 : vector<8x16xf32>
    %2326 = vector.broadcast %282 : f32 to vector<8x16xf32>
    %2327 = arith.mulf %2326, %1955 : vector<8x16xf32>
    %2328 = arith.addf %2325, %2327 : vector<8x16xf32>
    %2329 = vector.broadcast %283 : f32 to vector<8x16xf32>
    %2330 = arith.mulf %2329, %1988 : vector<8x16xf32>
    %2331 = arith.addf %2328, %2330 : vector<8x16xf32>
    %2332 = vector.broadcast %284 : f32 to vector<8x16xf32>
    %2333 = arith.mulf %2332, %2021 : vector<8x16xf32>
    %2334 = arith.addf %2331, %2333 : vector<8x16xf32>
    %2335 = vector.broadcast %285 : f32 to vector<8x16xf32>
    %2336 = arith.mulf %2335, %2054 : vector<8x16xf32>
    %2337 = arith.addf %2334, %2336 : vector<8x16xf32>
    %2338 = vector.broadcast %286 : f32 to vector<8x16xf32>
    %2339 = arith.mulf %2338, %2087 : vector<8x16xf32>
    %2340 = arith.addf %2337, %2339 : vector<8x16xf32>
    %2341 = vector.broadcast %287 : f32 to vector<8x16xf32>
    %2342 = arith.mulf %2341, %2120 : vector<8x16xf32>
    %2343 = arith.addf %2340, %2342 : vector<8x16xf32>
    %2344 = vector.broadcast %288 : f32 to vector<8x16xf32>
    %2345 = arith.mulf %2344, %2153 : vector<8x16xf32>
    %2346 = arith.addf %2343, %2345 : vector<8x16xf32>
    %2347 = vector.broadcast %289 : f32 to vector<8x16xf32>
    %2348 = arith.mulf %2347, %2186 : vector<8x16xf32>
    %2349 = arith.addf %2346, %2348 : vector<8x16xf32>
    %cst_351 = arith.constant 0.000000e+00 : f32
    %2350 = vector.broadcast %cst_351 : f32 to vector<8x16xf32>
    %2351 = arith.maximumf %2349, %2350 : vector<8x16xf32>
    %2352 = vector.broadcast %290 : f32 to vector<8x16xf32>
    %2353 = arith.mulf %2352, %1889 : vector<8x16xf32>
    %2354 = vector.broadcast %345 : f32 to vector<8x16xf32>
    %2355 = arith.addf %2354, %2353 : vector<8x16xf32>
    %2356 = vector.broadcast %291 : f32 to vector<8x16xf32>
    %2357 = arith.mulf %2356, %1922 : vector<8x16xf32>
    %2358 = arith.addf %2355, %2357 : vector<8x16xf32>
    %2359 = vector.broadcast %292 : f32 to vector<8x16xf32>
    %2360 = arith.mulf %2359, %1955 : vector<8x16xf32>
    %2361 = arith.addf %2358, %2360 : vector<8x16xf32>
    %2362 = vector.broadcast %293 : f32 to vector<8x16xf32>
    %2363 = arith.mulf %2362, %1988 : vector<8x16xf32>
    %2364 = arith.addf %2361, %2363 : vector<8x16xf32>
    %2365 = vector.broadcast %294 : f32 to vector<8x16xf32>
    %2366 = arith.mulf %2365, %2021 : vector<8x16xf32>
    %2367 = arith.addf %2364, %2366 : vector<8x16xf32>
    %2368 = vector.broadcast %295 : f32 to vector<8x16xf32>
    %2369 = arith.mulf %2368, %2054 : vector<8x16xf32>
    %2370 = arith.addf %2367, %2369 : vector<8x16xf32>
    %2371 = vector.broadcast %296 : f32 to vector<8x16xf32>
    %2372 = arith.mulf %2371, %2087 : vector<8x16xf32>
    %2373 = arith.addf %2370, %2372 : vector<8x16xf32>
    %2374 = vector.broadcast %297 : f32 to vector<8x16xf32>
    %2375 = arith.mulf %2374, %2120 : vector<8x16xf32>
    %2376 = arith.addf %2373, %2375 : vector<8x16xf32>
    %2377 = vector.broadcast %298 : f32 to vector<8x16xf32>
    %2378 = arith.mulf %2377, %2153 : vector<8x16xf32>
    %2379 = arith.addf %2376, %2378 : vector<8x16xf32>
    %2380 = vector.broadcast %299 : f32 to vector<8x16xf32>
    %2381 = arith.mulf %2380, %2186 : vector<8x16xf32>
    %2382 = arith.addf %2379, %2381 : vector<8x16xf32>
    %cst_352 = arith.constant 0.000000e+00 : f32
    %2383 = vector.broadcast %cst_352 : f32 to vector<8x16xf32>
    %2384 = arith.maximumf %2382, %2383 : vector<8x16xf32>
    %2385 = vector.broadcast %300 : f32 to vector<8x16xf32>
    %2386 = arith.mulf %2385, %1889 : vector<8x16xf32>
    %2387 = vector.broadcast %346 : f32 to vector<8x16xf32>
    %2388 = arith.addf %2387, %2386 : vector<8x16xf32>
    %2389 = vector.broadcast %301 : f32 to vector<8x16xf32>
    %2390 = arith.mulf %2389, %1922 : vector<8x16xf32>
    %2391 = arith.addf %2388, %2390 : vector<8x16xf32>
    %2392 = vector.broadcast %302 : f32 to vector<8x16xf32>
    %2393 = arith.mulf %2392, %1955 : vector<8x16xf32>
    %2394 = arith.addf %2391, %2393 : vector<8x16xf32>
    %2395 = vector.broadcast %303 : f32 to vector<8x16xf32>
    %2396 = arith.mulf %2395, %1988 : vector<8x16xf32>
    %2397 = arith.addf %2394, %2396 : vector<8x16xf32>
    %2398 = vector.broadcast %304 : f32 to vector<8x16xf32>
    %2399 = arith.mulf %2398, %2021 : vector<8x16xf32>
    %2400 = arith.addf %2397, %2399 : vector<8x16xf32>
    %2401 = vector.broadcast %305 : f32 to vector<8x16xf32>
    %2402 = arith.mulf %2401, %2054 : vector<8x16xf32>
    %2403 = arith.addf %2400, %2402 : vector<8x16xf32>
    %2404 = vector.broadcast %306 : f32 to vector<8x16xf32>
    %2405 = arith.mulf %2404, %2087 : vector<8x16xf32>
    %2406 = arith.addf %2403, %2405 : vector<8x16xf32>
    %2407 = vector.broadcast %307 : f32 to vector<8x16xf32>
    %2408 = arith.mulf %2407, %2120 : vector<8x16xf32>
    %2409 = arith.addf %2406, %2408 : vector<8x16xf32>
    %2410 = vector.broadcast %308 : f32 to vector<8x16xf32>
    %2411 = arith.mulf %2410, %2153 : vector<8x16xf32>
    %2412 = arith.addf %2409, %2411 : vector<8x16xf32>
    %2413 = vector.broadcast %309 : f32 to vector<8x16xf32>
    %2414 = arith.mulf %2413, %2186 : vector<8x16xf32>
    %2415 = arith.addf %2412, %2414 : vector<8x16xf32>
    %cst_353 = arith.constant 0.000000e+00 : f32
    %2416 = vector.broadcast %cst_353 : f32 to vector<8x16xf32>
    %2417 = arith.maximumf %2415, %2416 : vector<8x16xf32>
    %2418 = vector.broadcast %310 : f32 to vector<8x16xf32>
    %2419 = arith.mulf %2418, %1889 : vector<8x16xf32>
    %2420 = vector.broadcast %347 : f32 to vector<8x16xf32>
    %2421 = arith.addf %2420, %2419 : vector<8x16xf32>
    %2422 = vector.broadcast %311 : f32 to vector<8x16xf32>
    %2423 = arith.mulf %2422, %1922 : vector<8x16xf32>
    %2424 = arith.addf %2421, %2423 : vector<8x16xf32>
    %2425 = vector.broadcast %312 : f32 to vector<8x16xf32>
    %2426 = arith.mulf %2425, %1955 : vector<8x16xf32>
    %2427 = arith.addf %2424, %2426 : vector<8x16xf32>
    %2428 = vector.broadcast %313 : f32 to vector<8x16xf32>
    %2429 = arith.mulf %2428, %1988 : vector<8x16xf32>
    %2430 = arith.addf %2427, %2429 : vector<8x16xf32>
    %2431 = vector.broadcast %314 : f32 to vector<8x16xf32>
    %2432 = arith.mulf %2431, %2021 : vector<8x16xf32>
    %2433 = arith.addf %2430, %2432 : vector<8x16xf32>
    %2434 = vector.broadcast %315 : f32 to vector<8x16xf32>
    %2435 = arith.mulf %2434, %2054 : vector<8x16xf32>
    %2436 = arith.addf %2433, %2435 : vector<8x16xf32>
    %2437 = vector.broadcast %316 : f32 to vector<8x16xf32>
    %2438 = arith.mulf %2437, %2087 : vector<8x16xf32>
    %2439 = arith.addf %2436, %2438 : vector<8x16xf32>
    %2440 = vector.broadcast %317 : f32 to vector<8x16xf32>
    %2441 = arith.mulf %2440, %2120 : vector<8x16xf32>
    %2442 = arith.addf %2439, %2441 : vector<8x16xf32>
    %2443 = vector.broadcast %318 : f32 to vector<8x16xf32>
    %2444 = arith.mulf %2443, %2153 : vector<8x16xf32>
    %2445 = arith.addf %2442, %2444 : vector<8x16xf32>
    %2446 = vector.broadcast %319 : f32 to vector<8x16xf32>
    %2447 = arith.mulf %2446, %2186 : vector<8x16xf32>
    %2448 = arith.addf %2445, %2447 : vector<8x16xf32>
    %cst_354 = arith.constant 0.000000e+00 : f32
    %2449 = vector.broadcast %cst_354 : f32 to vector<8x16xf32>
    %2450 = arith.maximumf %2448, %2449 : vector<8x16xf32>
    %2451 = vector.broadcast %320 : f32 to vector<8x16xf32>
    %2452 = arith.mulf %2451, %1889 : vector<8x16xf32>
    %2453 = vector.broadcast %348 : f32 to vector<8x16xf32>
    %2454 = arith.addf %2453, %2452 : vector<8x16xf32>
    %2455 = vector.broadcast %321 : f32 to vector<8x16xf32>
    %2456 = arith.mulf %2455, %1922 : vector<8x16xf32>
    %2457 = arith.addf %2454, %2456 : vector<8x16xf32>
    %2458 = vector.broadcast %322 : f32 to vector<8x16xf32>
    %2459 = arith.mulf %2458, %1955 : vector<8x16xf32>
    %2460 = arith.addf %2457, %2459 : vector<8x16xf32>
    %2461 = vector.broadcast %323 : f32 to vector<8x16xf32>
    %2462 = arith.mulf %2461, %1988 : vector<8x16xf32>
    %2463 = arith.addf %2460, %2462 : vector<8x16xf32>
    %2464 = vector.broadcast %324 : f32 to vector<8x16xf32>
    %2465 = arith.mulf %2464, %2021 : vector<8x16xf32>
    %2466 = arith.addf %2463, %2465 : vector<8x16xf32>
    %2467 = vector.broadcast %325 : f32 to vector<8x16xf32>
    %2468 = arith.mulf %2467, %2054 : vector<8x16xf32>
    %2469 = arith.addf %2466, %2468 : vector<8x16xf32>
    %2470 = vector.broadcast %326 : f32 to vector<8x16xf32>
    %2471 = arith.mulf %2470, %2087 : vector<8x16xf32>
    %2472 = arith.addf %2469, %2471 : vector<8x16xf32>
    %2473 = vector.broadcast %327 : f32 to vector<8x16xf32>
    %2474 = arith.mulf %2473, %2120 : vector<8x16xf32>
    %2475 = arith.addf %2472, %2474 : vector<8x16xf32>
    %2476 = vector.broadcast %328 : f32 to vector<8x16xf32>
    %2477 = arith.mulf %2476, %2153 : vector<8x16xf32>
    %2478 = arith.addf %2475, %2477 : vector<8x16xf32>
    %2479 = vector.broadcast %329 : f32 to vector<8x16xf32>
    %2480 = arith.mulf %2479, %2186 : vector<8x16xf32>
    %2481 = arith.addf %2478, %2480 : vector<8x16xf32>
    %cst_355 = arith.constant 0.000000e+00 : f32
    %2482 = vector.broadcast %cst_355 : f32 to vector<8x16xf32>
    %2483 = arith.maximumf %2481, %2482 : vector<8x16xf32>
    %2484 = vector.broadcast %330 : f32 to vector<8x16xf32>
    %2485 = arith.mulf %2484, %1889 : vector<8x16xf32>
    %2486 = vector.broadcast %349 : f32 to vector<8x16xf32>
    %2487 = arith.addf %2486, %2485 : vector<8x16xf32>
    %2488 = vector.broadcast %331 : f32 to vector<8x16xf32>
    %2489 = arith.mulf %2488, %1922 : vector<8x16xf32>
    %2490 = arith.addf %2487, %2489 : vector<8x16xf32>
    %2491 = vector.broadcast %332 : f32 to vector<8x16xf32>
    %2492 = arith.mulf %2491, %1955 : vector<8x16xf32>
    %2493 = arith.addf %2490, %2492 : vector<8x16xf32>
    %2494 = vector.broadcast %333 : f32 to vector<8x16xf32>
    %2495 = arith.mulf %2494, %1988 : vector<8x16xf32>
    %2496 = arith.addf %2493, %2495 : vector<8x16xf32>
    %2497 = vector.broadcast %334 : f32 to vector<8x16xf32>
    %2498 = arith.mulf %2497, %2021 : vector<8x16xf32>
    %2499 = arith.addf %2496, %2498 : vector<8x16xf32>
    %2500 = vector.broadcast %335 : f32 to vector<8x16xf32>
    %2501 = arith.mulf %2500, %2054 : vector<8x16xf32>
    %2502 = arith.addf %2499, %2501 : vector<8x16xf32>
    %2503 = vector.broadcast %336 : f32 to vector<8x16xf32>
    %2504 = arith.mulf %2503, %2087 : vector<8x16xf32>
    %2505 = arith.addf %2502, %2504 : vector<8x16xf32>
    %2506 = vector.broadcast %337 : f32 to vector<8x16xf32>
    %2507 = arith.mulf %2506, %2120 : vector<8x16xf32>
    %2508 = arith.addf %2505, %2507 : vector<8x16xf32>
    %2509 = vector.broadcast %338 : f32 to vector<8x16xf32>
    %2510 = arith.mulf %2509, %2153 : vector<8x16xf32>
    %2511 = arith.addf %2508, %2510 : vector<8x16xf32>
    %2512 = vector.broadcast %339 : f32 to vector<8x16xf32>
    %2513 = arith.mulf %2512, %2186 : vector<8x16xf32>
    %2514 = arith.addf %2511, %2513 : vector<8x16xf32>
    %cst_356 = arith.constant 0.000000e+00 : f32
    %2515 = vector.broadcast %cst_356 : f32 to vector<8x16xf32>
    %2516 = arith.maximumf %2514, %2515 : vector<8x16xf32>
    %2517 = vector.broadcast %350 : f32 to vector<8x16xf32>
    %2518 = arith.mulf %2517, %2219 : vector<8x16xf32>
    %2519 = vector.broadcast %360 : f32 to vector<8x16xf32>
    %2520 = arith.addf %2519, %2518 : vector<8x16xf32>
    %2521 = vector.broadcast %351 : f32 to vector<8x16xf32>
    %2522 = arith.mulf %2521, %2252 : vector<8x16xf32>
    %2523 = arith.addf %2520, %2522 : vector<8x16xf32>
    %2524 = vector.broadcast %352 : f32 to vector<8x16xf32>
    %2525 = arith.mulf %2524, %2285 : vector<8x16xf32>
    %2526 = arith.addf %2523, %2525 : vector<8x16xf32>
    %2527 = vector.broadcast %353 : f32 to vector<8x16xf32>
    %2528 = arith.mulf %2527, %2318 : vector<8x16xf32>
    %2529 = arith.addf %2526, %2528 : vector<8x16xf32>
    %2530 = vector.broadcast %354 : f32 to vector<8x16xf32>
    %2531 = arith.mulf %2530, %2351 : vector<8x16xf32>
    %2532 = arith.addf %2529, %2531 : vector<8x16xf32>
    %2533 = vector.broadcast %355 : f32 to vector<8x16xf32>
    %2534 = arith.mulf %2533, %2384 : vector<8x16xf32>
    %2535 = arith.addf %2532, %2534 : vector<8x16xf32>
    %2536 = vector.broadcast %356 : f32 to vector<8x16xf32>
    %2537 = arith.mulf %2536, %2417 : vector<8x16xf32>
    %2538 = arith.addf %2535, %2537 : vector<8x16xf32>
    %2539 = vector.broadcast %357 : f32 to vector<8x16xf32>
    %2540 = arith.mulf %2539, %2450 : vector<8x16xf32>
    %2541 = arith.addf %2538, %2540 : vector<8x16xf32>
    %2542 = vector.broadcast %358 : f32 to vector<8x16xf32>
    %2543 = arith.mulf %2542, %2483 : vector<8x16xf32>
    %2544 = arith.addf %2541, %2543 : vector<8x16xf32>
    %2545 = vector.broadcast %359 : f32 to vector<8x16xf32>
    %2546 = arith.mulf %2545, %2516 : vector<8x16xf32>
    %2547 = arith.addf %2544, %2546 : vector<8x16xf32>
    %c8_357 = arith.constant 8 : index
    %c0_358 = arith.constant 0 : index
    %2548 = vector.load %arg1[%c8_357, %c0_358] : memref<16x16xf32, #tpu.memory_space<vmem>>, vector<8x16xf32>
    tpu.vector_store %arg1[%c8_357, %c0_358], %2547 {strides = array<i32>} : memref<16x16xf32, #tpu.memory_space<vmem>>, vector<8x16xf32>,
    %cst_359 = arith.constant dense<0.000000e+00> : vector<8xf32>
    %2549 = vector.multi_reduction <add>, %2547, %cst_359 [1] : vector<8x16xf32> to vector<8xf32>
    %2550 = vector.shape_cast %2549 : vector<8xf32> to vector<8x1xf32>
    %2551 = arith.addf %1464, %2550 : vector<8x1xf32>
    %2552 = arith.mulf %2547, %2547 : vector<8x16xf32>
    %cst_360 = arith.constant dense<0.000000e+00> : vector<8xf32>
    %2553 = vector.multi_reduction <add>, %2552, %cst_360 [1] : vector<8x16xf32> to vector<8xf32>
    %2554 = vector.shape_cast %2553 : vector<8xf32> to vector<8x1xf32>
    %2555 = arith.addf %1465, %2554 : vector<8x1xf32>
    %cst_361 = arith.constant 6.250000e-02 : f32
    %2556 = vector.broadcast %cst_361 : f32 to vector<8x1xf32>
    %2557 = arith.mulf %2551, %2556 : vector<8x1xf32>
    %2558 = arith.mulf %2551, %2557 : vector<8x1xf32>
    %2559 = arith.subf %2555, %2558 : vector<8x1xf32>
    %2560 = math.rsqrt %2559 : vector<8x1xf32>
    %c8_362 = arith.constant 8 : index
    %c0_363 = arith.constant 0 : index
    %2561 = vector.load %arg1[%c8_362, %c0_363] : memref<16x16xf32, #tpu.memory_space<vmem>>, vector<8x16xf32>
    %2562 = vector.broadcast %2557 : vector<8x1xf32> to vector<8x16xf32>
    %2563 = arith.subf %2561, %2562 : vector<8x16xf32>
    %2564 = vector.broadcast %2560 : vector<8x1xf32> to vector<8x16xf32>
    %2565 = arith.mulf %2563, %2564 : vector<8x16xf32>
    %c8_364 = arith.constant 8 : index
    %c0_365 = arith.constant 0 : index
    %2566 = vector.load %arg1[%c8_364, %c0_365] : memref<16x16xf32, #tpu.memory_space<vmem>>, vector<8x16xf32>
    tpu.vector_store %arg1[%c8_364, %c0_365], %2565 {strides = array<i32>} : memref<16x16xf32, #tpu.memory_space<vmem>>, vector<8x16xf32>,
    %c0_366 = arith.constant 0 : index
    %c0_367 = arith.constant 0 : index
    %2567 = vector.load %arg1[%c0_366, %c0_367] : memref<16x16xf32, #tpu.memory_space<vmem>>, vector<16x16xf32>
    %cst_368 = arith.constant dense<0.000000e+00> : vector<16x16xf32>
    %2568 = tpu.matmul %2567, %2567, %cst_368 {dimension_numbers = #tpu.dot_dimension_numbers<[1], [1], [0], [0], [0, 0, 1, 0], [], []>} : vector<16x16xf32>, vector<16x16xf32>, vector<16x16xf32> -> vector<16x16xf32>
    %cst_369 = arith.constant -1.000000e+00 : f32
    %cst_370 = arith.constant 1.000000e+00 : f32
    %2569 = vector.broadcast %cst_369 : f32 to vector<16x16xf32>
    %2570 = arith.maximumf %2569, %2568 : vector<16x16xf32>
    %2571 = vector.broadcast %cst_370 : f32 to vector<16x16xf32>
    %2572 = arith.minimumf %2571, %2570 : vector<16x16xf32>
    %cst_371 = arith.constant 1.000000e+00 : f32
    %2573 = vector.broadcast %cst_371 : f32 to vector<16x16xf32>
    %2574 = arith.subf %2573, %2572 : vector<16x16xf32>
    %c0_372 = arith.constant 0 : index
    %c0_373 = arith.constant 0 : index
    %c0_374 = arith.constant 0 : index
    %2575 = vector.load %arg12[%c0_372, %c0_373, %c0_374] : memref<1x16x16xf32, #tpu.memory_space<vmem>>, vector<1x16x16xf32>
    %2576 = vector.shape_cast %2575 : vector<1x16x16xf32> to vector<16x16xf32>
    %2577 = vector.shape_cast %2574 : vector<16x16xf32> to vector<1x16x16xf32>
    tpu.vector_store %arg12[%c0_372, %c0_373, %c0_374], %2577 {strides = array<i32>} : memref<1x16x16xf32, #tpu.memory_space<vmem>>, vector<1x16x16xf32>,
    return
  }
  func.func @transform_0(%arg0: i32) -> (i32, i32) {
    %c0_i32 = arith.constant 0 : i32
    %c0_i32_0 = arith.constant 0 : i32
    return %arg0, %c0_i32 : i32, i32
  }
  func.func @transform_1(%arg0: i32) -> i32 {
    %c0_i32 = arith.constant 0 : i32
    %c0_i32_0 = arith.constant 0 : i32
    return %c0_i32 : i32
  }
  func.func @transform_2(%arg0: i32) -> i32 {
    %c0_i32 = arith.constant 0 : i32
    %c0_i32_0 = arith.constant 0 : i32
    return %c0_i32 : i32
  }
  func.func @transform_3(%arg0: i32) -> i32 {
    %c0_i32 = arith.constant 0 : i32
    %c0_i32_0 = arith.constant 0 : i32
    return %c0_i32 : i32
  }
  func.func @transform_4(%arg0: i32) -> i32 {
    %c0_i32 = arith.constant 0 : i32
    %c0_i32_0 = arith.constant 0 : i32
    return %c0_i32 : i32
  }
  func.func @transform_5(%arg0: i32) -> i32 {
    %c0_i32 = arith.constant 0 : i32
    %c0_i32_0 = arith.constant 0 : i32
    return %c0_i32 : i32
  }
  func.func @transform_6(%arg0: i32) -> i32 {
    %c0_i32 = arith.constant 0 : i32
    %c0_i32_0 = arith.constant 0 : i32
    return %c0_i32 : i32
  }
  func.func @transform_7(%arg0: i32) -> i32 {
    %c0_i32 = arith.constant 0 : i32
    %c0_i32_0 = arith.constant 0 : i32
    return %c0_i32 : i32
  }
  func.func @transform_8(%arg0: i32) -> i32 {
    %c0_i32 = arith.constant 0 : i32
    %c0_i32_0 = arith.constant 0 : i32
    return %c0_i32 : i32
  }
  func.func @transform_9(%arg0: i32) -> i32 {
    %c0_i32 = arith.constant 0 : i32
    %c0_i32_0 = arith.constant 0 : i32
    return %c0_i32 : i32
  }
  func.func @transform_10(%arg0: i32) -> i32 {
    %c0_i32 = arith.constant 0 : i32
    %c0_i32_0 = arith.constant 0 : i32
    return %c0_i32 : i32
  }
  func.func @transform_11(%arg0: i32) -> (i32, i32, i32) {
    %c0_i32 = arith.constant 0 : i32
    %c0_i32_0 = arith.constant 0 : i32
    %c0_i32_1 = arith.constant 0 : i32
    return %arg0, %c0_i32, %c0_i32_0 : i32, i32, i32
  }
}

</mosaic_0001>

<llo_original>
// kernel: tpu_custom_call.1
$region0: #{tpu_custom_call.1}
  #allocation0 [shape = 'u32[]', space=smem, size = 0x4, offset = 0x4, fixed_abs, tag = 'smem constant byte address 0x4 - core index']
  #allocation1 [shape = 'u32[144,128]{1,0:T(1,128)}', space=vmem, size = 0x12000, scoped, tag = 'internal scratch']
  #allocation2 [shape = 'f32[1]{0:T(128)S(6)}', space=smem, size = 0x200, scoped, tag = 'scoped memory for tpu_custom_call.1']
  %s0 = inlined_call_operand.hbm [shape: f32[16,16], index: 0, kind: input, shape index: {}]
  %s1 = inlined_call_operand.vmem [shape: f32[10], index: 1, kind: input, shape index: {}]
  %s2 = inlined_call_operand.vmem [shape: f32[10], index: 2, kind: input, shape index: {}]
  %s3 = inlined_call_operand.vmem [shape: f32[100], index: 3, kind: input, shape index: {}]
  %s4 = inlined_call_operand.vmem [shape: f32[10], index: 4, kind: input, shape index: {}]
  %s5 = inlined_call_operand.vmem [shape: f32[100], index: 5, kind: input, shape index: {}]
  %s6 = inlined_call_operand.vmem [shape: f32[10], index: 6, kind: input, shape index: {}]
  %s7 = inlined_call_operand.vmem [shape: f32[100], index: 7, kind: input, shape index: {}]
  %s8 = inlined_call_operand.vmem [shape: f32[10], index: 8, kind: input, shape index: {}]
  %s9 = inlined_call_operand.vmem [shape: f32[10], index: 9, kind: input, shape index: {}]
  %s10 = inlined_call_operand.<no memory space> [shape: f32[1], index: 10, kind: input, shape index: {}]
  %s11 = inlined_call_operand.hbm [shape: f32[1,16,16], index: 11, kind: output, shape index: {}]
  %s12 = sld [smem:[#allocation0]]
  $region94: #{tpu_custom_call.1} parent=0
    _
  %s14 = ssub.s32 1, %s12
  %s15 = scalar_select 0, %s14, %s12
  %16 = sst [smem:[#allocation2]] %s10
  $region1: #{tpu_custom_call.1} parent=0
    #allocation3 [shape = 'u8[8192]{0}', space=vmem, size = 0x2000, scoped, tag = 'input window, operand 0, single buffered']
    #allocation4 [shape = 's32[1]{0}', space=sflag, size = 0x4, scoped, tag = 'scoped memory for tpu_custom_call.1']
    #allocation5 [shape = 's32[1]{0}', space=sflag, size = 0x4, scoped, tag = 'scoped memory for tpu_custom_call.1']
    #allocation6 [shape = 's32[1]{0}', space=sflag, size = 0x4, scoped, tag = 'scoped memory for tpu_custom_call.1']
    #allocation7 [shape = 'u8[512]{0}', space=smem, size = 0x200, scoped, tag = 'input window, operand 1, single buffered']
    #allocation8 [shape = 'u8[512]{0}', space=smem, size = 0x200, scoped, tag = 'input window, operand 2, single buffered']
    #allocation9 [shape = 's32[1]{0}', space=sflag, size = 0x4, scoped, tag = 'scoped memory for tpu_custom_call.1']
    #allocation10 [shape = 'u8[512]{0}', space=smem, size = 0x200, scoped, tag = 'input window, operand 3, single buffered']
    #allocation11 [shape = 'u8[512]{0}', space=smem, size = 0x200, scoped, tag = 'input window, operand 4, single buffered']
    #allocation12 [shape = 's32[1]{0}', space=sflag, size = 0x4, scoped, tag = 'scoped memory for tpu_custom_call.1']
    #allocation13 [shape = 'u8[512]{0}', space=smem, size = 0x200, scoped, tag = 'input window, operand 5, single buffered']
    #allocation14 [shape = 'u8[512]{0}', space=smem, size = 0x200, scoped, tag = 'input window, operand 6, single buffered']
    #allocation15 [shape = 's32[1]{0}', space=sflag, size = 0x4, scoped, tag = 'scoped memory for tpu_custom_call.1']
    #allocation16 [shape = 'u8[512]{0}', space=smem, size = 0x200, scoped, tag = 'input window, operand 7, single buffered']
    #allocation17 [shape = 'u8[512]{0}', space=smem, size = 0x200, scoped, tag = 'input window, operand 8, single buffered']
    #allocation18 [shape = 's32[1]{0}', space=sflag, size = 0x4, scoped, tag = 'scoped memory for tpu_custom_call.1']
    #allocation19 [shape = 'u8[512]{0}', space=smem, size = 0x200, scoped, tag = 'input window, operand 9, single buffered']
    #allocation20 [shape = 'u8[8192]{0}', space=vmem, size = 0x2000, scoped, tag = 'output window, operand 0, single buffered']
    %17 = vsyncpa [#allocation4], 0
    %18 = vsyncpa [#allocation6], 0
    %19 = vsyncpa [#allocation9], 0
    %20 = vsyncpa [#allocation12], 0
    %21 = vsyncpa [#allocation15], 0
    %22 = vsyncpa [#allocation18], 0
    %23 = vsyncpa [#allocation5], 0
    // Predicated region
    $region2: #{tpu_custom_call.1} parent=1 // pred_check
      _
    $region3: #{tpu_custom_call.1} parent=1 // pred_check_branch
      %25 = sbr.rel (0) target = $region5
    $region4: #{tpu_custom_call.1} parent=1 // pred_region
      %s27 = ssub.s32 256, 256
      %28 = vsyncadd [#allocation4], %s27
      %s29 = sshll.u32 [#allocation3], 4
      %s30 = int_to_ptr.vmem [resolvable:$true] %s29
      %35 = dma.hbm_to_vmem [thread:$0]  %s0, 256, %s30, [#allocation4], 128, 128, 8
    $region5: #{tpu_custom_call.1} parent=1 // pred_fallthru
      _
    // Predicated region
    $region6: #{tpu_custom_call.1} parent=1 // pred_check
      _
    $region7: #{tpu_custom_call.1} parent=1 // pred_check_branch
      %37 = sbr.rel (0) target = $region9
    $region8: #{tpu_custom_call.1} parent=1 // pred_region
      %s39 = ssub.s32 16, 16
      %40 = vsyncadd [#allocation6], %s39
      %s42 = sshll.u32 %s1, 4
      %s43 = int_to_ptr.vmem [resolvable:$true] %s42
      %45 = dma.vmem_to_smem %s43, 16, [#allocation7], [#allocation6]
    $region9: #{tpu_custom_call.1} parent=1 // pred_fallthru
      _
    // Predicated region
    $region10: #{tpu_custom_call.1} parent=1 // pred_check
      _
    $region11: #{tpu_custom_call.1} parent=1 // pred_check_branch
      %47 = sbr.rel (0) target = $region13
    $region12: #{tpu_custom_call.1} parent=1 // pred_region
      %s49 = ssub.s32 16, 16
      %50 = vsyncadd [#allocation9], %s49
      %s52 = sshll.u32 %s2, 4
      %s53 = int_to_ptr.vmem [resolvable:$true] %s52
      %55 = dma.vmem_to_smem %s53, 16, [#allocation8], [#allocation9]
    $region13: #{tpu_custom_call.1} parent=1 // pred_fallthru
      _
    // Predicated region
    $region14: #{tpu_custom_call.1} parent=1 // pred_check
      _
    $region15: #{tpu_custom_call.1} parent=1 // pred_check_branch
      %57 = sbr.rel (0) target = $region17
    $region16: #{tpu_custom_call.1} parent=1 // pred_region
      %s59 = ssub.s32 16, 16
      %60 = vsyncadd [#allocation9], %s59
      %s62 = sshll.u32 %s3, 4
      %s63 = int_to_ptr.vmem [resolvable:$true] %s62
      %65 = dma.vmem_to_smem %s63, 16, [#allocation10], [#allocation9]
    $region17: #{tpu_custom_call.1} parent=1 // pred_fallthru
      _
    // Predicated region
    $region18: #{tpu_custom_call.1} parent=1 // pred_check
      _
    $region19: #{tpu_custom_call.1} parent=1 // pred_check_branch
      %67 = sbr.rel (0) target = $region21
    $region20: #{tpu_custom_call.1} parent=1 // pred_region
      %s69 = ssub.s32 16, 16
      %70 = vsyncadd [#allocation12], %s69
      %s72 = sshll.u32 %s4, 4
      %s73 = int_to_ptr.vmem [resolvable:$true] %s72
      %75 = dma.vmem_to_smem %s73, 16, [#allocation11], [#allocation12]
    $region21: #{tpu_custom_call.1} parent=1 // pred_fallthru
      _
    // Predicated region
    $region22: #{tpu_custom_call.1} parent=1 // pred_check
      _
    $region23: #{tpu_custom_call.1} parent=1 // pred_check_branch
      %77 = sbr.rel (0) target = $region25
    $region24: #{tpu_custom_call.1} parent=1 // pred_region
      %s79 = ssub.s32 16, 16
      %80 = vsyncadd [#allocation12], %s79
      %s82 = sshll.u32 %s5, 4
      %s83 = int_to_ptr.vmem [resolvable:$true] %s82
      %85 = dma.vmem_to_smem %s83, 16, [#allocation13], [#allocation12]
    $region25: #{tpu_custom_call.1} parent=1 // pred_fallthru
      _
    // Predicated region
    $region26: #{tpu_custom_call.1} parent=1 // pred_check
      _
    $region27: #{tpu_custom_call.1} parent=1 // pred_check_branch
      %87 = sbr.rel (0) target = $region29
    $region28: #{tpu_custom_call.1} parent=1 // pred_region
      %s89 = ssub.s32 16, 16
      %90 = vsyncadd [#allocation15], %s89
      %s92 = sshll.u32 %s6, 4
      %s93 = int_to_ptr.vmem [resolvable:$true] %s92
      %95 = dma.vmem_to_smem %s93, 16, [#allocation14], [#allocation15]
    $region29: #{tpu_custom_call.1} parent=1 // pred_fallthru
      _
    // Predicated region
    $region30: #{tpu_custom_call.1} parent=1 // pred_check
      _
    $region31: #{tpu_custom_call.1} parent=1 // pred_check_branch
      %97 = sbr.rel (0) target = $region33
    $region32: #{tpu_custom_call.1} parent=1 // pred_region
      %s99 = ssub.s32 16, 16
      %100 = vsyncadd [#allocation15], %s99
      %s102 = sshll.u32 %s7, 4
      %s103 = int_to_ptr.vmem [resolvable:$true] %s102
      %105 = dma.vmem_to_smem %s103, 16, [#allocation16], [#allocation15]
    $region33: #{tpu_custom_call.1} parent=1 // pred_fallthru
      _
    // Predicated region
    $region34: #{tpu_custom_call.1} parent=1 // pred_check
      _
    $region35: #{tpu_custom_call.1} parent=1 // pred_check_branch
      %107 = sbr.rel (0) target = $region37
    $region36: #{tpu_custom_call.1} parent=1 // pred_region
      %s109 = ssub.s32 16, 16
      %110 = vsyncadd [#allocation18], %s109
      %s112 = sshll.u32 %s8, 4
      %s113 = int_to_ptr.vmem [resolvable:$true] %s112
      %115 = dma.vmem_to_smem %s113, 16, [#allocation17], [#allocation18]
    $region37: #{tpu_custom_call.1} parent=1 // pred_fallthru
      _
    // Predicated region
    $region38: #{tpu_custom_call.1} parent=1 // pred_check
      _
    $region39: #{tpu_custom_call.1} parent=1 // pred_check_branch
      %117 = sbr.rel (0) target = $region41
    $region40: #{tpu_custom_call.1} parent=1 // pred_region
      %s119 = ssub.s32 16, 16
      %120 = vsyncadd [#allocation18], %s119
      %s122 = sshll.u32 %s9, 4
      %s123 = int_to_ptr.vmem [resolvable:$true] %s122
      %125 = dma.vmem_to_smem %s123, 16, [#allocation19], [#allocation18]
    $region41: #{tpu_custom_call.1} parent=1 // pred_fallthru
      _
    // Predicated region
    $region42: #{tpu_custom_call.1} parent=1 // pred_check
      _
    $region43: #{tpu_custom_call.1} parent=1 // pred_check_branch
      %127 = sbr.rel (0) target = $region45
    $region44: #{tpu_custom_call.1} parent=1 // pred_region
      _
    $region45: #{tpu_custom_call.1} parent=1 // pred_fallthru
      _
    // Predicated region
    $region46: #{tpu_custom_call.1} parent=1 // pred_check
      _
    $region47: #{tpu_custom_call.1} parent=1 // pred_check_branch
      %129 = sbr.rel (0) target = $region49
    $region48: #{tpu_custom_call.1} parent=1 // pred_region
      %130 = dma.done [#allocation4], 256
    $region49: #{tpu_custom_call.1} parent=1 // pred_fallthru
      _
    // Predicated region
    $region50: #{tpu_custom_call.1} parent=1 // pred_check
      _
    $region51: #{tpu_custom_call.1} parent=1 // pred_check_branch
      %132 = sbr.rel (0) target = $region53
    $region52: #{tpu_custom_call.1} parent=1 // pred_region
      %133 = dma.done [#allocation6], 16
    $region53: #{tpu_custom_call.1} parent=1 // pred_fallthru
      _
    // Predicated region
    $region54: #{tpu_custom_call.1} parent=1 // pred_check
      _
    $region55: #{tpu_custom_call.1} parent=1 // pred_check_branch
      %135 = sbr.rel (0) target = $region57
    $region56: #{tpu_custom_call.1} parent=1 // pred_region
      %136 = dma.done [#allocation9], 16
    $region57: #{tpu_custom_call.1} parent=1 // pred_fallthru
      _
    // Predicated region
    $region58: #{tpu_custom_call.1} parent=1 // pred_check
      _
    $region59: #{tpu_custom_call.1} parent=1 // pred_check_branch
      %138 = sbr.rel (0) target = $region61
    $region60: #{tpu_custom_call.1} parent=1 // pred_region
      %139 = dma.done [#allocation9], 16
    $region61: #{tpu_custom_call.1} parent=1 // pred_fallthru
      _
    // Predicated region
    $region62: #{tpu_custom_call.1} parent=1 // pred_check
      _
    $region63: #{tpu_custom_call.1} parent=1 // pred_check_branch
      %141 = sbr.rel (0) target = $region65
    $region64: #{tpu_custom_call.1} parent=1 // pred_region
      %142 = dma.done [#allocation12], 16
    $region65: #{tpu_custom_call.1} parent=1 // pred_fallthru
      _
    // Predicated region
    $region66: #{tpu_custom_call.1} parent=1 // pred_check
      _
    $region67: #{tpu_custom_call.1} parent=1 // pred_check_branch
      %144 = sbr.rel (0) target = $region69
    $region68: #{tpu_custom_call.1} parent=1 // pred_region
      %145 = dma.done [#allocation12], 16
    $region69: #{tpu_custom_call.1} parent=1 // pred_fallthru
      _
    // Predicated region
    $region70: #{tpu_custom_call.1} parent=1 // pred_check
      _
    $region71: #{tpu_custom_call.1} parent=1 // pred_check_branch
      %147 = sbr.rel (0) target = $region73
    $region72: #{tpu_custom_call.1} parent=1 // pred_region
      %148 = dma.done [#allocation15], 16
    $region73: #{tpu_custom_call.1} parent=1 // pred_fallthru
      _
    // Predicated region
    $region74: #{tpu_custom_call.1} parent=1 // pred_check
      _
    $region75: #{tpu_custom_call.1} parent=1 // pred_check_branch
      %150 = sbr.rel (0) target = $region77
    $region76: #{tpu_custom_call.1} parent=1 // pred_region
      %151 = dma.done [#allocation15], 16
    $region77: #{tpu_custom_call.1} parent=1 // pred_fallthru
      _
    // Predicated region
    $region78: #{tpu_custom_call.1} parent=1 // pred_check
      _
    $region79: #{tpu_custom_call.1} parent=1 // pred_check_branch
      %153 = sbr.rel (0) target = $region81
    $region80: #{tpu_custom_call.1} parent=1 // pred_region
      %154 = dma.done [#allocation18], 16
    $region81: #{tpu_custom_call.1} parent=1 // pred_fallthru
      _
    // Predicated region
    $region82: #{tpu_custom_call.1} parent=1 // pred_check
      _
    $region83: #{tpu_custom_call.1} parent=1 // pred_check_branch
      %156 = sbr.rel (0) target = $region85
    $region84: #{tpu_custom_call.1} parent=1 // pred_region
      %157 = dma.done [#allocation18], 16
    $region85: #{tpu_custom_call.1} parent=1 // pred_fallthru
      _
    %158 = sfence
    %s159 = sld [smem:[#allocation7]]
    %s160 = sld [smem:[#allocation7 + $0x1]]
    %s161 = sld [smem:[#allocation7 + $0x2]]
    %s162 = sld [smem:[#allocation7 + $0x3]]
    %s163 = sld [smem:[#allocation7 + $0x4]]
    %s164 = sld [smem:[#allocation7 + $0x5]]
    %s165 = sld [smem:[#allocation7 + $0x6]]
    %s166 = sld [smem:[#allocation7 + $0x7]]
    %s167 = sld [smem:[#allocation7 + $0x8]]
    %s168 = sld [smem:[#allocation7 + $0x9]]
    %s169 = sld [smem:[#allocation8]]
    %s170 = sld [smem:[#allocation8 + $0x1]]
    %s171 = sld [smem:[#allocation8 + $0x2]]
    %s172 = sld [smem:[#allocation8 + $0x3]]
    %s173 = sld [smem:[#allocation8 + $0x4]]
    %s174 = sld [smem:[#allocation8 + $0x5]]
    %s175 = sld [smem:[#allocation8 + $0x6]]
    %s176 = sld [smem:[#allocation8 + $0x7]]
    %s177 = sld [smem:[#allocation8 + $0x8]]
    %s178 = sld [smem:[#allocation8 + $0x9]]
    %s179 = sld [smem:[#allocation10]]
    %s180 = sld [smem:[#allocation10 + $0x1]]
    %s181 = sld [smem:[#allocation10 + $0x2]]
    %s182 = sld [smem:[#allocation10 + $0x3]]
    %s183 = sld [smem:[#allocation10 + $0x4]]
    %s184 = sld [smem:[#allocation10 + $0x5]]
    %s185 = sld [smem:[#allocation10 + $0x6]]
    %s186 = sld [smem:[#allocation10 + $0x7]]
    %s187 = sld [smem:[#allocation10 + $0x8]]
    %s188 = sld [smem:[#allocation10 + $0x9]]
    %s189 = sld [smem:[#allocation10 + $0xa]]
    %s190 = sld [smem:[#allocation10 + $0xb]]
    %s191 = sld [smem:[#allocation10 + $0xc]]
    %s192 = sld [smem:[#allocation10 + $0xd]]
    %s193 = sld [smem:[#allocation10 + $0xe]]
    %s194 = sld [smem:[#allocation10 + $0xf]]
    %s195 = sld [smem:[#allocation10 + $0x10]]
    %s196 = sld [smem:[#allocation10 + $0x11]]
    %s197 = sld [smem:[#allocation10 + $0x12]]
    %s198 = sld [smem:[#allocation10 + $0x13]]
    %s199 = sld [smem:[#allocation10 + $0x14]]
    %s200 = sld [smem:[#allocation10 + $0x15]]
    %s201 = sld [smem:[#allocation10 + $0x16]]
    %s202 = sld [smem:[#allocation10 + $0x17]]
    %s203 = sld [smem:[#allocation10 + $0x18]]
    %s204 = sld [smem:[#allocation10 + $0x19]]
    %s205 = sld [smem:[#allocation10 + $0x1a]]
    %s206 = sld [smem:[#allocation10 + $0x1b]]
    %s207 = sld [smem:[#allocation10 + $0x1c]]
    %s208 = sld [smem:[#allocation10 + $0x1d]]
    %s209 = sld [smem:[#allocation10 + $0x1e]]
    %s210 = sld [smem:[#allocation10 + $0x1f]]
    %s211 = sld [smem:[#allocation10 + $0x20]]
    %s212 = sld [smem:[#allocation10 + $0x21]]
    %s213 = sld [smem:[#allocation10 + $0x22]]
    %s214 = sld [smem:[#allocation10 + $0x23]]
    %s215 = sld [smem:[#allocation10 + $0x24]]
    %s216 = sld [smem:[#allocation10 + $0x25]]
    %s217 = sld [smem:[#allocation10 + $0x26]]
    %s218 = sld [smem:[#allocation10 + $0x27]]
    %s219 = sld [smem:[#allocation10 + $0x28]]
    %s220 = sld [smem:[#allocation10 + $0x29]]
    %s221 = sld [smem:[#allocation10 + $0x2a]]
    %s222 = sld [smem:[#allocation10 + $0x2b]]
    %s223 = sld [smem:[#allocation10 + $0x2c]]
    %s224 = sld [smem:[#allocation10 + $0x2d]]
    %s225 = sld [smem:[#allocation10 + $0x2e]]
    %s226 = sld [smem:[#allocation10 + $0x2f]]
    %s227 = sld [smem:[#allocation10 + $0x30]]
    %s228 = sld [smem:[#allocation10 + $0x31]]
    %s229 = sld [smem:[#allocation10 + $0x32]]
    %s230 = sld [smem:[#allocation10 + $0x33]]
    %s231 = sld [smem:[#allocation10 + $0x34]]
    %s232 = sld [smem:[#allocation10 + $0x35]]
    %s233 = sld [smem:[#allocation10 + $0x36]]
    %s234 = sld [smem:[#allocation10 + $0x37]]
    %s235 = sld [smem:[#allocation10 + $0x38]]
    %s236 = sld [smem:[#allocation10 + $0x39]]
    %s237 = sld [smem:[#allocation10 + $0x3a]]
    %s238 = sld [smem:[#allocation10 + $0x3b]]
    %s239 = sld [smem:[#allocation10 + $0x3c]]
    %s240 = sld [smem:[#allocation10 + $0x3d]]
    %s241 = sld [smem:[#allocation10 + $0x3e]]
    %s242 = sld [smem:[#allocation10 + $0x3f]]
    %s243 = sld [smem:[#allocation10 + $0x40]]
    %s244 = sld [smem:[#allocation10 + $0x41]]
    %s245 = sld [smem:[#allocation10 + $0x42]]
    %s246 = sld [smem:[#allocation10 + $0x43]]
    %s247 = sld [smem:[#allocation10 + $0x44]]
    %s248 = sld [smem:[#allocation10 + $0x45]]
    %s249 = sld [smem:[#allocation10 + $0x46]]
    %s250 = sld [smem:[#allocation10 + $0x47]]
    %s251 = sld [smem:[#allocation10 + $0x48]]
    %s252 = sld [smem:[#allocation10 + $0x49]]
    %s253 = sld [smem:[#allocation10 + $0x4a]]
    %s254 = sld [smem:[#allocation10 + $0x4b]]
    %s255 = sld [smem:[#allocation10 + $0x4c]]
    %s256 = sld [smem:[#allocation10 + $0x4d]]
    %s257 = sld [smem:[#allocation10 + $0x4e]]
    %s258 = sld [smem:[#allocation10 + $0x4f]]
    %s259 = sld [smem:[#allocation10 + $0x50]]
    %s260 = sld [smem:[#allocation10 + $0x51]]
    %s261 = sld [smem:[#allocation10 + $0x52]]
    %s262 = sld [smem:[#allocation10 + $0x53]]
    %s263 = sld [smem:[#allocation10 + $0x54]]
    %s264 = sld [smem:[#allocation10 + $0x55]]
    %s265 = sld [smem:[#allocation10 + $0x56]]
    %s266 = sld [smem:[#allocation10 + $0x57]]
    %s267 = sld [smem:[#allocation10 + $0x58]]
    %s268 = sld [smem:[#allocation10 + $0x59]]
    %s269 = sld [smem:[#allocation10 + $0x5a]]
    %s270 = sld [smem:[#allocation10 + $0x5b]]
    %s271 = sld [smem:[#allocation10 + $0x5c]]
    %s272 = sld [smem:[#allocation10 + $0x5d]]
    %s273 = sld [smem:[#allocation10 + $0x5e]]
    %s274 = sld [smem:[#allocation10 + $0x5f]]
    %s275 = sld [smem:[#allocation10 + $0x60]]
    %s276 = sld [smem:[#allocation10 + $0x61]]
    %s277 = sld [smem:[#allocation10 + $0x62]]
    %s278 = sld [smem:[#allocation10 + $0x63]]
    %s279 = sld [smem:[#allocation11]]
    %s280 = sld [smem:[#allocation11 + $0x1]]
    %s281 = sld [smem:[#allocation11 + $0x2]]
    %s282 = sld [smem:[#allocation11 + $0x3]]
    %s283 = sld [smem:[#allocation11 + $0x4]]
    %s284 = sld [smem:[#allocation11 + $0x5]]
    %s285 = sld [smem:[#allocation11 + $0x6]]
    %s286 = sld [smem:[#allocation11 + $0x7]]
    %s287 = sld [smem:[#allocation11 + $0x8]]
    %s288 = sld [smem:[#allocation11 + $0x9]]
    %s289 = sld [smem:[#allocation13]]
    %s290 = sld [smem:[#allocation13 + $0x1]]
    %s291 = sld [smem:[#allocation13 + $0x2]]
    %s292 = sld [smem:[#allocation13 + $0x3]]
    %s293 = sld [smem:[#allocation13 + $0x4]]
    %s294 = sld [smem:[#allocation13 + $0x5]]
    %s295 = sld [smem:[#allocation13 + $0x6]]
    %s296 = sld [smem:[#allocation13 + $0x7]]
    %s297 = sld [smem:[#allocation13 + $0x8]]
    %s298 = sld [smem:[#allocation13 + $0x9]]
    %s299 = sld [smem:[#allocation13 + $0xa]]
    %s300 = sld [smem:[#allocation13 + $0xb]]
    %s301 = sld [smem:[#allocation13 + $0xc]]
    %s302 = sld [smem:[#allocation13 + $0xd]]
    %s303 = sld [smem:[#allocation13 + $0xe]]
    %s304 = sld [smem:[#allocation13 + $0xf]]
    %s305 = sld [smem:[#allocation13 + $0x10]]
    %s306 = sld [smem:[#allocation13 + $0x11]]
    %s307 = sld [smem:[#allocation13 + $0x12]]
    %s308 = sld [smem:[#allocation13 + $0x13]]
    %s309 = sld [smem:[#allocation13 + $0x14]]
    %s310 = sld [smem:[#allocation13 + $0x15]]
    %s311 = sld [smem:[#allocation13 + $0x16]]
    %s312 = sld [smem:[#allocation13 + $0x17]]
    %s313 = sld [smem:[#allocation13 + $0x18]]
    %s314 = sld [smem:[#allocation13 + $0x19]]
    %s315 = sld [smem:[#allocation13 + $0x1a]]
    %s316 = sld [smem:[#allocation13 + $0x1b]]
    %s317 = sld [smem:[#allocation13 + $0x1c]]
    %s318 = sld [smem:[#allocation13 + $0x1d]]
    %s319 = sld [smem:[#allocation13 + $0x1e]]
    %s320 = sld [smem:[#allocation13 + $0x1f]]
    %s321 = sld [smem:[#allocation13 + $0x20]]
    %s322 = sld [smem:[#allocation13 + $0x21]]
    %s323 = sld [smem:[#allocation13 + $0x22]]
    %s324 = sld [smem:[#allocation13 + $0x23]]
    %s325 = sld [smem:[#allocation13 + $0x24]]
    %s326 = sld [smem:[#allocation13 + $0x25]]
    %s327 = sld [smem:[#allocation13 + $0x26]]
    %s328 = sld [smem:[#allocation13 + $0x27]]
    %s329 = sld [smem:[#allocation13 + $0x28]]
    %s330 = sld [smem:[#allocation13 + $0x29]]
    %s331 = sld [smem:[#allocation13 + $0x2a]]
    %s332 = sld [smem:[#allocation13 + $0x2b]]
    %s333 = sld [smem:[#allocation13 + $0x2c]]
    %s334 = sld [smem:[#allocation13 + $0x2d]]
    %s335 = sld [smem:[#allocation13 + $0x2e]]
    %s336 = sld [smem:[#allocation13 + $0x2f]]
    %s337 = sld [smem:[#allocation13 + $0x30]]
    %s338 = sld [smem:[#allocation13 + $0x31]]
    %s339 = sld [smem:[#allocation13 + $0x32]]
    %s340 = sld [smem:[#allocation13 + $0x33]]
    %s341 = sld [smem:[#allocation13 + $0x34]]
    %s342 = sld [smem:[#allocation13 + $0x35]]
    %s343 = sld [smem:[#allocation13 + $0x36]]
    %s344 = sld [smem:[#allocation13 + $0x37]]
    %s345 = sld [smem:[#allocation13 + $0x38]]
    %s346 = sld [smem:[#allocation13 + $0x39]]
    %s347 = sld [smem:[#allocation13 + $0x3a]]
    %s348 = sld [smem:[#allocation13 + $0x3b]]
    %s349 = sld [smem:[#allocation13 + $0x3c]]
    %s350 = sld [smem:[#allocation13 + $0x3d]]
    %s351 = sld [smem:[#allocation13 + $0x3e]]
    %s352 = sld [smem:[#allocation13 + $0x3f]]
    %s353 = sld [smem:[#allocation13 + $0x40]]
    %s354 = sld [smem:[#allocation13 + $0x41]]
    %s355 = sld [smem:[#allocation13 + $0x42]]
    %s356 = sld [smem:[#allocation13 + $0x43]]
    %s357 = sld [smem:[#allocation13 + $0x44]]
    %s358 = sld [smem:[#allocation13 + $0x45]]
    %s359 = sld [smem:[#allocation13 + $0x46]]
    %s360 = sld [smem:[#allocation13 + $0x47]]
    %s361 = sld [smem:[#allocation13 + $0x48]]
    %s362 = sld [smem:[#allocation13 + $0x49]]
    %s363 = sld [smem:[#allocation13 + $0x4a]]
    %s364 = sld [smem:[#allocation13 + $0x4b]]
    %s365 = sld [smem:[#allocation13 + $0x4c]]
    %s366 = sld [smem:[#allocation13 + $0x4d]]
    %s367 = sld [smem:[#allocation13 + $0x4e]]
    %s368 = sld [smem:[#allocation13 + $0x4f]]
    %s369 = sld [smem:[#allocation13 + $0x50]]
    %s370 = sld [smem:[#allocation13 + $0x51]]
    %s371 = sld [smem:[#allocation13 + $0x52]]
    %s372 = sld [smem:[#allocation13 + $0x53]]
    %s373 = sld [smem:[#allocation13 + $0x54]]
    %s374 = sld [smem:[#allocation13 + $0x55]]
    %s375 = sld [smem:[#allocation13 + $0x56]]
    %s376 = sld [smem:[#allocation13 + $0x57]]
    %s377 = sld [smem:[#allocation13 + $0x58]]
    %s378 = sld [smem:[#allocation13 + $0x59]]
    %s379 = sld [smem:[#allocation13 + $0x5a]]
    %s380 = sld [smem:[#allocation13 + $0x5b]]
    %s381 = sld [smem:[#allocation13 + $0x5c]]
    %s382 = sld [smem:[#allocation13 + $0x5d]]
    %s383 = sld [smem:[#allocation13 + $0x5e]]
    %s384 = sld [smem:[#allocation13 + $0x5f]]
    %s385 = sld [smem:[#allocation13 + $0x60]]
    %s386 = sld [smem:[#allocation13 + $0x61]]
    %s387 = sld [smem:[#allocation13 + $0x62]]
    %s388 = sld [smem:[#allocation13 + $0x63]]
    %s389 = sld [smem:[#allocation14]]
    %s390 = sld [smem:[#allocation14 + $0x1]]
    %s391 = sld [smem:[#allocation14 + $0x2]]
    %s392 = sld [smem:[#allocation14 + $0x3]]
    %s393 = sld [smem:[#allocation14 + $0x4]]
    %s394 = sld [smem:[#allocation14 + $0x5]]
    %s395 = sld [smem:[#allocation14 + $0x6]]
    %s396 = sld [smem:[#allocation14 + $0x7]]
    %s397 = sld [smem:[#allocation14 + $0x8]]
    %s398 = sld [smem:[#allocation14 + $0x9]]
    %s399 = sld [smem:[#allocation16]]
    %s400 = sld [smem:[#allocation16 + $0x1]]
    %s401 = sld [smem:[#allocation16 + $0x2]]
    %s402 = sld [smem:[#allocation16 + $0x3]]
    %s403 = sld [smem:[#allocation16 + $0x4]]
    %s404 = sld [smem:[#allocation16 + $0x5]]
    %s405 = sld [smem:[#allocation16 + $0x6]]
    %s406 = sld [smem:[#allocation16 + $0x7]]
    %s407 = sld [smem:[#allocation16 + $0x8]]
    %s408 = sld [smem:[#allocation16 + $0x9]]
    %s409 = sld [smem:[#allocation16 + $0xa]]
    %s410 = sld [smem:[#allocation16 + $0xb]]
    %s411 = sld [smem:[#allocation16 + $0xc]]
    %s412 = sld [smem:[#allocation16 + $0xd]]
    %s413 = sld [smem:[#allocation16 + $0xe]]
    %s414 = sld [smem:[#allocation16 + $0xf]]
    %s415 = sld [smem:[#allocation16 + $0x10]]
    %s416 = sld [smem:[#allocation16 + $0x11]]
    %s417 = sld [smem:[#allocation16 + $0x12]]
    %s418 = sld [smem:[#allocation16 + $0x13]]
    %s419 = sld [smem:[#allocation16 + $0x14]]
    %s420 = sld [smem:[#allocation16 + $0x15]]
    %s421 = sld [smem:[#allocation16 + $0x16]]
    %s422 = sld [smem:[#allocation16 + $0x17]]
    %s423 = sld [smem:[#allocation16 + $0x18]]
    %s424 = sld [smem:[#allocation16 + $0x19]]
    %s425 = sld [smem:[#allocation16 + $0x1a]]
    %s426 = sld [smem:[#allocation16 + $0x1b]]
    %s427 = sld [smem:[#allocation16 + $0x1c]]
    %s428 = sld [smem:[#allocation16 + $0x1d]]
    %s429 = sld [smem:[#allocation16 + $0x1e]]
    %s430 = sld [smem:[#allocation16 + $0x1f]]
    %s431 = sld [smem:[#allocation16 + $0x20]]
    %s432 = sld [smem:[#allocation16 + $0x21]]
    %s433 = sld [smem:[#allocation16 + $0x22]]
    %s434 = sld [smem:[#allocation16 + $0x23]]
    %s435 = sld [smem:[#allocation16 + $0x24]]
    %s436 = sld [smem:[#allocation16 + $0x25]]
    %s437 = sld [smem:[#allocation16 + $0x26]]
    %s438 = sld [smem:[#allocation16 + $0x27]]
    %s439 = sld [smem:[#allocation16 + $0x28]]
    %s440 = sld [smem:[#allocation16 + $0x29]]
    %s441 = sld [smem:[#allocation16 + $0x2a]]
    %s442 = sld [smem:[#allocation16 + $0x2b]]
    %s443 = sld [smem:[#allocation16 + $0x2c]]
    %s444 = sld [smem:[#allocation16 + $0x2d]]
    %s445 = sld [smem:[#allocation16 + $0x2e]]
    %s446 = sld [smem:[#allocation16 + $0x2f]]
    %s447 = sld [smem:[#allocation16 + $0x30]]
    %s448 = sld [smem:[#allocation16 + $0x31]]
    %s449 = sld [smem:[#allocation16 + $0x32]]
    %s450 = sld [smem:[#allocation16 + $0x33]]
    %s451 = sld [smem:[#allocation16 + $0x34]]
    %s452 = sld [smem:[#allocation16 + $0x35]]
    %s453 = sld [smem:[#allocation16 + $0x36]]
    %s454 = sld [smem:[#allocation16 + $0x37]]
    %s455 = sld [smem:[#allocation16 + $0x38]]
    %s456 = sld [smem:[#allocation16 + $0x39]]
    %s457 = sld [smem:[#allocation16 + $0x3a]]
    %s458 = sld [smem:[#allocation16 + $0x3b]]
    %s459 = sld [smem:[#allocation16 + $0x3c]]
    %s460 = sld [smem:[#allocation16 + $0x3d]]
    %s461 = sld [smem:[#allocation16 + $0x3e]]
    %s462 = sld [smem:[#allocation16 + $0x3f]]
    %s463 = sld [smem:[#allocation16 + $0x40]]
    %s464 = sld [smem:[#allocation16 + $0x41]]
    %s465 = sld [smem:[#allocation16 + $0x42]]
    %s466 = sld [smem:[#allocation16 + $0x43]]
    %s467 = sld [smem:[#allocation16 + $0x44]]
    %s468 = sld [smem:[#allocation16 + $0x45]]
    %s469 = sld [smem:[#allocation16 + $0x46]]
    %s470 = sld [smem:[#allocation16 + $0x47]]
    %s471 = sld [smem:[#allocation16 + $0x48]]
    %s472 = sld [smem:[#allocation16 + $0x49]]
    %s473 = sld [smem:[#allocation16 + $0x4a]]
    %s474 = sld [smem:[#allocation16 + $0x4b]]
    %s475 = sld [smem:[#allocation16 + $0x4c]]
    %s476 = sld [smem:[#allocation16 + $0x4d]]
    %s477 = sld [smem:[#allocation16 + $0x4e]]
    %s478 = sld [smem:[#allocation16 + $0x4f]]
    %s479 = sld [smem:[#allocation16 + $0x50]]
    %s480 = sld [smem:[#allocation16 + $0x51]]
    %s481 = sld [smem:[#allocation16 + $0x52]]
    %s482 = sld [smem:[#allocation16 + $0x53]]
    %s483 = sld [smem:[#allocation16 + $0x54]]
    %s484 = sld [smem:[#allocation16 + $0x55]]
    %s485 = sld [smem:[#allocation16 + $0x56]]
    %s486 = sld [smem:[#allocation16 + $0x57]]
    %s487 = sld [smem:[#allocation16 + $0x58]]
    %s488 = sld [smem:[#allocation16 + $0x59]]
    %s489 = sld [smem:[#allocation16 + $0x5a]]
    %s490 = sld [smem:[#allocation16 + $0x5b]]
    %s491 = sld [smem:[#allocation16 + $0x5c]]
    %s492 = sld [smem:[#allocation16 + $0x5d]]
    %s493 = sld [smem:[#allocation16 + $0x5e]]
    %s494 = sld [smem:[#allocation16 + $0x5f]]
    %s495 = sld [smem:[#allocation16 + $0x60]]
    %s496 = sld [smem:[#allocation16 + $0x61]]
    %s497 = sld [smem:[#allocation16 + $0x62]]
    %s498 = sld [smem:[#allocation16 + $0x63]]
    %s499 = sld [smem:[#allocation17]]
    %s500 = sld [smem:[#allocation17 + $0x1]]
    %s501 = sld [smem:[#allocation17 + $0x2]]
    %s502 = sld [smem:[#allocation17 + $0x3]]
    %s503 = sld [smem:[#allocation17 + $0x4]]
    %s504 = sld [smem:[#allocation17 + $0x5]]
    %s505 = sld [smem:[#allocation17 + $0x6]]
    %s506 = sld [smem:[#allocation17 + $0x7]]
    %s507 = sld [smem:[#allocation17 + $0x8]]
    %s508 = sld [smem:[#allocation17 + $0x9]]
    %s509 = sld [smem:[#allocation19]]
    %s510 = sld [smem:[#allocation19 + $0x1]]
    %s511 = sld [smem:[#allocation19 + $0x2]]
    %s512 = sld [smem:[#allocation19 + $0x3]]
    %s513 = sld [smem:[#allocation19 + $0x4]]
    %s514 = sld [smem:[#allocation19 + $0x5]]
    %s515 = sld [smem:[#allocation19 + $0x6]]
    %s516 = sld [smem:[#allocation19 + $0x7]]
    %s517 = sld [smem:[#allocation19 + $0x8]]
    %s518 = sld [smem:[#allocation19 + $0x9]]
    %s519 = sld [smem:[#allocation2]]
    %v520 = vld [vmem:[#allocation3] sm:$0xff]
    %v521 = vstv %s159
    %v522 = vmul.f32 %v521, %v520
    %v523 = vstv %s169
    %v524 = vadd.f32 %v522, %v523
    %v525 = vmax.f32 %v524, 0.0
    %v526 = vstv %s160
    %v527 = vmul.f32 %v526, %v520
    %v528 = vstv %s170
    %v529 = vadd.f32 %v527, %v528
    %v530 = vmax.f32 %v529, 0.0
    %v531 = vstv %s161
    %v532 = vmul.f32 %v531, %v520
    %v533 = vstv %s171
    %v534 = vadd.f32 %v532, %v533
    %v535 = vmax.f32 %v534, 0.0
    %v536 = vstv %s162
    %v537 = vmul.f32 %v536, %v520
    %v538 = vstv %s172
    %v539 = vadd.f32 %v537, %v538
    %v540 = vmax.f32 %v539, 0.0
    %v541 = vstv %s163
    %v542 = vmul.f32 %v541, %v520
    %v543 = vstv %s173
    %v544 = vadd.f32 %v542, %v543
    %v545 = vmax.f32 %v544, 0.0
    %v546 = vstv %s164
    %v547 = vmul.f32 %v546, %v520
    %v548 = vstv %s174
    %v549 = vadd.f32 %v547, %v548
    %v550 = vmax.f32 %v549, 0.0
    %v551 = vstv %s165
    %v552 = vmul.f32 %v551, %v520
    %v553 = vstv %s175
    %v554 = vadd.f32 %v552, %v553
    %v555 = vmax.f32 %v554, 0.0
    %v556 = vstv %s166
    %v557 = vmul.f32 %v556, %v520
    %v558 = vstv %s176
    %v559 = vadd.f32 %v557, %v558
    %v560 = vmax.f32 %v559, 0.0
    %v561 = vstv %s167
    %v562 = vmul.f32 %v561, %v520
    %v563 = vstv %s177
    %v564 = vadd.f32 %v562, %v563
    %v565 = vmax.f32 %v564, 0.0
    %v566 = vstv %s168
    %v567 = vmul.f32 %v566, %v520
    %v568 = vstv %s178
    %v569 = vadd.f32 %v567, %v568
    %v570 = vmax.f32 %v569, 0.0
    %v571 = vstv %s179
    %v572 = vmul.f32 %v571, %v525
    %v573 = vstv %s279
    %v574 = vadd.f32 %v573, %v572
    %v575 = vstv %s180
    %v576 = vmul.f32 %v575, %v530
    %v577 = vadd.f32 %v574, %v576
    %v578 = vstv %s181
    %v579 = vmul.f32 %v578, %v535
    %v580 = vadd.f32 %v577, %v579
    %v581 = vstv %s182
    %v582 = vmul.f32 %v581, %v540
    %v583 = vadd.f32 %v580, %v582
    %v584 = vstv %s183
    %v585 = vmul.f32 %v584, %v545
    %v586 = vadd.f32 %v583, %v585
    %v587 = vstv %s184
    %v588 = vmul.f32 %v587, %v550
    %v589 = vadd.f32 %v586, %v588
    %v590 = vstv %s185
    %v591 = vmul.f32 %v590, %v555
    %v592 = vadd.f32 %v589, %v591
    %v593 = vstv %s186
    %v594 = vmul.f32 %v593, %v560
    %v595 = vadd.f32 %v592, %v594
    %v596 = vstv %s187
    %v597 = vmul.f32 %v596, %v565
    %v598 = vadd.f32 %v595, %v597
    %v599 = vstv %s188
    %v600 = vmul.f32 %v599, %v570
    %v601 = vadd.f32 %v598, %v600
    %v602 = vmax.f32 %v601, 0.0
    %v603 = vstv %s189
    %v604 = vmul.f32 %v603, %v525
    %v605 = vstv %s280
    %v606 = vadd.f32 %v605, %v604
    %v607 = vstv %s190
    %v608 = vmul.f32 %v607, %v530
    %v609 = vadd.f32 %v606, %v608
    %v610 = vstv %s191
    %v611 = vmul.f32 %v610, %v535
    %v612 = vadd.f32 %v609, %v611
    %v613 = vstv %s192
    %v614 = vmul.f32 %v613, %v540
    %v615 = vadd.f32 %v612, %v614
    %v616 = vstv %s193
    %v617 = vmul.f32 %v616, %v545
    %v618 = vadd.f32 %v615, %v617
    %v619 = vstv %s194
    %v620 = vmul.f32 %v619, %v550
    %v621 = vadd.f32 %v618, %v620
    %v622 = vstv %s195
    %v623 = vmul.f32 %v622, %v555
    %v624 = vadd.f32 %v621, %v623
    %v625 = vstv %s196
    %v626 = vmul.f32 %v625, %v560
    %v627 = vadd.f32 %v624, %v626
    %v628 = vstv %s197
    %v629 = vmul.f32 %v628, %v565
    %v630 = vadd.f32 %v627, %v629
    %v631 = vstv %s198
    %v632 = vmul.f32 %v631, %v570
    %v633 = vadd.f32 %v630, %v632
    %v634 = vmax.f32 %v633, 0.0
    %v635 = vstv %s199
    %v636 = vmul.f32 %v635, %v525
    %v637 = vstv %s281
    %v638 = vadd.f32 %v637, %v636
    %v639 = vstv %s200
    %v640 = vmul.f32 %v639, %v530
    %v641 = vadd.f32 %v638, %v640
    %v642 = vstv %s201
    %v643 = vmul.f32 %v642, %v535
    %v644 = vadd.f32 %v641, %v643
    %v645 = vstv %s202
    %v646 = vmul.f32 %v645, %v540
    %v647 = vadd.f32 %v644, %v646
    %v648 = vstv %s203
    %v649 = vmul.f32 %v648, %v545
    %v650 = vadd.f32 %v647, %v649
    %v651 = vstv %s204
    %v652 = vmul.f32 %v651, %v550
    %v653 = vadd.f32 %v650, %v652
    %v654 = vstv %s205
    %v655 = vmul.f32 %v654, %v555
    %v656 = vadd.f32 %v653, %v655
    %v657 = vstv %s206
    %v658 = vmul.f32 %v657, %v560
    %v659 = vadd.f32 %v656, %v658
    %v660 = vstv %s207
    %v661 = vmul.f32 %v660, %v565
    %v662 = vadd.f32 %v659, %v661
    %v663 = vstv %s208
    %v664 = vmul.f32 %v663, %v570
    %v665 = vadd.f32 %v662, %v664
    %v666 = vmax.f32 %v665, 0.0
    %v667 = vstv %s209
    %v668 = vmul.f32 %v667, %v525
    %v669 = vstv %s282
    %v670 = vadd.f32 %v669, %v668
    %v671 = vstv %s210
    %v672 = vmul.f32 %v671, %v530
    %v673 = vadd.f32 %v670, %v672
    %v674 = vstv %s211
    %v675 = vmul.f32 %v674, %v535
    %v676 = vadd.f32 %v673, %v675
    %v677 = vstv %s212
    %v678 = vmul.f32 %v677, %v540
    %v679 = vadd.f32 %v676, %v678
    %v680 = vstv %s213
    %v681 = vmul.f32 %v680, %v545
    %v682 = vadd.f32 %v679, %v681
    %v683 = vstv %s214
    %v684 = vmul.f32 %v683, %v550
    %v685 = vadd.f32 %v682, %v684
    %v686 = vstv %s215
    %v687 = vmul.f32 %v686, %v555
    %v688 = vadd.f32 %v685, %v687
    %v689 = vstv %s216
    %v690 = vmul.f32 %v689, %v560
    %v691 = vadd.f32 %v688, %v690
    %v692 = vstv %s217
    %v693 = vmul.f32 %v692, %v565
    %v694 = vadd.f32 %v691, %v693
    %v695 = vstv %s218
    %v696 = vmul.f32 %v695, %v570
    %v697 = vadd.f32 %v694, %v696
    %v698 = vmax.f32 %v697, 0.0
    %v699 = vstv %s219
    %v700 = vmul.f32 %v699, %v525
    %v701 = vstv %s283
    %v702 = vadd.f32 %v701, %v700
    %v703 = vstv %s220
    %v704 = vmul.f32 %v703, %v530
    %v705 = vadd.f32 %v702, %v704
    %v706 = vstv %s221
    %v707 = vmul.f32 %v706, %v535
    %v708 = vadd.f32 %v705, %v707
    %v709 = vstv %s222
    %v710 = vmul.f32 %v709, %v540
    %v711 = vadd.f32 %v708, %v710
    %v712 = vstv %s223
    %v713 = vmul.f32 %v712, %v545
    %v714 = vadd.f32 %v711, %v713
    %v715 = vstv %s224
    %v716 = vmul.f32 %v715, %v550
    %v717 = vadd.f32 %v714, %v716
    %v718 = vstv %s225
    %v719 = vmul.f32 %v718, %v555
    %v720 = vadd.f32 %v717, %v719
    %v721 = vstv %s226
    %v722 = vmul.f32 %v721, %v560
    %v723 = vadd.f32 %v720, %v722
    %v724 = vstv %s227
    %v725 = vmul.f32 %v724, %v565
    %v726 = vadd.f32 %v723, %v725
    %v727 = vstv %s228
    %v728 = vmul.f32 %v727, %v570
    %v729 = vadd.f32 %v726, %v728
    %v730 = vmax.f32 %v729, 0.0
    %v731 = vstv %s229
    %v732 = vmul.f32 %v731, %v525
    %v733 = vstv %s284
    %v734 = vadd.f32 %v733, %v732
    %v735 = vstv %s230
    %v736 = vmul.f32 %v735, %v530
    %v737 = vadd.f32 %v734, %v736
    %v738 = vstv %s231
    %v739 = vmul.f32 %v738, %v535
    %v740 = vadd.f32 %v737, %v739
    %v741 = vstv %s232
    %v742 = vmul.f32 %v741, %v540
    %v743 = vadd.f32 %v740, %v742
    %v744 = vstv %s233
    %v745 = vmul.f32 %v744, %v545
    %v746 = vadd.f32 %v743, %v745
    %v747 = vstv %s234
    %v748 = vmul.f32 %v747, %v550
    %v749 = vadd.f32 %v746, %v748
    %v750 = vstv %s235
    %v751 = vmul.f32 %v750, %v555
    %v752 = vadd.f32 %v749, %v751
    %v753 = vstv %s236
    %v754 = vmul.f32 %v753, %v560
    %v755 = vadd.f32 %v752, %v754
    %v756 = vstv %s237
    %v757 = vmul.f32 %v756, %v565
    %v758 = vadd.f32 %v755, %v757
    %v759 = vstv %s238
    %v760 = vmul.f32 %v759, %v570
    %v761 = vadd.f32 %v758, %v760
    %v762 = vmax.f32 %v761, 0.0
    %v763 = vstv %s239
    %v764 = vmul.f32 %v763, %v525
    %v765 = vstv %s285
    %v766 = vadd.f32 %v765, %v764
    %v767 = vstv %s240
    %v768 = vmul.f32 %v767, %v530
    %v769 = vadd.f32 %v766, %v768
    %v770 = vstv %s241
    %v771 = vmul.f32 %v770, %v535
    %v772 = vadd.f32 %v769, %v771
    %v773 = vstv %s242
    %v774 = vmul.f32 %v773, %v540
    %v775 = vadd.f32 %v772, %v774
    %v776 = vstv %s243
    %v777 = vmul.f32 %v776, %v545
    %v778 = vadd.f32 %v775, %v777
    %v779 = vstv %s244
    %v780 = vmul.f32 %v779, %v550
    %v781 = vadd.f32 %v778, %v780
    %v782 = vstv %s245
    %v783 = vmul.f32 %v782, %v555
    %v784 = vadd.f32 %v781, %v783
    %v785 = vstv %s246
    %v786 = vmul.f32 %v785, %v560
    %v787 = vadd.f32 %v784, %v786
    %v788 = vstv %s247
    %v789 = vmul.f32 %v788, %v565
    %v790 = vadd.f32 %v787, %v789
    %v791 = vstv %s248
    %v792 = vmul.f32 %v791, %v570
    %v793 = vadd.f32 %v790, %v792
    %v794 = vmax.f32 %v793, 0.0
    %v795 = vstv %s249
    %v796 = vmul.f32 %v795, %v525
    %v797 = vstv %s286
    %v798 = vadd.f32 %v797, %v796
    %v799 = vstv %s250
    %v800 = vmul.f32 %v799, %v530
    %v801 = vadd.f32 %v798, %v800
    %v802 = vstv %s251
    %v803 = vmul.f32 %v802, %v535
    %v804 = vadd.f32 %v801, %v803
    %v805 = vstv %s252
    %v806 = vmul.f32 %v805, %v540
    %v807 = vadd.f32 %v804, %v806
    %v808 = vstv %s253
    %v809 = vmul.f32 %v808, %v545
    %v810 = vadd.f32 %v807, %v809
    %v811 = vstv %s254
    %v812 = vmul.f32 %v811, %v550
    %v813 = vadd.f32 %v810, %v812
    %v814 = vstv %s255
    %v815 = vmul.f32 %v814, %v555
    %v816 = vadd.f32 %v813, %v815
    %v817 = vstv %s256
    %v818 = vmul.f32 %v817, %v560
    %v819 = vadd.f32 %v816, %v818
    %v820 = vstv %s257
    %v821 = vmul.f32 %v820, %v565
    %v822 = vadd.f32 %v819, %v821
    %v823 = vstv %s258
    %v824 = vmul.f32 %v823, %v570
    %v825 = vadd.f32 %v822, %v824
    %v826 = vmax.f32 %v825, 0.0
    %v827 = vstv %s259
    %v828 = vmul.f32 %v827, %v525
    %v829 = vstv %s287
    %v830 = vadd.f32 %v829, %v828
    %v831 = vstv %s260
    %v832 = vmul.f32 %v831, %v530
    %v833 = vadd.f32 %v830, %v832
    %v834 = vstv %s261
    %v835 = vmul.f32 %v834, %v535
    %v836 = vadd.f32 %v833, %v835
    %v837 = vstv %s262
    %v838 = vmul.f32 %v837, %v540
    %v839 = vadd.f32 %v836, %v838
    %v840 = vstv %s263
    %v841 = vmul.f32 %v840, %v545
    %v842 = vadd.f32 %v839, %v841
    %v843 = vstv %s264
    %v844 = vmul.f32 %v843, %v550
    %v845 = vadd.f32 %v842, %v844
    %v846 = vstv %s265
    %v847 = vmul.f32 %v846, %v555
    %v848 = vadd.f32 %v845, %v847
    %v849 = vstv %s266
    %v850 = vmul.f32 %v849, %v560
    %v851 = vadd.f32 %v848, %v850
    %v852 = vstv %s267
    %v853 = vmul.f32 %v852, %v565
    %v854 = vadd.f32 %v851, %v853
    %v855 = vstv %s268
    %v856 = vmul.f32 %v855, %v570
    %v857 = vadd.f32 %v854, %v856
    %v858 = vmax.f32 %v857, 0.0
    %v859 = vstv %s269
    %v860 = vmul.f32 %v859, %v525
    %v861 = vstv %s288
    %v862 = vadd.f32 %v861, %v860
    %v863 = vstv %s270
    %v864 = vmul.f32 %v863, %v530
    %v865 = vadd.f32 %v862, %v864
    %v866 = vstv %s271
    %v867 = vmul.f32 %v866, %v535
    %v868 = vadd.f32 %v865, %v867
    %v869 = vstv %s272
    %v870 = vmul.f32 %v869, %v540
    %v871 = vadd.f32 %v868, %v870
    %v872 = vstv %s273
    %v873 = vmul.f32 %v872, %v545
    %v874 = vadd.f32 %v871, %v873
    %v875 = vstv %s274
    %v876 = vmul.f32 %v875, %v550
    %v877 = vadd.f32 %v874, %v876
    %v878 = vstv %s275
    %v879 = vmul.f32 %v878, %v555
    %v880 = vadd.f32 %v877, %v879
    %v881 = vstv %s276
    %v882 = vmul.f32 %v881, %v560
    %v883 = vadd.f32 %v880, %v882
    %v884 = vstv %s277
    %v885 = vmul.f32 %v884, %v565
    %v886 = vadd.f32 %v883, %v885
    %v887 = vstv %s278
    %v888 = vmul.f32 %v887, %v570
    %v889 = vadd.f32 %v886, %v888
    %v890 = vmax.f32 %v889, 0.0
    %v891 = vstv %s289
    %v892 = vmul.f32 %v891, %v602
    %v893 = vstv %s389
    %v894 = vadd.f32 %v893, %v892
    %v895 = vstv %s290
    %v896 = vmul.f32 %v895, %v634
    %v897 = vadd.f32 %v894, %v896
    %v898 = vstv %s291
    %v899 = vmul.f32 %v898, %v666
    %v900 = vadd.f32 %v897, %v899
    %v901 = vstv %s292
    %v902 = vmul.f32 %v901, %v698
    %v903 = vadd.f32 %v900, %v902
    %v904 = vstv %s293
    %v905 = vmul.f32 %v904, %v730
    %v906 = vadd.f32 %v903, %v905
    %v907 = vstv %s294
    %v908 = vmul.f32 %v907, %v762
    %v909 = vadd.f32 %v906, %v908
    %v910 = vstv %s295
    %v911 = vmul.f32 %v910, %v794
    %v912 = vadd.f32 %v909, %v911
    %v913 = vstv %s296
    %v914 = vmul.f32 %v913, %v826
    %v915 = vadd.f32 %v912, %v914
    %v916 = vstv %s297
    %v917 = vmul.f32 %v916, %v858
    %v918 = vadd.f32 %v915, %v917
    %v919 = vstv %s298
    %v920 = vmul.f32 %v919, %v890
    %v921 = vadd.f32 %v918, %v920
    %v922 = vmax.f32 %v921, 0.0
    %v923 = vstv %s299
    %v924 = vmul.f32 %v923, %v602
    %v925 = vstv %s390
    %v926 = vadd.f32 %v925, %v924
    %v927 = vstv %s300
    %v928 = vmul.f32 %v927, %v634
    %v929 = vadd.f32 %v926, %v928
    %v930 = vstv %s301
    %v931 = vmul.f32 %v930, %v666
    %v932 = vadd.f32 %v929, %v931
    %v933 = vstv %s302
    %v934 = vmul.f32 %v933, %v698
    %v935 = vadd.f32 %v932, %v934
    %v936 = vstv %s303
    %v937 = vmul.f32 %v936, %v730
    %v938 = vadd.f32 %v935, %v937
    %v939 = vstv %s304
    %v940 = vmul.f32 %v939, %v762
    %v941 = vadd.f32 %v938, %v940
    %v942 = vstv %s305
    %v943 = vmul.f32 %v942, %v794
    %v944 = vadd.f32 %v941, %v943
    %v945 = vstv %s306
    %v946 = vmul.f32 %v945, %v826
    %v947 = vadd.f32 %v944, %v946
    %v948 = vstv %s307
    %v949 = vmul.f32 %v948, %v858
    %v950 = vadd.f32 %v947, %v949
    %v951 = vstv %s308
    %v952 = vmul.f32 %v951, %v890
    %v953 = vadd.f32 %v950, %v952
    %v954 = vmax.f32 %v953, 0.0
    %v955 = vstv %s309
    %v956 = vmul.f32 %v955, %v602
    %v957 = vstv %s391
    %v958 = vadd.f32 %v957, %v956
    %v959 = vstv %s310
    %v960 = vmul.f32 %v959, %v634
    %v961 = vadd.f32 %v958, %v960
    %v962 = vstv %s311
    %v963 = vmul.f32 %v962, %v666
    %v964 = vadd.f32 %v961, %v963
    %v965 = vstv %s312
    %v966 = vmul.f32 %v965, %v698
    %v967 = vadd.f32 %v964, %v966
    %v968 = vstv %s313
    %v969 = vmul.f32 %v968, %v730
    %v970 = vadd.f32 %v967, %v969
    %v971 = vstv %s314
    %v972 = vmul.f32 %v971, %v762
    %v973 = vadd.f32 %v970, %v972
    %v974 = vstv %s315
    %v975 = vmul.f32 %v974, %v794
    %v976 = vadd.f32 %v973, %v975
    %v977 = vstv %s316
    %v978 = vmul.f32 %v977, %v826
    %v979 = vadd.f32 %v976, %v978
    %v980 = vstv %s317
    %v981 = vmul.f32 %v980, %v858
    %v982 = vadd.f32 %v979, %v981
    %v983 = vstv %s318
    %v984 = vmul.f32 %v983, %v890
    %v985 = vadd.f32 %v982, %v984
    %v986 = vmax.f32 %v985, 0.0
    %v987 = vstv %s319
    %v988 = vmul.f32 %v987, %v602
    %v989 = vstv %s392
    %v990 = vadd.f32 %v989, %v988
    %v991 = vstv %s320
    %v992 = vmul.f32 %v991, %v634
    %v993 = vadd.f32 %v990, %v992
    %v994 = vstv %s321
    %v995 = vmul.f32 %v994, %v666
    %v996 = vadd.f32 %v993, %v995
    %v997 = vstv %s322
    %v998 = vmul.f32 %v997, %v698
    %v999 = vadd.f32 %v996, %v998
    %v1000 = vstv %s323
    %v1001 = vmul.f32 %v1000, %v730
    %v1002 = vadd.f32 %v999, %v1001
    %v1003 = vstv %s324
    %v1004 = vmul.f32 %v1003, %v762
    %v1005 = vadd.f32 %v1002, %v1004
    %v1006 = vstv %s325
    %v1007 = vmul.f32 %v1006, %v794
    %v1008 = vadd.f32 %v1005, %v1007
    %v1009 = vstv %s326
    %v1010 = vmul.f32 %v1009, %v826
    %v1011 = vadd.f32 %v1008, %v1010
    %v1012 = vstv %s327
    %v1013 = vmul.f32 %v1012, %v858
    %v1014 = vadd.f32 %v1011, %v1013
    %v1015 = vstv %s328
    %v1016 = vmul.f32 %v1015, %v890
    %v1017 = vadd.f32 %v1014, %v1016
    %v1018 = vmax.f32 %v1017, 0.0
    %v1019 = vstv %s329
    %v1020 = vmul.f32 %v1019, %v602
    %v1021 = vstv %s393
    %v1022 = vadd.f32 %v1021, %v1020
    %v1023 = vstv %s330
    %v1024 = vmul.f32 %v1023, %v634
    %v1025 = vadd.f32 %v1022, %v1024
    %v1026 = vstv %s331
    %v1027 = vmul.f32 %v1026, %v666
    %v1028 = vadd.f32 %v1025, %v1027
    %v1029 = vstv %s332
    %v1030 = vmul.f32 %v1029, %v698
    %v1031 = vadd.f32 %v1028, %v1030
    %v1032 = vstv %s333
    %v1033 = vmul.f32 %v1032, %v730
    %v1034 = vadd.f32 %v1031, %v1033
    %v1035 = vstv %s334
    %v1036 = vmul.f32 %v1035, %v762
    %v1037 = vadd.f32 %v1034, %v1036
    %v1038 = vstv %s335
    %v1039 = vmul.f32 %v1038, %v794
    %v1040 = vadd.f32 %v1037, %v1039
    %v1041 = vstv %s336
    %v1042 = vmul.f32 %v1041, %v826
    %v1043 = vadd.f32 %v1040, %v1042
    %v1044 = vstv %s337
    %v1045 = vmul.f32 %v1044, %v858
    %v1046 = vadd.f32 %v1043, %v1045
    %v1047 = vstv %s338
    %v1048 = vmul.f32 %v1047, %v890
    %v1049 = vadd.f32 %v1046, %v1048
    %v1050 = vmax.f32 %v1049, 0.0
    %v1051 = vstv %s339
    %v1052 = vmul.f32 %v1051, %v602
    %v1053 = vstv %s394
    %v1054 = vadd.f32 %v1053, %v1052
    %v1055 = vstv %s340
    %v1056 = vmul.f32 %v1055, %v634
    %v1057 = vadd.f32 %v1054, %v1056
    %v1058 = vstv %s341
    %v1059 = vmul.f32 %v1058, %v666
    %v1060 = vadd.f32 %v1057, %v1059
    %v1061 = vstv %s342
    %v1062 = vmul.f32 %v1061, %v698
    %v1063 = vadd.f32 %v1060, %v1062
    %v1064 = vstv %s343
    %v1065 = vmul.f32 %v1064, %v730
    %v1066 = vadd.f32 %v1063, %v1065
    %v1067 = vstv %s344
    %v1068 = vmul.f32 %v1067, %v762
    %v1069 = vadd.f32 %v1066, %v1068
    %v1070 = vstv %s345
    %v1071 = vmul.f32 %v1070, %v794
    %v1072 = vadd.f32 %v1069, %v1071
    %v1073 = vstv %s346
    %v1074 = vmul.f32 %v1073, %v826
    %v1075 = vadd.f32 %v1072, %v1074
    %v1076 = vstv %s347
    %v1077 = vmul.f32 %v1076, %v858
    %v1078 = vadd.f32 %v1075, %v1077
    %v1079 = vstv %s348
    %v1080 = vmul.f32 %v1079, %v890
    %v1081 = vadd.f32 %v1078, %v1080
    %v1082 = vmax.f32 %v1081, 0.0
    %v1083 = vstv %s349
    %v1084 = vmul.f32 %v1083, %v602
    %v1085 = vstv %s395
    %v1086 = vadd.f32 %v1085, %v1084
    %v1087 = vstv %s350
    %v1088 = vmul.f32 %v1087, %v634
    %v1089 = vadd.f32 %v1086, %v1088
    %v1090 = vstv %s351
    %v1091 = vmul.f32 %v1090, %v666
    %v1092 = vadd.f32 %v1089, %v1091
    %v1093 = vstv %s352
    %v1094 = vmul.f32 %v1093, %v698
    %v1095 = vadd.f32 %v1092, %v1094
    %v1096 = vstv %s353
    %v1097 = vmul.f32 %v1096, %v730
    %v1098 = vadd.f32 %v1095, %v1097
    %v1099 = vstv %s354
    %v1100 = vmul.f32 %v1099, %v762
    %v1101 = vadd.f32 %v1098, %v1100
    %v1102 = vstv %s355
    %v1103 = vmul.f32 %v1102, %v794
    %v1104 = vadd.f32 %v1101, %v1103
    %v1105 = vstv %s356
    %v1106 = vmul.f32 %v1105, %v826
    %v1107 = vadd.f32 %v1104, %v1106
    %v1108 = vstv %s357
    %v1109 = vmul.f32 %v1108, %v858
    %v1110 = vadd.f32 %v1107, %v1109
    %v1111 = vstv %s358
    %v1112 = vmul.f32 %v1111, %v890
    %v1113 = vadd.f32 %v1110, %v1112
    %v1114 = vmax.f32 %v1113, 0.0
    %v1115 = vstv %s359
    %v1116 = vmul.f32 %v1115, %v602
    %v1117 = vstv %s396
    %v1118 = vadd.f32 %v1117, %v1116
    %v1119 = vstv %s360
    %v1120 = vmul.f32 %v1119, %v634
    %v1121 = vadd.f32 %v1118, %v1120
    %v1122 = vstv %s361
    %v1123 = vmul.f32 %v1122, %v666
    %v1124 = vadd.f32 %v1121, %v1123
    %v1125 = vstv %s362
    %v1126 = vmul.f32 %v1125, %v698
    %v1127 = vadd.f32 %v1124, %v1126
    %v1128 = vstv %s363
    %v1129 = vmul.f32 %v1128, %v730
    %v1130 = vadd.f32 %v1127, %v1129
    %v1131 = vstv %s364
    %v1132 = vmul.f32 %v1131, %v762
    %v1133 = vadd.f32 %v1130, %v1132
    %v1134 = vstv %s365
    %v1135 = vmul.f32 %v1134, %v794
    %v1136 = vadd.f32 %v1133, %v1135
    %v1137 = vstv %s366
    %v1138 = vmul.f32 %v1137, %v826
    %v1139 = vadd.f32 %v1136, %v1138
    %v1140 = vstv %s367
    %v1141 = vmul.f32 %v1140, %v858
    %v1142 = vadd.f32 %v1139, %v1141
    %v1143 = vstv %s368
    %v1144 = vmul.f32 %v1143, %v890
    %v1145 = vadd.f32 %v1142, %v1144
    %v1146 = vmax.f32 %v1145, 0.0
    %v1147 = vstv %s369
    %v1148 = vmul.f32 %v1147, %v602
    %v1149 = vstv %s397
    %v1150 = vadd.f32 %v1149, %v1148
    %v1151 = vstv %s370
    %v1152 = vmul.f32 %v1151, %v634
    %v1153 = vadd.f32 %v1150, %v1152
    %v1154 = vstv %s371
    %v1155 = vmul.f32 %v1154, %v666
    %v1156 = vadd.f32 %v1153, %v1155
    %v1157 = vstv %s372
    %v1158 = vmul.f32 %v1157, %v698
    %v1159 = vadd.f32 %v1156, %v1158
    %v1160 = vstv %s373
    %v1161 = vmul.f32 %v1160, %v730
    %v1162 = vadd.f32 %v1159, %v1161
    %v1163 = vstv %s374
    %v1164 = vmul.f32 %v1163, %v762
    %v1165 = vadd.f32 %v1162, %v1164
    %v1166 = vstv %s375
    %v1167 = vmul.f32 %v1166, %v794
    %v1168 = vadd.f32 %v1165, %v1167
    %v1169 = vstv %s376
    %v1170 = vmul.f32 %v1169, %v826
    %v1171 = vadd.f32 %v1168, %v1170
    %v1172 = vstv %s377
    %v1173 = vmul.f32 %v1172, %v858
    %v1174 = vadd.f32 %v1171, %v1173
    %v1175 = vstv %s378
    %v1176 = vmul.f32 %v1175, %v890
    %v1177 = vadd.f32 %v1174, %v1176
    %v1178 = vmax.f32 %v1177, 0.0
    %v1179 = vstv %s379
    %v1180 = vmul.f32 %v1179, %v602
    %v1181 = vstv %s398
    %v1182 = vadd.f32 %v1181, %v1180
    %v1183 = vstv %s380
    %v1184 = vmul.f32 %v1183, %v634
    %v1185 = vadd.f32 %v1182, %v1184
    %v1186 = vstv %s381
    %v1187 = vmul.f32 %v1186, %v666
    %v1188 = vadd.f32 %v1185, %v1187
    %v1189 = vstv %s382
    %v1190 = vmul.f32 %v1189, %v698
    %v1191 = vadd.f32 %v1188, %v1190
    %v1192 = vstv %s383
    %v1193 = vmul.f32 %v1192, %v730
    %v1194 = vadd.f32 %v1191, %v1193
    %v1195 = vstv %s384
    %v1196 = vmul.f32 %v1195, %v762
    %v1197 = vadd.f32 %v1194, %v1196
    %v1198 = vstv %s385
    %v1199 = vmul.f32 %v1198, %v794
    %v1200 = vadd.f32 %v1197, %v1199
    %v1201 = vstv %s386
    %v1202 = vmul.f32 %v1201, %v826
    %v1203 = vadd.f32 %v1200, %v1202
    %v1204 = vstv %s387
    %v1205 = vmul.f32 %v1204, %v858
    %v1206 = vadd.f32 %v1203, %v1205
    %v1207 = vstv %s388
    %v1208 = vmul.f32 %v1207, %v890
    %v1209 = vadd.f32 %v1206, %v1208
    %v1210 = vmax.f32 %v1209, 0.0
    %v1211 = vstv %s399
    %v1212 = vmul.f32 %v1211, %v922
    %v1213 = vstv %s499
    %v1214 = vadd.f32 %v1213, %v1212
    %v1215 = vstv %s400
    %v1216 = vmul.f32 %v1215, %v954
    %v1217 = vadd.f32 %v1214, %v1216
    %v1218 = vstv %s401
    %v1219 = vmul.f32 %v1218, %v986
    %v1220 = vadd.f32 %v1217, %v1219
    %v1221 = vstv %s402
    %v1222 = vmul.f32 %v1221, %v1018
    %v1223 = vadd.f32 %v1220, %v1222
    %v1224 = vstv %s403
    %v1225 = vmul.f32 %v1224, %v1050
    %v1226 = vadd.f32 %v1223, %v1225
    %v1227 = vstv %s404
    %v1228 = vmul.f32 %v1227, %v1082
    %v1229 = vadd.f32 %v1226, %v1228
    %v1230 = vstv %s405
    %v1231 = vmul.f32 %v1230, %v1114
    %v1232 = vadd.f32 %v1229, %v1231
    %v1233 = vstv %s406
    %v1234 = vmul.f32 %v1233, %v1146
    %v1235 = vadd.f32 %v1232, %v1234
    %v1236 = vstv %s407
    %v1237 = vmul.f32 %v1236, %v1178
    %v1238 = vadd.f32 %v1235, %v1237
    %v1239 = vstv %s408
    %v1240 = vmul.f32 %v1239, %v1210
    %v1241 = vadd.f32 %v1238, %v1240
    %v1242 = vmax.f32 %v1241, 0.0
    %v1243 = vstv %s409
    %v1244 = vmul.f32 %v1243, %v922
    %v1245 = vstv %s500
    %v1246 = vadd.f32 %v1245, %v1244
    %v1247 = vstv %s410
    %v1248 = vmul.f32 %v1247, %v954
    %v1249 = vadd.f32 %v1246, %v1248
    %v1250 = vstv %s411
    %v1251 = vmul.f32 %v1250, %v986
    %v1252 = vadd.f32 %v1249, %v1251
    %v1253 = vstv %s412
    %v1254 = vmul.f32 %v1253, %v1018
    %v1255 = vadd.f32 %v1252, %v1254
    %v1256 = vstv %s413
    %v1257 = vmul.f32 %v1256, %v1050
    %v1258 = vadd.f32 %v1255, %v1257
    %v1259 = vstv %s414
    %v1260 = vmul.f32 %v1259, %v1082
    %v1261 = vadd.f32 %v1258, %v1260
    %v1262 = vstv %s415
    %v1263 = vmul.f32 %v1262, %v1114
    %v1264 = vadd.f32 %v1261, %v1263
    %v1265 = vstv %s416
    %v1266 = vmul.f32 %v1265, %v1146
    %v1267 = vadd.f32 %v1264, %v1266
    %v1268 = vstv %s417
    %v1269 = vmul.f32 %v1268, %v1178
    %v1270 = vadd.f32 %v1267, %v1269
    %v1271 = vstv %s418
    %v1272 = vmul.f32 %v1271, %v1210
    %v1273 = vadd.f32 %v1270, %v1272
    %v1274 = vmax.f32 %v1273, 0.0
    %v1275 = vstv %s419
    %v1276 = vmul.f32 %v1275, %v922
    %v1277 = vstv %s501
    %v1278 = vadd.f32 %v1277, %v1276
    %v1279 = vstv %s420
    %v1280 = vmul.f32 %v1279, %v954
    %v1281 = vadd.f32 %v1278, %v1280
    %v1282 = vstv %s421
    %v1283 = vmul.f32 %v1282, %v986
    %v1284 = vadd.f32 %v1281, %v1283
    %v1285 = vstv %s422
    %v1286 = vmul.f32 %v1285, %v1018
    %v1287 = vadd.f32 %v1284, %v1286
    %v1288 = vstv %s423
    %v1289 = vmul.f32 %v1288, %v1050
    %v1290 = vadd.f32 %v1287, %v1289
    %v1291 = vstv %s424
    %v1292 = vmul.f32 %v1291, %v1082
    %v1293 = vadd.f32 %v1290, %v1292
    %v1294 = vstv %s425
    %v1295 = vmul.f32 %v1294, %v1114
    %v1296 = vadd.f32 %v1293, %v1295
    %v1297 = vstv %s426
    %v1298 = vmul.f32 %v1297, %v1146
    %v1299 = vadd.f32 %v1296, %v1298
    %v1300 = vstv %s427
    %v1301 = vmul.f32 %v1300, %v1178
    %v1302 = vadd.f32 %v1299, %v1301
    %v1303 = vstv %s428
    %v1304 = vmul.f32 %v1303, %v1210
    %v1305 = vadd.f32 %v1302, %v1304
    %v1306 = vmax.f32 %v1305, 0.0
    %v1307 = vstv %s429
    %v1308 = vmul.f32 %v1307, %v922
    %v1309 = vstv %s502
    %v1310 = vadd.f32 %v1309, %v1308
    %v1311 = vstv %s430
    %v1312 = vmul.f32 %v1311, %v954
    %v1313 = vadd.f32 %v1310, %v1312
    %v1314 = vstv %s431
    %v1315 = vmul.f32 %v1314, %v986
    %v1316 = vadd.f32 %v1313, %v1315
    %v1317 = vstv %s432
    %v1318 = vmul.f32 %v1317, %v1018
    %v1319 = vadd.f32 %v1316, %v1318
    %v1320 = vstv %s433
    %v1321 = vmul.f32 %v1320, %v1050
    %v1322 = vadd.f32 %v1319, %v1321
    %v1323 = vstv %s434
    %v1324 = vmul.f32 %v1323, %v1082
    %v1325 = vadd.f32 %v1322, %v1324
    %v1326 = vstv %s435
    %v1327 = vmul.f32 %v1326, %v1114
    %v1328 = vadd.f32 %v1325, %v1327
    %v1329 = vstv %s436
    %v1330 = vmul.f32 %v1329, %v1146
    %v1331 = vadd.f32 %v1328, %v1330
    %v1332 = vstv %s437
    %v1333 = vmul.f32 %v1332, %v1178
    %v1334 = vadd.f32 %v1331, %v1333
    %v1335 = vstv %s438
    %v1336 = vmul.f32 %v1335, %v1210
    %v1337 = vadd.f32 %v1334, %v1336
    %v1338 = vmax.f32 %v1337, 0.0
    %v1339 = vstv %s439
    %v1340 = vmul.f32 %v1339, %v922
    %v1341 = vstv %s503
    %v1342 = vadd.f32 %v1341, %v1340
    %v1343 = vstv %s440
    %v1344 = vmul.f32 %v1343, %v954
    %v1345 = vadd.f32 %v1342, %v1344
    %v1346 = vstv %s441
    %v1347 = vmul.f32 %v1346, %v986
    %v1348 = vadd.f32 %v1345, %v1347
    %v1349 = vstv %s442
    %v1350 = vmul.f32 %v1349, %v1018
    %v1351 = vadd.f32 %v1348, %v1350
    %v1352 = vstv %s443
    %v1353 = vmul.f32 %v1352, %v1050
    %v1354 = vadd.f32 %v1351, %v1353
    %v1355 = vstv %s444
    %v1356 = vmul.f32 %v1355, %v1082
    %v1357 = vadd.f32 %v1354, %v1356
    %v1358 = vstv %s445
    %v1359 = vmul.f32 %v1358, %v1114
    %v1360 = vadd.f32 %v1357, %v1359
    %v1361 = vstv %s446
    %v1362 = vmul.f32 %v1361, %v1146
    %v1363 = vadd.f32 %v1360, %v1362
    %v1364 = vstv %s447
    %v1365 = vmul.f32 %v1364, %v1178
    %v1366 = vadd.f32 %v1363, %v1365
    %v1367 = vstv %s448
    %v1368 = vmul.f32 %v1367, %v1210
    %v1369 = vadd.f32 %v1366, %v1368
    %v1370 = vmax.f32 %v1369, 0.0
    %v1371 = vstv %s449
    %v1372 = vmul.f32 %v1371, %v922
    %v1373 = vstv %s504
    %v1374 = vadd.f32 %v1373, %v1372
    %v1375 = vstv %s450
    %v1376 = vmul.f32 %v1375, %v954
    %v1377 = vadd.f32 %v1374, %v1376
    %v1378 = vstv %s451
    %v1379 = vmul.f32 %v1378, %v986
    %v1380 = vadd.f32 %v1377, %v1379
    %v1381 = vstv %s452
    %v1382 = vmul.f32 %v1381, %v1018
    %v1383 = vadd.f32 %v1380, %v1382
    %v1384 = vstv %s453
    %v1385 = vmul.f32 %v1384, %v1050
    %v1386 = vadd.f32 %v1383, %v1385
    %v1387 = vstv %s454
    %v1388 = vmul.f32 %v1387, %v1082
    %v1389 = vadd.f32 %v1386, %v1388
    %v1390 = vstv %s455
    %v1391 = vmul.f32 %v1390, %v1114
    %v1392 = vadd.f32 %v1389, %v1391
    %v1393 = vstv %s456
    %v1394 = vmul.f32 %v1393, %v1146
    %v1395 = vadd.f32 %v1392, %v1394
    %v1396 = vstv %s457
    %v1397 = vmul.f32 %v1396, %v1178
    %v1398 = vadd.f32 %v1395, %v1397
    %v1399 = vstv %s458
    %v1400 = vmul.f32 %v1399, %v1210
    %v1401 = vadd.f32 %v1398, %v1400
    %v1402 = vmax.f32 %v1401, 0.0
    %v1403 = vstv %s459
    %v1404 = vmul.f32 %v1403, %v922
    %v1405 = vstv %s505
    %v1406 = vadd.f32 %v1405, %v1404
    %v1407 = vstv %s460
    %v1408 = vmul.f32 %v1407, %v954
    %v1409 = vadd.f32 %v1406, %v1408
    %v1410 = vstv %s461
    %v1411 = vmul.f32 %v1410, %v986
    %v1412 = vadd.f32 %v1409, %v1411
    %v1413 = vstv %s462
    %v1414 = vmul.f32 %v1413, %v1018
    %v1415 = vadd.f32 %v1412, %v1414
    %v1416 = vstv %s463
    %v1417 = vmul.f32 %v1416, %v1050
    %v1418 = vadd.f32 %v1415, %v1417
    %v1419 = vstv %s464
    %v1420 = vmul.f32 %v1419, %v1082
    %v1421 = vadd.f32 %v1418, %v1420
    %v1422 = vstv %s465
    %v1423 = vmul.f32 %v1422, %v1114
    %v1424 = vadd.f32 %v1421, %v1423
    %v1425 = vstv %s466
    %v1426 = vmul.f32 %v1425, %v1146
    %v1427 = vadd.f32 %v1424, %v1426
    %v1428 = vstv %s467
    %v1429 = vmul.f32 %v1428, %v1178
    %v1430 = vadd.f32 %v1427, %v1429
    %v1431 = vstv %s468
    %v1432 = vmul.f32 %v1431, %v1210
    %v1433 = vadd.f32 %v1430, %v1432
    %v1434 = vmax.f32 %v1433, 0.0
    %v1435 = vstv %s469
    %v1436 = vmul.f32 %v1435, %v922
    %v1437 = vstv %s506
    %v1438 = vadd.f32 %v1437, %v1436
    %v1439 = vstv %s470
    %v1440 = vmul.f32 %v1439, %v954
    %v1441 = vadd.f32 %v1438, %v1440
    %v1442 = vstv %s471
    %v1443 = vmul.f32 %v1442, %v986
    %v1444 = vadd.f32 %v1441, %v1443
    %v1445 = vstv %s472
    %v1446 = vmul.f32 %v1445, %v1018
    %v1447 = vadd.f32 %v1444, %v1446
    %v1448 = vstv %s473
    %v1449 = vmul.f32 %v1448, %v1050
    %v1450 = vadd.f32 %v1447, %v1449
    %v1451 = vstv %s474
    %v1452 = vmul.f32 %v1451, %v1082
    %v1453 = vadd.f32 %v1450, %v1452
    %v1454 = vstv %s475
    %v1455 = vmul.f32 %v1454, %v1114
    %v1456 = vadd.f32 %v1453, %v1455
    %v1457 = vstv %s476
    %v1458 = vmul.f32 %v1457, %v1146
    %v1459 = vadd.f32 %v1456, %v1458
    %v1460 = vstv %s477
    %v1461 = vmul.f32 %v1460, %v1178
    %v1462 = vadd.f32 %v1459, %v1461
    %v1463 = vstv %s478
    %v1464 = vmul.f32 %v1463, %v1210
    %v1465 = vadd.f32 %v1462, %v1464
    %v1466 = vmax.f32 %v1465, 0.0
    %v1467 = vstv %s479
    %v1468 = vmul.f32 %v1467, %v922
    %v1469 = vstv %s507
    %v1470 = vadd.f32 %v1469, %v1468
    %v1471 = vstv %s480
    %v1472 = vmul.f32 %v1471, %v954
    %v1473 = vadd.f32 %v1470, %v1472
    %v1474 = vstv %s481
    %v1475 = vmul.f32 %v1474, %v986
    %v1476 = vadd.f32 %v1473, %v1475
    %v1477 = vstv %s482
    %v1478 = vmul.f32 %v1477, %v1018
    %v1479 = vadd.f32 %v1476, %v1478
    %v1480 = vstv %s483
    %v1481 = vmul.f32 %v1480, %v1050
    %v1482 = vadd.f32 %v1479, %v1481
    %v1483 = vstv %s484
    %v1484 = vmul.f32 %v1483, %v1082
    %v1485 = vadd.f32 %v1482, %v1484
    %v1486 = vstv %s485
    %v1487 = vmul.f32 %v1486, %v1114
    %v1488 = vadd.f32 %v1485, %v1487
    %v1489 = vstv %s486
    %v1490 = vmul.f32 %v1489, %v1146
    %v1491 = vadd.f32 %v1488, %v1490
    %v1492 = vstv %s487
    %v1493 = vmul.f32 %v1492, %v1178
    %v1494 = vadd.f32 %v1491, %v1493
    %v1495 = vstv %s488
    %v1496 = vmul.f32 %v1495, %v1210
    %v1497 = vadd.f32 %v1494, %v1496
    %v1498 = vmax.f32 %v1497, 0.0
    %v1499 = vstv %s489
    %v1500 = vmul.f32 %v1499, %v922
    %v1501 = vstv %s508
    %v1502 = vadd.f32 %v1501, %v1500
    %v1503 = vstv %s490
    %v1504 = vmul.f32 %v1503, %v954
    %v1505 = vadd.f32 %v1502, %v1504
    %v1506 = vstv %s491
    %v1507 = vmul.f32 %v1506, %v986
    %v1508 = vadd.f32 %v1505, %v1507
    %v1509 = vstv %s492
    %v1510 = vmul.f32 %v1509, %v1018
    %v1511 = vadd.f32 %v1508, %v1510
    %v1512 = vstv %s493
    %v1513 = vmul.f32 %v1512, %v1050
    %v1514 = vadd.f32 %v1511, %v1513
    %v1515 = vstv %s494
    %v1516 = vmul.f32 %v1515, %v1082
    %v1517 = vadd.f32 %v1514, %v1516
    %v1518 = vstv %s495
    %v1519 = vmul.f32 %v1518, %v1114
    %v1520 = vadd.f32 %v1517, %v1519
    %v1521 = vstv %s496
    %v1522 = vmul.f32 %v1521, %v1146
    %v1523 = vadd.f32 %v1520, %v1522
    %v1524 = vstv %s497
    %v1525 = vmul.f32 %v1524, %v1178
    %v1526 = vadd.f32 %v1523, %v1525
    %v1527 = vstv %s498
    %v1528 = vmul.f32 %v1527, %v1210
    %v1529 = vadd.f32 %v1526, %v1528
    %v1530 = vmax.f32 %v1529, 0.0
    %v1531 = vstv %s509
    %v1532 = vmul.f32 %v1531, %v1242
    %v1533 = vstv %s519
    %v1534 = vadd.f32 %v1533, %v1532
    %v1535 = vstv %s510
    %v1536 = vmul.f32 %v1535, %v1274
    %v1537 = vadd.f32 %v1534, %v1536
    %v1538 = vstv %s511
    %v1539 = vmul.f32 %v1538, %v1306
    %v1540 = vadd.f32 %v1537, %v1539
    %v1541 = vstv %s512
    %v1542 = vmul.f32 %v1541, %v1338
    %v1543 = vadd.f32 %v1540, %v1542
    %v1544 = vstv %s513
    %v1545 = vmul.f32 %v1544, %v1370
    %v1546 = vadd.f32 %v1543, %v1545
    %v1547 = vstv %s514
    %v1548 = vmul.f32 %v1547, %v1402
    %v1549 = vadd.f32 %v1546, %v1548
    %v1550 = vstv %s515
    %v1551 = vmul.f32 %v1550, %v1434
    %v1552 = vadd.f32 %v1549, %v1551
    %v1553 = vstv %s516
    %v1554 = vmul.f32 %v1553, %v1466
    %v1555 = vadd.f32 %v1552, %v1554
    %v1556 = vstv %s517
    %v1557 = vmul.f32 %v1556, %v1498
    %v1558 = vadd.f32 %v1555, %v1557
    %v1559 = vstv %s518
    %v1560 = vmul.f32 %v1559, %v1530
    %v1561 = vadd.f32 %v1558, %v1560
    %vm1562 = vcmask 130048
    %1563 = vst.msk [vmem:[#allocation3] sm:$0xff] %vm1562, %v1561
    %v1564 = vsel %vm1562, %v1561, 0.0
    %1565 = vadd.xlane.f32.xlu0 %v1564
    %v1566 = vpop.xlane.xlu0 %1565
    %v1567 = vadd.f32 %v1566, 0.0
    %v1568 = vmul.f32 %v1561, %v1561
    %v1569 = vsel %vm1562, %v1568, 0.0
    %1570 = vadd.xlane.f32.xlu0 %v1569
    %v1571 = vpop.xlane.xlu0 %1570
    %v1572 = vadd.f32 %v1571, 0.0
    %v1573 = vmul.f32 %v1567, 0.0625
    %v1574 = vmul.f32 %v1567, %v1573
    %v1575 = vsub.f32 %v1572, %v1574
    %v1576 = vrsqrt.pop %v1575
    %v1577 = vld [vmem:[#allocation3] sm:$0xff]
    %v1578 = vsub.f32 %v1577, %v1573
    %v1579 = vmul.f32 %v1578, %v1576
    %1580 = vst.msk [vmem:[#allocation3] sm:$0xff] %vm1562, %v1579
    %v1581 = vld [vmem:[#allocation3 + $0x8] sm:$0xff]
    %v1582 = vmul.f32 %v521, %v1581
    %v1583 = vadd.f32 %v1582, %v523
    %v1584 = vmax.f32 %v1583, 0.0
    %v1585 = vmul.f32 %v526, %v1581
    %v1586 = vadd.f32 %v1585, %v528
    %v1587 = vmax.f32 %v1586, 0.0
    %v1588 = vmul.f32 %v531, %v1581
    %v1589 = vadd.f32 %v1588, %v533
    %v1590 = vmax.f32 %v1589, 0.0
    %v1591 = vmul.f32 %v536, %v1581
    %v1592 = vadd.f32 %v1591, %v538
    %v1593 = vmax.f32 %v1592, 0.0
    %v1594 = vmul.f32 %v541, %v1581
    %v1595 = vadd.f32 %v1594, %v543
    %v1596 = vmax.f32 %v1595, 0.0
    %v1597 = vmul.f32 %v546, %v1581
    %v1598 = vadd.f32 %v1597, %v548
    %v1599 = vmax.f32 %v1598, 0.0
    %v1600 = vmul.f32 %v551, %v1581
    %v1601 = vadd.f32 %v1600, %v553
    %v1602 = vmax.f32 %v1601, 0.0
    %v1603 = vmul.f32 %v556, %v1581
    %v1604 = vadd.f32 %v1603, %v558
    %v1605 = vmax.f32 %v1604, 0.0
    %v1606 = vmul.f32 %v561, %v1581
    %v1607 = vadd.f32 %v1606, %v563
    %v1608 = vmax.f32 %v1607, 0.0
    %v1609 = vmul.f32 %v566, %v1581
    %v1610 = vadd.f32 %v1609, %v568
    %v1611 = vmax.f32 %v1610, 0.0
    %v1612 = vmul.f32 %v571, %v1584
    %v1613 = vadd.f32 %v573, %v1612
    %v1614 = vmul.f32 %v575, %v1587
    %v1615 = vadd.f32 %v1613, %v1614
    %v1616 = vmul.f32 %v578, %v1590
    %v1617 = vadd.f32 %v1615, %v1616
    %v1618 = vmul.f32 %v581, %v1593
    %v1619 = vadd.f32 %v1617, %v1618
    %v1620 = vmul.f32 %v584, %v1596
    %v1621 = vadd.f32 %v1619, %v1620
    %v1622 = vmul.f32 %v587, %v1599
    %v1623 = vadd.f32 %v1621, %v1622
    %v1624 = vmul.f32 %v590, %v1602
    %v1625 = vadd.f32 %v1623, %v1624
    %v1626 = vmul.f32 %v593, %v1605
    %v1627 = vadd.f32 %v1625, %v1626
    %v1628 = vmul.f32 %v596, %v1608
    %v1629 = vadd.f32 %v1627, %v1628
    %v1630 = vmul.f32 %v599, %v1611
    %v1631 = vadd.f32 %v1629, %v1630
    %v1632 = vmax.f32 %v1631, 0.0
    %v1633 = vmul.f32 %v603, %v1584
    %v1634 = vadd.f32 %v605, %v1633
    %v1635 = vmul.f32 %v607, %v1587
    %v1636 = vadd.f32 %v1634, %v1635
    %v1637 = vmul.f32 %v610, %v1590
    %v1638 = vadd.f32 %v1636, %v1637
    %v1639 = vmul.f32 %v613, %v1593
    %v1640 = vadd.f32 %v1638, %v1639
    %v1641 = vmul.f32 %v616, %v1596
    %v1642 = vadd.f32 %v1640, %v1641
    %v1643 = vmul.f32 %v619, %v1599
    %v1644 = vadd.f32 %v1642, %v1643
    %v1645 = vmul.f32 %v622, %v1602
    %v1646 = vadd.f32 %v1644, %v1645
    %v1647 = vmul.f32 %v625, %v1605
    %v1648 = vadd.f32 %v1646, %v1647
    %v1649 = vmul.f32 %v628, %v1608
    %v1650 = vadd.f32 %v1648, %v1649
    %v1651 = vmul.f32 %v631, %v1611
    %v1652 = vadd.f32 %v1650, %v1651
    %v1653 = vmax.f32 %v1652, 0.0
    %v1654 = vmul.f32 %v635, %v1584
    %v1655 = vadd.f32 %v637, %v1654
    %v1656 = vmul.f32 %v639, %v1587
    %v1657 = vadd.f32 %v1655, %v1656
    %v1658 = vmul.f32 %v642, %v1590
    %v1659 = vadd.f32 %v1657, %v1658
    %v1660 = vmul.f32 %v645, %v1593
    %v1661 = vadd.f32 %v1659, %v1660
    %v1662 = vmul.f32 %v648, %v1596
    %v1663 = vadd.f32 %v1661, %v1662
    %v1664 = vmul.f32 %v651, %v1599
    %v1665 = vadd.f32 %v1663, %v1664
    %v1666 = vmul.f32 %v654, %v1602
    %v1667 = vadd.f32 %v1665, %v1666
    %v1668 = vmul.f32 %v657, %v1605
    %v1669 = vadd.f32 %v1667, %v1668
    %v1670 = vmul.f32 %v660, %v1608
    %v1671 = vadd.f32 %v1669, %v1670
    %v1672 = vmul.f32 %v663, %v1611
    %v1673 = vadd.f32 %v1671, %v1672
    %v1674 = vmax.f32 %v1673, 0.0
    %v1675 = vmul.f32 %v667, %v1584
    %v1676 = vadd.f32 %v669, %v1675
    %v1677 = vmul.f32 %v671, %v1587
    %v1678 = vadd.f32 %v1676, %v1677
    %v1679 = vmul.f32 %v674, %v1590
    %v1680 = vadd.f32 %v1678, %v1679
    %v1681 = vmul.f32 %v677, %v1593
    %v1682 = vadd.f32 %v1680, %v1681
    %v1683 = vmul.f32 %v680, %v1596
    %v1684 = vadd.f32 %v1682, %v1683
    %v1685 = vmul.f32 %v683, %v1599
    %v1686 = vadd.f32 %v1684, %v1685
    %v1687 = vmul.f32 %v686, %v1602
    %v1688 = vadd.f32 %v1686, %v1687
    %v1689 = vmul.f32 %v689, %v1605
    %v1690 = vadd.f32 %v1688, %v1689
    %v1691 = vmul.f32 %v692, %v1608
    %v1692 = vadd.f32 %v1690, %v1691
    %v1693 = vmul.f32 %v695, %v1611
    %v1694 = vadd.f32 %v1692, %v1693
    %v1695 = vmax.f32 %v1694, 0.0
    %v1696 = vmul.f32 %v699, %v1584
    %v1697 = vadd.f32 %v701, %v1696
    %v1698 = vmul.f32 %v703, %v1587
    %v1699 = vadd.f32 %v1697, %v1698
    %v1700 = vmul.f32 %v706, %v1590
    %v1701 = vadd.f32 %v1699, %v1700
    %v1702 = vmul.f32 %v709, %v1593
    %v1703 = vadd.f32 %v1701, %v1702
    %v1704 = vmul.f32 %v712, %v1596
    %v1705 = vadd.f32 %v1703, %v1704
    %v1706 = vmul.f32 %v715, %v1599
    %v1707 = vadd.f32 %v1705, %v1706
    %v1708 = vmul.f32 %v718, %v1602
    %v1709 = vadd.f32 %v1707, %v1708
    %v1710 = vmul.f32 %v721, %v1605
    %v1711 = vadd.f32 %v1709, %v1710
    %v1712 = vmul.f32 %v724, %v1608
    %v1713 = vadd.f32 %v1711, %v1712
    %v1714 = vmul.f32 %v727, %v1611
    %v1715 = vadd.f32 %v1713, %v1714
    %v1716 = vmax.f32 %v1715, 0.0
    %v1717 = vmul.f32 %v731, %v1584
    %v1718 = vadd.f32 %v733, %v1717
    %v1719 = vmul.f32 %v735, %v1587
    %v1720 = vadd.f32 %v1718, %v1719
    %v1721 = vmul.f32 %v738, %v1590
    %v1722 = vadd.f32 %v1720, %v1721
    %v1723 = vmul.f32 %v741, %v1593
    %v1724 = vadd.f32 %v1722, %v1723
    %v1725 = vmul.f32 %v744, %v1596
    %v1726 = vadd.f32 %v1724, %v1725
    %v1727 = vmul.f32 %v747, %v1599
    %v1728 = vadd.f32 %v1726, %v1727
    %v1729 = vmul.f32 %v750, %v1602
    %v1730 = vadd.f32 %v1728, %v1729
    %v1731 = vmul.f32 %v753, %v1605
    %v1732 = vadd.f32 %v1730, %v1731
    %v1733 = vmul.f32 %v756, %v1608
    %v1734 = vadd.f32 %v1732, %v1733
    %v1735 = vmul.f32 %v759, %v1611
    %v1736 = vadd.f32 %v1734, %v1735
    %v1737 = vmax.f32 %v1736, 0.0
    %v1738 = vmul.f32 %v763, %v1584
    %v1739 = vadd.f32 %v765, %v1738
    %v1740 = vmul.f32 %v767, %v1587
    %v1741 = vadd.f32 %v1739, %v1740
    %v1742 = vmul.f32 %v770, %v1590
    %v1743 = vadd.f32 %v1741, %v1742
    %v1744 = vmul.f32 %v773, %v1593
    %v1745 = vadd.f32 %v1743, %v1744
    %v1746 = vmul.f32 %v776, %v1596
    %v1747 = vadd.f32 %v1745, %v1746
    %v1748 = vmul.f32 %v779, %v1599
    %v1749 = vadd.f32 %v1747, %v1748
    %v1750 = vmul.f32 %v782, %v1602
    %v1751 = vadd.f32 %v1749, %v1750
    %v1752 = vmul.f32 %v785, %v1605
    %v1753 = vadd.f32 %v1751, %v1752
    %v1754 = vmul.f32 %v788, %v1608
    %v1755 = vadd.f32 %v1753, %v1754
    %v1756 = vmul.f32 %v791, %v1611
    %v1757 = vadd.f32 %v1755, %v1756
    %v1758 = vmax.f32 %v1757, 0.0
    %v1759 = vmul.f32 %v795, %v1584
    %v1760 = vadd.f32 %v797, %v1759
    %v1761 = vmul.f32 %v799, %v1587
    %v1762 = vadd.f32 %v1760, %v1761
    %v1763 = vmul.f32 %v802, %v1590
    %v1764 = vadd.f32 %v1762, %v1763
    %v1765 = vmul.f32 %v805, %v1593
    %v1766 = vadd.f32 %v1764, %v1765
    %v1767 = vmul.f32 %v808, %v1596
    %v1768 = vadd.f32 %v1766, %v1767
    %v1769 = vmul.f32 %v811, %v1599
    %v1770 = vadd.f32 %v1768, %v1769
    %v1771 = vmul.f32 %v814, %v1602
    %v1772 = vadd.f32 %v1770, %v1771
    %v1773 = vmul.f32 %v817, %v1605
    %v1774 = vadd.f32 %v1772, %v1773
    %v1775 = vmul.f32 %v820, %v1608
    %v1776 = vadd.f32 %v1774, %v1775
    %v1777 = vmul.f32 %v823, %v1611
    %v1778 = vadd.f32 %v1776, %v1777
    %v1779 = vmax.f32 %v1778, 0.0
    %v1780 = vmul.f32 %v827, %v1584
    %v1781 = vadd.f32 %v829, %v1780
    %v1782 = vmul.f32 %v831, %v1587
    %v1783 = vadd.f32 %v1781, %v1782
    %v1784 = vmul.f32 %v834, %v1590
    %v1785 = vadd.f32 %v1783, %v1784
    %v1786 = vmul.f32 %v837, %v1593
    %v1787 = vadd.f32 %v1785, %v1786
    %v1788 = vmul.f32 %v840, %v1596
    %v1789 = vadd.f32 %v1787, %v1788
    %v1790 = vmul.f32 %v843, %v1599
    %v1791 = vadd.f32 %v1789, %v1790
    %v1792 = vmul.f32 %v846, %v1602
    %v1793 = vadd.f32 %v1791, %v1792
    %v1794 = vmul.f32 %v849, %v1605
    %v1795 = vadd.f32 %v1793, %v1794
    %v1796 = vmul.f32 %v852, %v1608
    %v1797 = vadd.f32 %v1795, %v1796
    %v1798 = vmul.f32 %v855, %v1611
    %v1799 = vadd.f32 %v1797, %v1798
    %v1800 = vmax.f32 %v1799, 0.0
    %v1801 = vmul.f32 %v859, %v1584
    %v1802 = vadd.f32 %v861, %v1801
    %v1803 = vmul.f32 %v863, %v1587
    %v1804 = vadd.f32 %v1802, %v1803
    %v1805 = vmul.f32 %v866, %v1590
    %v1806 = vadd.f32 %v1804, %v1805
    %v1807 = vmul.f32 %v869, %v1593
    %v1808 = vadd.f32 %v1806, %v1807
    %v1809 = vmul.f32 %v872, %v1596
    %v1810 = vadd.f32 %v1808, %v1809
    %v1811 = vmul.f32 %v875, %v1599
    %v1812 = vadd.f32 %v1810, %v1811
    %v1813 = vmul.f32 %v878, %v1602
    %v1814 = vadd.f32 %v1812, %v1813
    %v1815 = vmul.f32 %v881, %v1605
    %v1816 = vadd.f32 %v1814, %v1815
    %v1817 = vmul.f32 %v884, %v1608
    %v1818 = vadd.f32 %v1816, %v1817
    %v1819 = vmul.f32 %v887, %v1611
    %v1820 = vadd.f32 %v1818, %v1819
    %v1821 = vmax.f32 %v1820, 0.0
    %v1822 = vmul.f32 %v891, %v1632
    %v1823 = vadd.f32 %v893, %v1822
    %v1824 = vmul.f32 %v895, %v1653
    %v1825 = vadd.f32 %v1823, %v1824
    %v1826 = vmul.f32 %v898, %v1674
    %v1827 = vadd.f32 %v1825, %v1826
    %v1828 = vmul.f32 %v901, %v1695
    %v1829 = vadd.f32 %v1827, %v1828
    %v1830 = vmul.f32 %v904, %v1716
    %v1831 = vadd.f32 %v1829, %v1830
    %v1832 = vmul.f32 %v907, %v1737
    %v1833 = vadd.f32 %v1831, %v1832
    %v1834 = vmul.f32 %v910, %v1758
    %v1835 = vadd.f32 %v1833, %v1834
    %v1836 = vmul.f32 %v913, %v1779
    %v1837 = vadd.f32 %v1835, %v1836
    %v1838 = vmul.f32 %v916, %v1800
    %v1839 = vadd.f32 %v1837, %v1838
    %v1840 = vmul.f32 %v919, %v1821
    %v1841 = vadd.f32 %v1839, %v1840
    %v1842 = vmax.f32 %v1841, 0.0
    %v1843 = vmul.f32 %v923, %v1632
    %v1844 = vadd.f32 %v925, %v1843
    %v1845 = vmul.f32 %v927, %v1653
    %v1846 = vadd.f32 %v1844, %v1845
    %v1847 = vmul.f32 %v930, %v1674
    %v1848 = vadd.f32 %v1846, %v1847
    %v1849 = vmul.f32 %v933, %v1695
    %v1850 = vadd.f32 %v1848, %v1849
    %v1851 = vmul.f32 %v936, %v1716
    %v1852 = vadd.f32 %v1850, %v1851
    %v1853 = vmul.f32 %v939, %v1737
    %v1854 = vadd.f32 %v1852, %v1853
    %v1855 = vmul.f32 %v942, %v1758
    %v1856 = vadd.f32 %v1854, %v1855
    %v1857 = vmul.f32 %v945, %v1779
    %v1858 = vadd.f32 %v1856, %v1857
    %v1859 = vmul.f32 %v948, %v1800
    %v1860 = vadd.f32 %v1858, %v1859
    %v1861 = vmul.f32 %v951, %v1821
    %v1862 = vadd.f32 %v1860, %v1861
    %v1863 = vmax.f32 %v1862, 0.0
    %v1864 = vmul.f32 %v955, %v1632
    %v1865 = vadd.f32 %v957, %v1864
    %v1866 = vmul.f32 %v959, %v1653
    %v1867 = vadd.f32 %v1865, %v1866
    %v1868 = vmul.f32 %v962, %v1674
    %v1869 = vadd.f32 %v1867, %v1868
    %v1870 = vmul.f32 %v965, %v1695
    %v1871 = vadd.f32 %v1869, %v1870
    %v1872 = vmul.f32 %v968, %v1716
    %v1873 = vadd.f32 %v1871, %v1872
    %v1874 = vmul.f32 %v971, %v1737
    %v1875 = vadd.f32 %v1873, %v1874
    %v1876 = vmul.f32 %v974, %v1758
    %v1877 = vadd.f32 %v1875, %v1876
    %v1878 = vmul.f32 %v977, %v1779
    %v1879 = vadd.f32 %v1877, %v1878
    %v1880 = vmul.f32 %v980, %v1800
    %v1881 = vadd.f32 %v1879, %v1880
    %v1882 = vmul.f32 %v983, %v1821
    %v1883 = vadd.f32 %v1881, %v1882
    %v1884 = vmax.f32 %v1883, 0.0
    %v1885 = vmul.f32 %v987, %v1632
    %v1886 = vadd.f32 %v989, %v1885
    %v1887 = vmul.f32 %v991, %v1653
    %v1888 = vadd.f32 %v1886, %v1887
    %v1889 = vmul.f32 %v994, %v1674
    %v1890 = vadd.f32 %v1888, %v1889
    %v1891 = vmul.f32 %v997, %v1695
    %v1892 = vadd.f32 %v1890, %v1891
    %v1893 = vmul.f32 %v1000, %v1716
    %v1894 = vadd.f32 %v1892, %v1893
    %v1895 = vmul.f32 %v1003, %v1737
    %v1896 = vadd.f32 %v1894, %v1895
    %v1897 = vmul.f32 %v1006, %v1758
    %v1898 = vadd.f32 %v1896, %v1897
    %v1899 = vmul.f32 %v1009, %v1779
    %v1900 = vadd.f32 %v1898, %v1899
    %v1901 = vmul.f32 %v1012, %v1800
    %v1902 = vadd.f32 %v1900, %v1901
    %v1903 = vmul.f32 %v1015, %v1821
    %v1904 = vadd.f32 %v1902, %v1903
    %v1905 = vmax.f32 %v1904, 0.0
    %v1906 = vmul.f32 %v1019, %v1632
    %v1907 = vadd.f32 %v1021, %v1906
    %v1908 = vmul.f32 %v1023, %v1653
    %v1909 = vadd.f32 %v1907, %v1908
    %v1910 = vmul.f32 %v1026, %v1674
    %v1911 = vadd.f32 %v1909, %v1910
    %v1912 = vmul.f32 %v1029, %v1695
    %v1913 = vadd.f32 %v1911, %v1912
    %v1914 = vmul.f32 %v1032, %v1716
    %v1915 = vadd.f32 %v1913, %v1914
    %v1916 = vmul.f32 %v1035, %v1737
    %v1917 = vadd.f32 %v1915, %v1916
    %v1918 = vmul.f32 %v1038, %v1758
    %v1919 = vadd.f32 %v1917, %v1918
    %v1920 = vmul.f32 %v1041, %v1779
    %v1921 = vadd.f32 %v1919, %v1920
    %v1922 = vmul.f32 %v1044, %v1800
    %v1923 = vadd.f32 %v1921, %v1922
    %v1924 = vmul.f32 %v1047, %v1821
    %v1925 = vadd.f32 %v1923, %v1924
    %v1926 = vmax.f32 %v1925, 0.0
    %v1927 = vmul.f32 %v1051, %v1632
    %v1928 = vadd.f32 %v1053, %v1927
    %v1929 = vmul.f32 %v1055, %v1653
    %v1930 = vadd.f32 %v1928, %v1929
    %v1931 = vmul.f32 %v1058, %v1674
    %v1932 = vadd.f32 %v1930, %v1931
    %v1933 = vmul.f32 %v1061, %v1695
    %v1934 = vadd.f32 %v1932, %v1933
    %v1935 = vmul.f32 %v1064, %v1716
    %v1936 = vadd.f32 %v1934, %v1935
    %v1937 = vmul.f32 %v1067, %v1737
    %v1938 = vadd.f32 %v1936, %v1937
    %v1939 = vmul.f32 %v1070, %v1758
    %v1940 = vadd.f32 %v1938, %v1939
    %v1941 = vmul.f32 %v1073, %v1779
    %v1942 = vadd.f32 %v1940, %v1941
    %v1943 = vmul.f32 %v1076, %v1800
    %v1944 = vadd.f32 %v1942, %v1943
    %v1945 = vmul.f32 %v1079, %v1821
    %v1946 = vadd.f32 %v1944, %v1945
    %v1947 = vmax.f32 %v1946, 0.0
    %v1948 = vmul.f32 %v1083, %v1632
    %v1949 = vadd.f32 %v1085, %v1948
    %v1950 = vmul.f32 %v1087, %v1653
    %v1951 = vadd.f32 %v1949, %v1950
    %v1952 = vmul.f32 %v1090, %v1674
    %v1953 = vadd.f32 %v1951, %v1952
    %v1954 = vmul.f32 %v1093, %v1695
    %v1955 = vadd.f32 %v1953, %v1954
    %v1956 = vmul.f32 %v1096, %v1716
    %v1957 = vadd.f32 %v1955, %v1956
    %v1958 = vmul.f32 %v1099, %v1737
    %v1959 = vadd.f32 %v1957, %v1958
    %v1960 = vmul.f32 %v1102, %v1758
    %v1961 = vadd.f32 %v1959, %v1960
    %v1962 = vmul.f32 %v1105, %v1779
    %v1963 = vadd.f32 %v1961, %v1962
    %v1964 = vmul.f32 %v1108, %v1800
    %v1965 = vadd.f32 %v1963, %v1964
    %v1966 = vmul.f32 %v1111, %v1821
    %v1967 = vadd.f32 %v1965, %v1966
    %v1968 = vmax.f32 %v1967, 0.0
    %v1969 = vmul.f32 %v1115, %v1632
    %v1970 = vadd.f32 %v1117, %v1969
    %v1971 = vmul.f32 %v1119, %v1653
    %v1972 = vadd.f32 %v1970, %v1971
    %v1973 = vmul.f32 %v1122, %v1674
    %v1974 = vadd.f32 %v1972, %v1973
    %v1975 = vmul.f32 %v1125, %v1695
    %v1976 = vadd.f32 %v1974, %v1975
    %v1977 = vmul.f32 %v1128, %v1716
    %v1978 = vadd.f32 %v1976, %v1977
    %v1979 = vmul.f32 %v1131, %v1737
    %v1980 = vadd.f32 %v1978, %v1979
    %v1981 = vmul.f32 %v1134, %v1758
    %v1982 = vadd.f32 %v1980, %v1981
    %v1983 = vmul.f32 %v1137, %v1779
    %v1984 = vadd.f32 %v1982, %v1983
    %v1985 = vmul.f32 %v1140, %v1800
    %v1986 = vadd.f32 %v1984, %v1985
    %v1987 = vmul.f32 %v1143, %v1821
    %v1988 = vadd.f32 %v1986, %v1987
    %v1989 = vmax.f32 %v1988, 0.0
    %v1990 = vmul.f32 %v1147, %v1632
    %v1991 = vadd.f32 %v1149, %v1990
    %v1992 = vmul.f32 %v1151, %v1653
    %v1993 = vadd.f32 %v1991, %v1992
    %v1994 = vmul.f32 %v1154, %v1674
    %v1995 = vadd.f32 %v1993, %v1994
    %v1996 = vmul.f32 %v1157, %v1695
    %v1997 = vadd.f32 %v1995, %v1996
    %v1998 = vmul.f32 %v1160, %v1716
    %v1999 = vadd.f32 %v1997, %v1998
    %v2000 = vmul.f32 %v1163, %v1737
    %v2001 = vadd.f32 %v1999, %v2000
    %v2002 = vmul.f32 %v1166, %v1758
    %v2003 = vadd.f32 %v2001, %v2002
    %v2004 = vmul.f32 %v1169, %v1779
    %v2005 = vadd.f32 %v2003, %v2004
    %v2006 = vmul.f32 %v1172, %v1800
    %v2007 = vadd.f32 %v2005, %v2006
    %v2008 = vmul.f32 %v1175, %v1821
    %v2009 = vadd.f32 %v2007, %v2008
    %v2010 = vmax.f32 %v2009, 0.0
    %v2011 = vmul.f32 %v1179, %v1632
    %v2012 = vadd.f32 %v1181, %v2011
    %v2013 = vmul.f32 %v1183, %v1653
    %v2014 = vadd.f32 %v2012, %v2013
    %v2015 = vmul.f32 %v1186, %v1674
    %v2016 = vadd.f32 %v2014, %v2015
    %v2017 = vmul.f32 %v1189, %v1695
    %v2018 = vadd.f32 %v2016, %v2017
    %v2019 = vmul.f32 %v1192, %v1716
    %v2020 = vadd.f32 %v2018, %v2019
    %v2021 = vmul.f32 %v1195, %v1737
    %v2022 = vadd.f32 %v2020, %v2021
    %v2023 = vmul.f32 %v1198, %v1758
    %v2024 = vadd.f32 %v2022, %v2023
    %v2025 = vmul.f32 %v1201, %v1779
    %v2026 = vadd.f32 %v2024, %v2025
    %v2027 = vmul.f32 %v1204, %v1800
    %v2028 = vadd.f32 %v2026, %v2027
    %v2029 = vmul.f32 %v1207, %v1821
    %v2030 = vadd.f32 %v2028, %v2029
    %v2031 = vmax.f32 %v2030, 0.0
    %v2032 = vmul.f32 %v1211, %v1842
    %v2033 = vadd.f32 %v1213, %v2032
    %v2034 = vmul.f32 %v1215, %v1863
    %v2035 = vadd.f32 %v2033, %v2034
    %v2036 = vmul.f32 %v1218, %v1884
    %v2037 = vadd.f32 %v2035, %v2036
    %v2038 = vmul.f32 %v1221, %v1905
    %v2039 = vadd.f32 %v2037, %v2038
    %v2040 = vmul.f32 %v1224, %v1926
    %v2041 = vadd.f32 %v2039, %v2040
    %v2042 = vmul.f32 %v1227, %v1947
    %v2043 = vadd.f32 %v2041, %v2042
    %v2044 = vmul.f32 %v1230, %v1968
    %v2045 = vadd.f32 %v2043, %v2044
    %v2046 = vmul.f32 %v1233, %v1989
    %v2047 = vadd.f32 %v2045, %v2046
    %v2048 = vmul.f32 %v1236, %v2010
    %v2049 = vadd.f32 %v2047, %v2048
    %v2050 = vmul.f32 %v1239, %v2031
    %v2051 = vadd.f32 %v2049, %v2050
    %v2052 = vmax.f32 %v2051, 0.0
    %v2053 = vmul.f32 %v1243, %v1842
    %v2054 = vadd.f32 %v1245, %v2053
    %v2055 = vmul.f32 %v1247, %v1863
    %v2056 = vadd.f32 %v2054, %v2055
    %v2057 = vmul.f32 %v1250, %v1884
    %v2058 = vadd.f32 %v2056, %v2057
    %v2059 = vmul.f32 %v1253, %v1905
    %v2060 = vadd.f32 %v2058, %v2059
    %v2061 = vmul.f32 %v1256, %v1926
    %v2062 = vadd.f32 %v2060, %v2061
    %v2063 = vmul.f32 %v1259, %v1947
    %v2064 = vadd.f32 %v2062, %v2063
    %v2065 = vmul.f32 %v1262, %v1968
    %v2066 = vadd.f32 %v2064, %v2065
    %v2067 = vmul.f32 %v1265, %v1989
    %v2068 = vadd.f32 %v2066, %v2067
    %v2069 = vmul.f32 %v1268, %v2010
    %v2070 = vadd.f32 %v2068, %v2069
    %v2071 = vmul.f32 %v1271, %v2031
    %v2072 = vadd.f32 %v2070, %v2071
    %v2073 = vmax.f32 %v2072, 0.0
    %v2074 = vmul.f32 %v1275, %v1842
    %v2075 = vadd.f32 %v1277, %v2074
    %v2076 = vmul.f32 %v1279, %v1863
    %v2077 = vadd.f32 %v2075, %v2076
    %v2078 = vmul.f32 %v1282, %v1884
    %v2079 = vadd.f32 %v2077, %v2078
    %v2080 = vmul.f32 %v1285, %v1905
    %v2081 = vadd.f32 %v2079, %v2080
    %v2082 = vmul.f32 %v1288, %v1926
    %v2083 = vadd.f32 %v2081, %v2082
    %v2084 = vmul.f32 %v1291, %v1947
    %v2085 = vadd.f32 %v2083, %v2084
    %v2086 = vmul.f32 %v1294, %v1968
    %v2087 = vadd.f32 %v2085, %v2086
    %v2088 = vmul.f32 %v1297, %v1989
    %v2089 = vadd.f32 %v2087, %v2088
    %v2090 = vmul.f32 %v1300, %v2010
    %v2091 = vadd.f32 %v2089, %v2090
    %v2092 = vmul.f32 %v1303, %v2031
    %v2093 = vadd.f32 %v2091, %v2092
    %v2094 = vmax.f32 %v2093, 0.0
    %v2095 = vmul.f32 %v1307, %v1842
    %v2096 = vadd.f32 %v1309, %v2095
    %v2097 = vmul.f32 %v1311, %v1863
    %v2098 = vadd.f32 %v2096, %v2097
    %v2099 = vmul.f32 %v1314, %v1884
    %v2100 = vadd.f32 %v2098, %v2099
    %v2101 = vmul.f32 %v1317, %v1905
    %v2102 = vadd.f32 %v2100, %v2101
    %v2103 = vmul.f32 %v1320, %v1926
    %v2104 = vadd.f32 %v2102, %v2103
    %v2105 = vmul.f32 %v1323, %v1947
    %v2106 = vadd.f32 %v2104, %v2105
    %v2107 = vmul.f32 %v1326, %v1968
    %v2108 = vadd.f32 %v2106, %v2107
    %v2109 = vmul.f32 %v1329, %v1989
    %v2110 = vadd.f32 %v2108, %v2109
    %v2111 = vmul.f32 %v1332, %v2010
    %v2112 = vadd.f32 %v2110, %v2111
    %v2113 = vmul.f32 %v1335, %v2031
    %v2114 = vadd.f32 %v2112, %v2113
    %v2115 = vmax.f32 %v2114, 0.0
    %v2116 = vmul.f32 %v1339, %v1842
    %v2117 = vadd.f32 %v1341, %v2116
    %v2118 = vmul.f32 %v1343, %v1863
    %v2119 = vadd.f32 %v2117, %v2118
    %v2120 = vmul.f32 %v1346, %v1884
    %v2121 = vadd.f32 %v2119, %v2120
    %v2122 = vmul.f32 %v1349, %v1905
    %v2123 = vadd.f32 %v2121, %v2122
    %v2124 = vmul.f32 %v1352, %v1926
    %v2125 = vadd.f32 %v2123, %v2124
    %v2126 = vmul.f32 %v1355, %v1947
    %v2127 = vadd.f32 %v2125, %v2126
    %v2128 = vmul.f32 %v1358, %v1968
    %v2129 = vadd.f32 %v2127, %v2128
    %v2130 = vmul.f32 %v1361, %v1989
    %v2131 = vadd.f32 %v2129, %v2130
    %v2132 = vmul.f32 %v1364, %v2010
    %v2133 = vadd.f32 %v2131, %v2132
    %v2134 = vmul.f32 %v1367, %v2031
    %v2135 = vadd.f32 %v2133, %v2134
    %v2136 = vmax.f32 %v2135, 0.0
    %v2137 = vmul.f32 %v1371, %v1842
    %v2138 = vadd.f32 %v1373, %v2137
    %v2139 = vmul.f32 %v1375, %v1863
    %v2140 = vadd.f32 %v2138, %v2139
    %v2141 = vmul.f32 %v1378, %v1884
    %v2142 = vadd.f32 %v2140, %v2141
    %v2143 = vmul.f32 %v1381, %v1905
    %v2144 = vadd.f32 %v2142, %v2143
    %v2145 = vmul.f32 %v1384, %v1926
    %v2146 = vadd.f32 %v2144, %v2145
    %v2147 = vmul.f32 %v1387, %v1947
    %v2148 = vadd.f32 %v2146, %v2147
    %v2149 = vmul.f32 %v1390, %v1968
    %v2150 = vadd.f32 %v2148, %v2149
    %v2151 = vmul.f32 %v1393, %v1989
    %v2152 = vadd.f32 %v2150, %v2151
    %v2153 = vmul.f32 %v1396, %v2010
    %v2154 = vadd.f32 %v2152, %v2153
    %v2155 = vmul.f32 %v1399, %v2031
    %v2156 = vadd.f32 %v2154, %v2155
    %v2157 = vmax.f32 %v2156, 0.0
    %v2158 = vmul.f32 %v1403, %v1842
    %v2159 = vadd.f32 %v1405, %v2158
    %v2160 = vmul.f32 %v1407, %v1863
    %v2161 = vadd.f32 %v2159, %v2160
    %v2162 = vmul.f32 %v1410, %v1884
    %v2163 = vadd.f32 %v2161, %v2162
    %v2164 = vmul.f32 %v1413, %v1905
    %v2165 = vadd.f32 %v2163, %v2164
    %v2166 = vmul.f32 %v1416, %v1926
    %v2167 = vadd.f32 %v2165, %v2166
    %v2168 = vmul.f32 %v1419, %v1947
    %v2169 = vadd.f32 %v2167, %v2168
    %v2170 = vmul.f32 %v1422, %v1968
    %v2171 = vadd.f32 %v2169, %v2170
    %v2172 = vmul.f32 %v1425, %v1989
    %v2173 = vadd.f32 %v2171, %v2172
    %v2174 = vmul.f32 %v1428, %v2010
    %v2175 = vadd.f32 %v2173, %v2174
    %v2176 = vmul.f32 %v1431, %v2031
    %v2177 = vadd.f32 %v2175, %v2176
    %v2178 = vmax.f32 %v2177, 0.0
    %v2179 = vmul.f32 %v1435, %v1842
    %v2180 = vadd.f32 %v1437, %v2179
    %v2181 = vmul.f32 %v1439, %v1863
    %v2182 = vadd.f32 %v2180, %v2181
    %v2183 = vmul.f32 %v1442, %v1884
    %v2184 = vadd.f32 %v2182, %v2183
    %v2185 = vmul.f32 %v1445, %v1905
    %v2186 = vadd.f32 %v2184, %v2185
    %v2187 = vmul.f32 %v1448, %v1926
    %v2188 = vadd.f32 %v2186, %v2187
    %v2189 = vmul.f32 %v1451, %v1947
    %v2190 = vadd.f32 %v2188, %v2189
    %v2191 = vmul.f32 %v1454, %v1968
    %v2192 = vadd.f32 %v2190, %v2191
    %v2193 = vmul.f32 %v1457, %v1989
    %v2194 = vadd.f32 %v2192, %v2193
    %v2195 = vmul.f32 %v1460, %v2010
    %v2196 = vadd.f32 %v2194, %v2195
    %v2197 = vmul.f32 %v1463, %v2031
    %v2198 = vadd.f32 %v2196, %v2197
    %v2199 = vmax.f32 %v2198, 0.0
    %v2200 = vmul.f32 %v1467, %v1842
    %v2201 = vadd.f32 %v1469, %v2200
    %v2202 = vmul.f32 %v1471, %v1863
    %v2203 = vadd.f32 %v2201, %v2202
    %v2204 = vmul.f32 %v1474, %v1884
    %v2205 = vadd.f32 %v2203, %v2204
    %v2206 = vmul.f32 %v1477, %v1905
    %v2207 = vadd.f32 %v2205, %v2206
    %v2208 = vmul.f32 %v1480, %v1926
    %v2209 = vadd.f32 %v2207, %v2208
    %v2210 = vmul.f32 %v1483, %v1947
    %v2211 = vadd.f32 %v2209, %v2210
    %v2212 = vmul.f32 %v1486, %v1968
    %v2213 = vadd.f32 %v2211, %v2212
    %v2214 = vmul.f32 %v1489, %v1989
    %v2215 = vadd.f32 %v2213, %v2214
    %v2216 = vmul.f32 %v1492, %v2010
    %v2217 = vadd.f32 %v2215, %v2216
    %v2218 = vmul.f32 %v1495, %v2031
    %v2219 = vadd.f32 %v2217, %v2218
    %v2220 = vmax.f32 %v2219, 0.0
    %v2221 = vmul.f32 %v1499, %v1842
    %v2222 = vadd.f32 %v1501, %v2221
    %v2223 = vmul.f32 %v1503, %v1863
    %v2224 = vadd.f32 %v2222, %v2223
    %v2225 = vmul.f32 %v1506, %v1884
    %v2226 = vadd.f32 %v2224, %v2225
    %v2227 = vmul.f32 %v1509, %v1905
    %v2228 = vadd.f32 %v2226, %v2227
    %v2229 = vmul.f32 %v1512, %v1926
    %v2230 = vadd.f32 %v2228, %v2229
    %v2231 = vmul.f32 %v1515, %v1947
    %v2232 = vadd.f32 %v2230, %v2231
    %v2233 = vmul.f32 %v1518, %v1968
    %v2234 = vadd.f32 %v2232, %v2233
    %v2235 = vmul.f32 %v1521, %v1989
    %v2236 = vadd.f32 %v2234, %v2235
    %v2237 = vmul.f32 %v1524, %v2010
    %v2238 = vadd.f32 %v2236, %v2237
    %v2239 = vmul.f32 %v1527, %v2031
    %v2240 = vadd.f32 %v2238, %v2239
    %v2241 = vmax.f32 %v2240, 0.0
    %v2242 = vmul.f32 %v1531, %v2052
    %v2243 = vadd.f32 %v1533, %v2242
    %v2244 = vmul.f32 %v1535, %v2073
    %v2245 = vadd.f32 %v2243, %v2244
    %v2246 = vmul.f32 %v1538, %v2094
    %v2247 = vadd.f32 %v2245, %v2246
    %v2248 = vmul.f32 %v1541, %v2115
    %v2249 = vadd.f32 %v2247, %v2248
    %v2250 = vmul.f32 %v1544, %v2136
    %v2251 = vadd.f32 %v2249, %v2250
    %v2252 = vmul.f32 %v1547, %v2157
    %v2253 = vadd.f32 %v2251, %v2252
    %v2254 = vmul.f32 %v1550, %v2178
    %v2255 = vadd.f32 %v2253, %v2254
    %v2256 = vmul.f32 %v1553, %v2199
    %v2257 = vadd.f32 %v2255, %v2256
    %v2258 = vmul.f32 %v1556, %v2220
    %v2259 = vadd.f32 %v2257, %v2258
    %v2260 = vmul.f32 %v1559, %v2241
    %v2261 = vadd.f32 %v2259, %v2260
    %2262 = vst.msk [vmem:[#allocation3 + $0x8] sm:$0xff] %vm1562, %v2261
    %v2263 = vsel %vm1562, %v2261, 0.0
    %2264 = vadd.xlane.f32.xlu0 %v2263
    %v2265 = vpop.xlane.xlu0 %2264
    %v2266 = vadd.f32 %v2265, 0.0
    %v2267 = vmul.f32 %v2261, %v2261
    %v2268 = vsel %vm1562, %v2267, 0.0
    %2269 = vadd.xlane.f32.xlu0 %v2268
    %v2270 = vpop.xlane.xlu0 %2269
    %v2271 = vadd.f32 %v2270, 0.0
    %v2272 = vmul.f32 %v2266, 0.0625
    %v2273 = vmul.f32 %v2266, %v2272
    %v2274 = vsub.f32 %v2271, %v2273
    %v2275 = vrsqrt.pop %v2274
    %v2276 = vld [vmem:[#allocation3 + $0x8] sm:$0xff]
    %v2277 = vsub.f32 %v2276, %v2272
    %v2278 = vmul.f32 %v2277, %v2275
    %2279 = vst.msk [vmem:[#allocation3 + $0x8] sm:$0xff] %vm1562, %v2278
    %v2280 = vld [vmem:[#allocation3] sm:$0xff]
    %v2281 = vld [vmem:[#allocation3 + $0x8] sm:$0xff]
    %v2283 = vsel %vm1562, %v2280, 0
    %v2286 = vsel %vm1562, %v2281, 0
    %2288 = vmatprep.subr.mxu0 0.0
    %2289 = vmatpush1.xpose.msra.mxu0 0.0
    %2290 = vmatprep.subr.mxu0 0.0
    %2291 = vmatpush1.xpose.msra.mxu0 0.0
    %2292 = vmatprep.subr.mxu0 0.0
    %2293 = vmatpush1.xpose.msra.mxu0 0.0
    %2294 = vmatprep.subr.mxu0 0.0
    %2295 = vmatpush1.xpose.msra.mxu0 0.0
    %2296 = vmatprep.subr.mxu0 0.0
    %2297 = vmatpush1.xpose.msra.mxu0 0.0
    %2298 = vmatprep.subr.mxu0 0.0
    %2299 = vmatpush1.xpose.msra.mxu0 0.0
    %2300 = vmatprep.subr.mxu0 0.0
    %2301 = vmatpush1.xpose.msra.mxu0 0.0
    %2302 = vmatprep.subr.mxu0 0.0
    %2303 = vmatpush1.xpose.msra.mxu0 0.0
    %2304 = vmatprep.subr.mxu0 0.0
    %2305 = vmatpush1.xpose.msra.mxu0 0.0
    %2306 = vmatprep.subr.mxu0 0.0
    %2307 = vmatpush1.xpose.msra.mxu0 0.0
    %2308 = vmatprep.subr.mxu0 0.0
    %2309 = vmatpush1.xpose.msra.mxu0 0.0
    %2310 = vmatprep.subr.mxu0 0.0
    %2311 = vmatpush1.xpose.msra.mxu0 0.0
    %2312 = vmatprep.subr.mxu0 0.0
    %2313 = vmatpush1.xpose.msra.mxu0 0.0
    %2314 = vmatprep.subr.mxu0 0.0
    %2315 = vmatpush1.xpose.msra.mxu0 0.0
    %2316 = vmatprep.subr.mxu0 0.0
    %2317 = vmatpush1.xpose.msra.mxu0 %v2286
    %2318 = vmatprep.subr.mxu0 0.0
    %2319 = vmatpush1.xpose.msra.mxu0 %v2283
    %2320 = vmatprep.subr.mxu0 0.0
    %2321 = vmatpush2.xpose.msra.mxu0 0.0
    %2322 = vmatprep.subr.mxu0 0.0
    %2323 = vmatpush2.xpose.msra.mxu0 0.0
    %2324 = vmatprep.subr.mxu0 0.0
    %2325 = vmatpush2.xpose.msra.mxu0 0.0
    %2326 = vmatprep.subr.mxu0 0.0
    %2327 = vmatpush2.xpose.msra.mxu0 0.0
    %2328 = vmatprep.subr.mxu0 0.0
    %2329 = vmatpush2.xpose.msra.mxu0 0.0
    %2330 = vmatprep.subr.mxu0 0.0
    %2331 = vmatpush2.xpose.msra.mxu0 0.0
    %2332 = vmatprep.subr.mxu0 0.0
    %2333 = vmatpush2.xpose.msra.mxu0 0.0
    %2334 = vmatprep.subr.mxu0 0.0
    %2335 = vmatpush2.xpose.msra.mxu0 0.0
    %2336 = vmatprep.subr.mxu0 0.0
    %2337 = vmatpush2.xpose.msra.mxu0 0.0
    %2338 = vmatprep.subr.mxu0 0.0
    %2339 = vmatpush2.xpose.msra.mxu0 0.0
    %2340 = vmatprep.subr.mxu0 0.0
    %2341 = vmatpush2.xpose.msra.mxu0 0.0
    %2342 = vmatprep.subr.mxu0 0.0
    %2343 = vmatpush2.xpose.msra.mxu0 0.0
    %2344 = vmatprep.subr.mxu0 0.0
    %2345 = vmatpush2.xpose.msra.mxu0 0.0
    %2346 = vmatprep.subr.mxu0 0.0
    %2347 = vmatpush2.xpose.msra.mxu0 0.0
    %2348 = vmatprep.subr.mxu0 0.0
    %2349 = vmatpush2.xpose.msra.mxu0 0.0
    %2350 = vmatprep.subr.mxu0 0.0
    %2351 = vmatpush2.xpose.msra.mxu0 0.0
    %2352 = vmatprep.mubr.f32.mxu0 0.0
    %2353 = vmatmul.mubr.f32.gmra.mxu0 %v2283
    %v2354 = vpop.f32.mrf.mxu0
    %v2355 = vadd.f32 0.0, %v2354
    %v2356 = vpop.f32.mrf.mxu0
    %2357 = vmatprep.mubr.f32.mxu0 0.0
    %2358 = vmatmul.mubr.f32.gmra.mxu0 %v2286
    %v2359 = vpop.f32.mrf.mxu0
    %v2360 = vadd.f32 0.0, %v2359
    %v2361 = vpop.f32.mrf.mxu0
    %2362 = vdwg.mxu0
    %v2363 = vmax.f32 %v2355, -1.0
    %v2364 = vmax.f32 %v2360, -1.0
    %v2365 = vmin.f32 %v2363, 1.0
    %v2366 = vmin.f32 %v2364, 1.0
    %v2367 = vsub.f32 1.0, %v2365
    %v2368 = vsub.f32 1.0, %v2366
    %2369 = vst.msk [vmem:[#allocation20] sm:$0xff] %vm1562, %v2367
    %2370 = vst.msk [vmem:[#allocation20 + $0x8] sm:$0xff] %vm1562, %v2368
    // Predicated region
    $region86: #{tpu_custom_call.1} parent=1 // pred_check
      _
    $region87: #{tpu_custom_call.1} parent=1 // pred_check_branch
      %2372 = sbr.rel (0) target = $region89
    $region88: #{tpu_custom_call.1} parent=1 // pred_region
      %s2374 = ssub.s32 256, 256
      %2375 = vsyncadd [#allocation5], %s2374
      %s2376 = sshll.u32 [#allocation20], 4
      %s2377 = int_to_ptr.vmem [resolvable:$true] %s2376
      %2382 = dma.vmem_to_hbm [thread:$0]  %s2377, 256, %s11, [#allocation5], 128, 128, 8
    $region89: #{tpu_custom_call.1} parent=1 // pred_fallthru
      _
    // Predicated region
    $region90: #{tpu_custom_call.1} parent=1 // pred_check
      _
    $region91: #{tpu_custom_call.1} parent=1 // pred_check_branch
      %2384 = sbr.rel (0) target = $region93
    $region92: #{tpu_custom_call.1} parent=1 // pred_region
      %2385 = dma.done [#allocation5], 256
    $region93: #{tpu_custom_call.1} parent=1 // pred_fallthru
      _
    %2386 = vsyncpa [#allocation4], 1
    %2387 = vsyncpa [#allocation5], 1
    %2388 = vsyncpa [#allocation6], 1
    %2389 = vsyncpa [#allocation9], 1
    %2390 = vsyncpa [#allocation12], 1
    %2391 = vsyncpa [#allocation15], 1
    %2392 = vsyncpa [#allocation18], 1

</llo_original>
